<compile_context>
chip_gen: v7x
topology: tpu7x:2x2x1
jax: 0.10.0
libtpu: 0.0.40
codegen_flags: <defaults>
</compile_context>

<pallas_src>
import jax
import jax.numpy as jnp
from jax.experimental import pallas as pl
from jax.experimental.pallas import tpu as pltpu

# ---- module hyperparameters (copied from the PyTorch script) -----------------
d_hidden_layers = [512, 1024, 512, 1024, 256]
img_size = (28, 28)
leaky_slope = 0.2
n_embed = 10
nc = 1
num_classes = 10

IMG_FLAT = nc * img_size[0] * img_size[1]                       # 784
# Logical layer widths: [794, 512, 1024, 512, 1024, 256, 1]
RAW_DIMS = [IMG_FLAT + n_embed] + d_hidden_layers + [1]
N_LAYERS = len(RAW_DIMS) - 1                                    # 6

X_PAD = 896                   # x-part of the feature, 784 -> 896 (lane-dense)
EMB_ROWS = 16                 # num_classes 10 -> 16 (sublane-dense)
EMB_COLS = 128                # n_embed 10 -> 128 (lane-dense)
OUT_DIMS = [512, 1024, 512, 1024, 256, 128]   # padded per-layer output widths
BIAS_OFFS = [0]
for _n in OUT_DIMS:
    BIAS_OFFS.append(BIAS_OFFS[-1] + _n)
BIAS_TOTAL = BIAS_OFFS[-1]    # 3456 = 27 * 128
N_W = N_LAYERS + 1            # 7 weight tensors (layer 0 split into x + emb parts)


def _round_up(x, m):
    return ((x + m - 1) // m) * m


# ---- Pallas kernel: feature build + entire MLP fused into a single call ------
def _fused_mlp_kernel(x_ref, y_ref, emb_ref, b_ref,
                      w0x_hbm, w0e_hbm, w1_hbm, w2_hbm, w3_hbm, w4_hbm, w5_hbm,
                      o_ref,
                      w0x_v, w0e_v, w1_v, w2_v, w3_v, w4_v, w5_v,
                      dma_sems):
    w_hbm = (w0x_hbm, w0e_hbm, w1_hbm, w2_hbm, w3_hbm, w4_hbm, w5_hbm)
    w_vmem = (w0x_v, w0e_v, w1_v, w2_v, w3_v, w4_v, w5_v)

    # Kick off every weight DMA immediately; compute of layer i overlaps the
    # HBM->VMEM streaming of the remaining layers (bf16 weights, ~4.8 MB).
    copies = []
    for i in range(N_W):
        cp = pltpu.make_async_copy(w_hbm[i], w_vmem[i], dma_sems.at[i])
        cp.start()
        copies.append(cp)

    # ---- fused feature build -------------------------------------------------
    # Embedding lookup as an exact one-hot @ table matmul (one nonzero term per
    # row, so no rounding): replaces the XLA gather + concat glue ops.
    lbl = y_ref[...]                                              # (B_pad, 1) i32
    klass = jax.lax.broadcasted_iota(jnp.int32, (lbl.shape[0], EMB_ROWS), 1)
    onehot = (klass == lbl).astype(jnp.float32)                   # (B_pad, 16)
    emb = jnp.dot(onehot, emb_ref[...],
                  preferred_element_type=jnp.float32)             # (B_pad, 128)

    x_bf = x_ref[...].astype(jnp.bfloat16)                        # (B_pad, 896)
    emb_bf = emb.astype(jnp.bfloat16)                             # (B_pad, 128)

    def bias(i):
        return b_ref[:, BIAS_OFFS[i]:BIAS_OFFS[i + 1]]            # (1, OUT_DIMS[i])

    # ---- layer 0: split matmul (x part + embedding part) — no concat needed --
    copies[0].wait()
    y = jnp.dot(x_bf, w0x_v[...], preferred_element_type=jnp.float32)
    copies[1].wait()
    y = y + jnp.dot(emb_bf, w0e_v[...], preferred_element_type=jnp.float32)
    y = y + bias(0)
    # LeakyReLU(0.2); Dropout is identity at inference time.
    y = jnp.where(y > 0, y, leaky_slope * y)
    h = y.astype(jnp.bfloat16)

    # ---- layers 1..5 ---------------------------------------------------------
    for i in range(1, N_LAYERS):
        copies[i + 1].wait()
        y = jnp.dot(h, w_vmem[i + 1][...], preferred_element_type=jnp.float32)
        y = y + bias(i)
        if i < N_LAYERS - 1:
            y = jnp.where(y > 0, y, leaky_slope * y)
            h = y.astype(jnp.bfloat16)
        else:
            # Numerically stable sigmoid; exact reciprocal (EUP is idle anyway).
            e = jnp.exp(-jnp.abs(y))
            r = pl.reciprocal(1.0 + e, approx=False)
            o_ref[...] = jnp.where(y >= 0, r, e * r).astype(o_ref.dtype)


def fused_mlp(feat, labels, emb_table, bias_cat, weights):
    """feat: (B_pad, 896) f32; labels: (B_pad, 1) i32; emb_table: (16,128) f32;
    bias_cat: (1, 3456) f32; weights: 7x bf16 matrices streamed from HBM."""
    b_pad = feat.shape[0]

    in_specs = (
        [
            pl.BlockSpec((b_pad, X_PAD), lambda i: (0, 0)),        # feature (x)
            pl.BlockSpec((b_pad, 1), lambda i: (0, 0)),            # labels
            pl.BlockSpec((EMB_ROWS, EMB_COLS), lambda i: (0, 0)),  # embedding tbl
            pl.BlockSpec((1, BIAS_TOTAL), lambda i: (0, 0)),       # all biases
        ]
        + [pl.BlockSpec(memory_space=pl.ANY) for _ in range(N_W)]  # weights (HBM)
    )
    scratch_shapes = (
        [pltpu.VMEM(w.shape, jnp.bfloat16) for w in weights]
        + [pltpu.SemaphoreType.DMA((N_W,))]
    )
    return pl.pallas_call(
        _fused_mlp_kernel,
        out_shape=jax.ShapeDtypeStruct((b_pad, OUT_DIMS[-1]), jnp.float32),
        grid_spec=pltpu.PrefetchScalarGridSpec(
            num_scalar_prefetch=0,
            grid=(1,),
            in_specs=in_specs,
            out_specs=pl.BlockSpec((b_pad, OUT_DIMS[-1]), lambda i: (0, 0)),
            scratch_shapes=scratch_shapes,
        ),
        compiler_params=pltpu.CompilerParams(
            dimension_semantics=("arbitrary",),
            # Actual footprint ~5 MB (bf16 weights + small pipelined inputs);
            # 16 MiB leaves headroom yet stays well inside v7x's 64 MiB VMEM.
            vmem_limit_bytes=16 << 20,
        ),
    )(feat, labels, emb_table, bias_cat, *weights)


# ---- parameter initialization (deterministic, synthetic) ---------------------
def init_params(key):
    raw_w, raw_b = [], []
    for i in range(N_LAYERS):
        in_r, out_r = RAW_DIMS[i], RAW_DIMS[i + 1]
        key, kw, kb = jax.random.split(key, 3)
        bound = 1.0 / (in_r ** 0.5)  # nn.Linear default init bound
        # stored as (in, out): transposed vs. PyTorch nn.Linear.weight
        raw_w.append(jax.random.uniform(kw, (in_r, out_r), jnp.float32, -bound, bound))
        raw_b.append(jax.random.uniform(kb, (out_r,), jnp.float32, -bound, bound))
    key, ke = jax.random.split(key)
    emb_raw = jax.random.normal(ke, (num_classes, n_embed), jnp.float32)  # N(0,1)

    # Layer 0 split: rows 0..783 act on flattened x, rows 784..793 on embedding.
    w0 = raw_w[0]                                                   # (794, 512)
    w0x = jnp.pad(w0[:IMG_FLAT], ((0, X_PAD - IMG_FLAT), (0, 0))).astype(jnp.bfloat16)
    w0e = jnp.pad(w0[IMG_FLAT:], ((0, EMB_COLS - n_embed), (0, 0))).astype(jnp.bfloat16)
    weights = [w0x, w0e]
    for i in range(1, N_LAYERS):
        w = raw_w[i]
        weights.append(
            jnp.pad(w, ((0, 0), (0, OUT_DIMS[i] - w.shape[1]))).astype(jnp.bfloat16))

    bias_cat = jnp.concatenate(
        [jnp.pad(raw_b[i], (0, OUT_DIMS[i] - raw_b[i].shape[0])) for i in range(N_LAYERS)]
    ).reshape(1, BIAS_TOTAL)

    emb_table = jnp.pad(emb_raw, ((0, EMB_ROWS - num_classes), (0, EMB_COLS - n_embed)))
    return {"weights": weights, "bias_cat": bias_cat, "embedding": emb_table}


# ---- forward pass -------------------------------------------------------------
@jax.jit
def cdiscriminator_forward(params, x, y):
    """x: (B, 1, 28, 28) f32 NCHW, y: (B,) int labels -> (B, 1) f32 in (0,1)."""
    b = x.shape[0]
    b_pad = max(16, _round_up(b, 16))   # bf16 native sublane tile is 16
    flat = x.reshape(b, IMG_FLAT)
    feat = jnp.pad(flat, ((0, b_pad - b), (0, X_PAD - IMG_FLAT)))
    lbl = jnp.pad(y.astype(jnp.int32).reshape(b, 1), ((0, b_pad - b), (0, 0)))
    out = fused_mlp(feat, lbl, params["embedding"], params["bias_cat"],
                    params["weights"])                              # (B_pad, 128)
    return out[:b, :1]


def reference_forward(params, x, y):
    """Pure-JAX reference mirroring PyTorch semantics (gather + concat + MLP)."""
    b = x.shape[0]
    flat = x.reshape(b, IMG_FLAT)
    emb = params["embedding"][y][:, :n_embed]                       # exact lookup
    h = jnp.concatenate([flat, emb], axis=-1).astype(jnp.bfloat16)  # (B, 794)
    # Reconstruct the logical layer-0 weight from its split/padded storage.
    w0 = jnp.concatenate([params["weights"][0][:IMG_FLAT],
                          params["weights"][1][:n_embed]], axis=0)  # (794, 512)
    ws = [w0] + [params["weights"][i + 1] for i in range(1, N_LAYERS)]
    z = None
    for i in range(N_LAYERS):
        z = jnp.dot(h, ws[i], preferred_element_type=jnp.float32)
        z = z + params["bias_cat"][:, BIAS_OFFS[i]:BIAS_OFFS[i + 1]]
        if i < N_LAYERS - 1:
            z = jnp.where(z > 0, z, leaky_slope * z)
            h = z.astype(jnp.bfloat16)
        else:
            z = jax.nn.sigmoid(z)
    return z[:, :1]


# ---- demo ---------------------------------------------------------------------
if __name__ == "__main__":
    key = jax.random.PRNGKey(0)
    kp, kx, ky = jax.random.split(key, 3)

    params = init_params(kp)

    B = 4
    x = jax.random.normal(kx, (B, nc, img_size[0], img_size[1]), jnp.float32)
    y = jax.random.randint(ky, (B,), 0, num_classes, dtype=jnp.int32)

    out = jax.block_until_ready(cdiscriminator_forward(params, x, y))
    ref = jax.block_until_ready(reference_forward(params, x, y))

    assert out.shape == (B, 1), out.shape
    assert bool(jnp.all(jnp.isfinite(out))), "non-finite output"
    assert bool(jnp.all((out >= 0.0) & (out <= 1.0))), "sigmoid output out of range"
    max_err = float(jnp.max(jnp.abs(out - ref)))
    assert max_err < 1e-2, f"mismatch vs reference: {max_err}"
    print("KERNEL_OK")
</pallas_src>

<mosaic_0001>
module attributes {stable_mosaic.version = 11 : i64} {
  func.func @_fused_mlp_kernel(%arg0: i32, %arg1: memref<16x896xf32, #tpu.memory_space<vmem>>, %arg2: memref<16x1xi32, #tpu.memory_space<vmem>>, %arg3: memref<16x128xf32, #tpu.memory_space<vmem>>, %arg4: memref<1x3456xf32, #tpu.memory_space<vmem>>, %arg5: memref<896x512xbf16, #tpu.memory_space<any>>, %arg6: memref<128x512xbf16, #tpu.memory_space<any>>, %arg7: memref<512x1024xbf16, #tpu.memory_space<any>>, %arg8: memref<1024x512xbf16, #tpu.memory_space<any>>, %arg9: memref<512x1024xbf16, #tpu.memory_space<any>>, %arg10: memref<1024x256xbf16, #tpu.memory_space<any>>, %arg11: memref<256x128xbf16, #tpu.memory_space<any>>, %arg12: memref<16x128xf32, #tpu.memory_space<vmem>>, %arg13: memref<896x512xbf16, #tpu.memory_space<vmem>>, %arg14: memref<128x512xbf16, #tpu.memory_space<vmem>>, %arg15: memref<512x1024xbf16, #tpu.memory_space<vmem>>, %arg16: memref<1024x512xbf16, #tpu.memory_space<vmem>>, %arg17: memref<512x1024xbf16, #tpu.memory_space<vmem>>, %arg18: memref<1024x256xbf16, #tpu.memory_space<vmem>>, %arg19: memref<256x128xbf16, #tpu.memory_space<vmem>>, %arg20: memref<7x!tpu.dma_semaphore, #tpu.memory_space<semaphore_mem>>) attributes {dimension_semantics = [#tpu.dimension_semantics<arbitrary>], iteration_bounds = array<i64: 1>, scalar_prefetch = 0 : i64, scratch_operands = 8 : i64, tpu.core_type = #tpu.core_type<tc>, window_params = [{pipeline_mode = #tpu.pipeline_mode<synchronous>, transform_indices = @transform_0, window_bounds = array<i64: 16, 896>}, {pipeline_mode = #tpu.pipeline_mode<synchronous>, transform_indices = @transform_1, window_bounds = array<i64: 16, 1>}, {pipeline_mode = #tpu.pipeline_mode<synchronous>, transform_indices = @transform_2, window_bounds = array<i64: 16, 128>}, {pipeline_mode = #tpu.pipeline_mode<synchronous>, transform_indices = @transform_3, window_bounds = array<i64: 1, 3456>}, {}, {}, {}, {}, {}, {}, {}, {pipeline_mode = #tpu.pipeline_mode<synchronous>, transform_indices = @transform_11, window_bounds = array<i64: 16, 128>}]} {
    %c0_i32 = arith.constant 0 : i32
    %0 = tpu.memref_slice %arg20[%c0_i32] : memref<7x!tpu.dma_semaphore, #tpu.memory_space<semaphore_mem>> -> memref<1x!tpu.dma_semaphore, #tpu.memory_space<semaphore_mem>>
    %1 = tpu.memref_squeeze %0 : memref<1x!tpu.dma_semaphore, #tpu.memory_space<semaphore_mem>> -> memref<!tpu.dma_semaphore, #tpu.memory_space<semaphore_mem>>
    tpu.enqueue_dma source(%arg5 : memref<896x512xbf16, #tpu.memory_space<any>>) target(%arg13 : memref<896x512xbf16, #tpu.memory_space<vmem>>) target_semaphore(%1 : memref<!tpu.dma_semaphore, #tpu.memory_space<semaphore_mem>>)
    %c1_i32 = arith.constant 1 : i32
    %2 = tpu.memref_slice %arg20[%c1_i32] : memref<7x!tpu.dma_semaphore, #tpu.memory_space<semaphore_mem>> -> memref<1x!tpu.dma_semaphore, #tpu.memory_space<semaphore_mem>>
    %3 = tpu.memref_squeeze %2 : memref<1x!tpu.dma_semaphore, #tpu.memory_space<semaphore_mem>> -> memref<!tpu.dma_semaphore, #tpu.memory_space<semaphore_mem>>
    tpu.enqueue_dma source(%arg6 : memref<128x512xbf16, #tpu.memory_space<any>>) target(%arg14 : memref<128x512xbf16, #tpu.memory_space<vmem>>) target_semaphore(%3 : memref<!tpu.dma_semaphore, #tpu.memory_space<semaphore_mem>>)
    %c2_i32 = arith.constant 2 : i32
    %4 = tpu.memref_slice %arg20[%c2_i32] : memref<7x!tpu.dma_semaphore, #tpu.memory_space<semaphore_mem>> -> memref<1x!tpu.dma_semaphore, #tpu.memory_space<semaphore_mem>>
    %5 = tpu.memref_squeeze %4 : memref<1x!tpu.dma_semaphore, #tpu.memory_space<semaphore_mem>> -> memref<!tpu.dma_semaphore, #tpu.memory_space<semaphore_mem>>
    tpu.enqueue_dma source(%arg7 : memref<512x1024xbf16, #tpu.memory_space<any>>) target(%arg15 : memref<512x1024xbf16, #tpu.memory_space<vmem>>) target_semaphore(%5 : memref<!tpu.dma_semaphore, #tpu.memory_space<semaphore_mem>>)
    %c3_i32 = arith.constant 3 : i32
    %6 = tpu.memref_slice %arg20[%c3_i32] : memref<7x!tpu.dma_semaphore, #tpu.memory_space<semaphore_mem>> -> memref<1x!tpu.dma_semaphore, #tpu.memory_space<semaphore_mem>>
    %7 = tpu.memref_squeeze %6 : memref<1x!tpu.dma_semaphore, #tpu.memory_space<semaphore_mem>> -> memref<!tpu.dma_semaphore, #tpu.memory_space<semaphore_mem>>
    tpu.enqueue_dma source(%arg8 : memref<1024x512xbf16, #tpu.memory_space<any>>) target(%arg16 : memref<1024x512xbf16, #tpu.memory_space<vmem>>) target_semaphore(%7 : memref<!tpu.dma_semaphore, #tpu.memory_space<semaphore_mem>>)
    %c4_i32 = arith.constant 4 : i32
    %8 = tpu.memref_slice %arg20[%c4_i32] : memref<7x!tpu.dma_semaphore, #tpu.memory_space<semaphore_mem>> -> memref<1x!tpu.dma_semaphore, #tpu.memory_space<semaphore_mem>>
    %9 = tpu.memref_squeeze %8 : memref<1x!tpu.dma_semaphore, #tpu.memory_space<semaphore_mem>> -> memref<!tpu.dma_semaphore, #tpu.memory_space<semaphore_mem>>
    tpu.enqueue_dma source(%arg9 : memref<512x1024xbf16, #tpu.memory_space<any>>) target(%arg17 : memref<512x1024xbf16, #tpu.memory_space<vmem>>) target_semaphore(%9 : memref<!tpu.dma_semaphore, #tpu.memory_space<semaphore_mem>>)
    %c5_i32 = arith.constant 5 : i32
    %10 = tpu.memref_slice %arg20[%c5_i32] : memref<7x!tpu.dma_semaphore, #tpu.memory_space<semaphore_mem>> -> memref<1x!tpu.dma_semaphore, #tpu.memory_space<semaphore_mem>>
    %11 = tpu.memref_squeeze %10 : memref<1x!tpu.dma_semaphore, #tpu.memory_space<semaphore_mem>> -> memref<!tpu.dma_semaphore, #tpu.memory_space<semaphore_mem>>
    tpu.enqueue_dma source(%arg10 : memref<1024x256xbf16, #tpu.memory_space<any>>) target(%arg18 : memref<1024x256xbf16, #tpu.memory_space<vmem>>) target_semaphore(%11 : memref<!tpu.dma_semaphore, #tpu.memory_space<semaphore_mem>>)
    %c6_i32 = arith.constant 6 : i32
    %12 = tpu.memref_slice %arg20[%c6_i32] : memref<7x!tpu.dma_semaphore, #tpu.memory_space<semaphore_mem>> -> memref<1x!tpu.dma_semaphore, #tpu.memory_space<semaphore_mem>>
    %13 = tpu.memref_squeeze %12 : memref<1x!tpu.dma_semaphore, #tpu.memory_space<semaphore_mem>> -> memref<!tpu.dma_semaphore, #tpu.memory_space<semaphore_mem>>
    tpu.enqueue_dma source(%arg11 : memref<256x128xbf16, #tpu.memory_space<any>>) target(%arg19 : memref<256x128xbf16, #tpu.memory_space<vmem>>) target_semaphore(%13 : memref<!tpu.dma_semaphore, #tpu.memory_space<semaphore_mem>>)
    %c0 = arith.constant 0 : index
    %c0_0 = arith.constant 0 : index
    %14 = vector.load %arg2[%c0, %c0_0] : memref<16x1xi32, #tpu.memory_space<vmem>>, vector<16x1xi32>
    %15 = tpu.iota {dimensions = array<i32: 1>} : vector<16x16xi32>
    %16 = vector.broadcast %14 : vector<16x1xi32> to vector<16x16xi32>
    %17 = arith.cmpi eq, %15, %16 : vector<16x16xi32>
    %18 = arith.extui %17 : vector<16x16xi1> to vector<16x16xi32>
    %19 = arith.sitofp %18 : vector<16x16xi32> to vector<16x16xf32>
    %c0_1 = arith.constant 0 : index
    %c0_2 = arith.constant 0 : index
    %20 = vector.load %arg3[%c0_1, %c0_2] : memref<16x128xf32, #tpu.memory_space<vmem>>, vector<16x128xf32>
    %cst = arith.constant dense<0.000000e+00> : vector<16x128xf32>
    %21 = tpu.matmul %19, %20, %cst {dimension_numbers = #tpu.dot_dimension_numbers<[1], [0], [0], [1], [0, 0, 1, 1], [], []>} : vector<16x16xf32>, vector<16x128xf32>, vector<16x128xf32> -> vector<16x128xf32>
    %c0_3 = arith.constant 0 : index
    %c0_4 = arith.constant 0 : index
    %22 = vector.load %arg1[%c0_3, %c0_4] : memref<16x896xf32, #tpu.memory_space<vmem>>, vector<16x896xf32>
    %23 = arith.truncf %22 : vector<16x896xf32> to vector<16x896xbf16>
    %24 = arith.truncf %21 : vector<16x128xf32> to vector<16x128xbf16>
    %c0_i32_5 = arith.constant 0 : i32
    %25 = tpu.memref_slice %arg20[%c0_i32_5] : memref<7x!tpu.dma_semaphore, #tpu.memory_space<semaphore_mem>> -> memref<1x!tpu.dma_semaphore, #tpu.memory_space<semaphore_mem>>
    %26 = tpu.memref_squeeze %25 : memref<1x!tpu.dma_semaphore, #tpu.memory_space<semaphore_mem>> -> memref<!tpu.dma_semaphore, #tpu.memory_space<semaphore_mem>>
    tpu.wait_dma2 semaphore(%26 : memref<!tpu.dma_semaphore, #tpu.memory_space<semaphore_mem>>) src(%arg5 : memref<896x512xbf16, #tpu.memory_space<any>>) dst(%arg13 : memref<896x512xbf16, #tpu.memory_space<vmem>>)
    %c0_6 = arith.constant 0 : index
    %c0_7 = arith.constant 0 : index
    %27 = vector.load %arg13[%c0_6, %c0_7] : memref<896x512xbf16, #tpu.memory_space<vmem>>, vector<896x512xbf16>
    %cst_8 = arith.constant dense<0.000000e+00> : vector<16x512xf32>
    %28 = tpu.matmul %23, %27, %cst_8 {dimension_numbers = #tpu.dot_dimension_numbers<[1], [0], [0], [1], [0, 0, 1, 1], [], []>} : vector<16x896xbf16>, vector<896x512xbf16>, vector<16x512xf32> -> vector<16x512xf32>
    %c1_i32_9 = arith.constant 1 : i32
    %29 = tpu.memref_slice %arg20[%c1_i32_9] : memref<7x!tpu.dma_semaphore, #tpu.memory_space<semaphore_mem>> -> memref<1x!tpu.dma_semaphore, #tpu.memory_space<semaphore_mem>>
    %30 = tpu.memref_squeeze %29 : memref<1x!tpu.dma_semaphore, #tpu.memory_space<semaphore_mem>> -> memref<!tpu.dma_semaphore, #tpu.memory_space<semaphore_mem>>
    tpu.wait_dma2 semaphore(%30 : memref<!tpu.dma_semaphore, #tpu.memory_space<semaphore_mem>>) src(%arg6 : memref<128x512xbf16, #tpu.memory_space<any>>) dst(%arg14 : memref<128x512xbf16, #tpu.memory_space<vmem>>)
    %c0_10 = arith.constant 0 : index
    %c0_11 = arith.constant 0 : index
    %31 = vector.load %arg14[%c0_10, %c0_11] : memref<128x512xbf16, #tpu.memory_space<vmem>>, vector<128x512xbf16>
    %cst_12 = arith.constant dense<0.000000e+00> : vector<16x512xf32>
    %32 = tpu.matmul %24, %31, %cst_12 {dimension_numbers = #tpu.dot_dimension_numbers<[1], [0], [0], [1], [0, 0, 1, 1], [], []>} : vector<16x128xbf16>, vector<128x512xbf16>, vector<16x512xf32> -> vector<16x512xf32>
    %33 = arith.addf %28, %32 : vector<16x512xf32>
    %c0_13 = arith.constant 0 : index
    %c0_14 = arith.constant 0 : index
    %34 = vector.load %arg4[%c0_13, %c0_14] : memref<1x3456xf32, #tpu.memory_space<vmem>>, vector<1x512xf32>
    %35 = vector.broadcast %34 : vector<1x512xf32> to vector<16x512xf32>
    %36 = arith.addf %33, %35 : vector<16x512xf32>
    %cst_15 = arith.constant 0.000000e+00 : f32
    %37 = vector.broadcast %cst_15 : f32 to vector<16x512xf32>
    %38 = arith.cmpf ogt, %36, %37 : vector<16x512xf32>
    %cst_16 = arith.constant 2.000000e-01 : f32
    %39 = vector.broadcast %cst_16 : f32 to vector<16x512xf32>
    %40 = arith.mulf %39, %36 : vector<16x512xf32>
    %41 = arith.select %38, %36, %40 : vector<16x512xi1>, vector<16x512xf32>
    %42 = arith.truncf %41 : vector<16x512xf32> to vector<16x512xbf16>
    %c2_i32_17 = arith.constant 2 : i32
    %43 = tpu.memref_slice %arg20[%c2_i32_17] : memref<7x!tpu.dma_semaphore, #tpu.memory_space<semaphore_mem>> -> memref<1x!tpu.dma_semaphore, #tpu.memory_space<semaphore_mem>>
    %44 = tpu.memref_squeeze %43 : memref<1x!tpu.dma_semaphore, #tpu.memory_space<semaphore_mem>> -> memref<!tpu.dma_semaphore, #tpu.memory_space<semaphore_mem>>
    tpu.wait_dma2 semaphore(%44 : memref<!tpu.dma_semaphore, #tpu.memory_space<semaphore_mem>>) src(%arg7 : memref<512x1024xbf16, #tpu.memory_space<any>>) dst(%arg15 : memref<512x1024xbf16, #tpu.memory_space<vmem>>)
    %c0_18 = arith.constant 0 : index
    %c0_19 = arith.constant 0 : index
    %45 = vector.load %arg15[%c0_18, %c0_19] : memref<512x1024xbf16, #tpu.memory_space<vmem>>, vector<512x1024xbf16>
    %cst_20 = arith.constant dense<0.000000e+00> : vector<16x1024xf32>
    %46 = tpu.matmul %42, %45, %cst_20 {dimension_numbers = #tpu.dot_dimension_numbers<[1], [0], [0], [1], [0, 0, 1, 1], [], []>} : vector<16x512xbf16>, vector<512x1024xbf16>, vector<16x1024xf32> -> vector<16x1024xf32>
    %c0_21 = arith.constant 0 : index
    %c512 = arith.constant 512 : index
    %47 = vector.load %arg4[%c0_21, %c512] : memref<1x3456xf32, #tpu.memory_space<vmem>>, vector<1x1024xf32>
    %48 = vector.broadcast %47 : vector<1x1024xf32> to vector<16x1024xf32>
    %49 = arith.addf %46, %48 : vector<16x1024xf32>
    %cst_22 = arith.constant 0.000000e+00 : f32
    %50 = vector.broadcast %cst_22 : f32 to vector<16x1024xf32>
    %51 = arith.cmpf ogt, %49, %50 : vector<16x1024xf32>
    %cst_23 = arith.constant 2.000000e-01 : f32
    %52 = vector.broadcast %cst_23 : f32 to vector<16x1024xf32>
    %53 = arith.mulf %52, %49 : vector<16x1024xf32>
    %54 = arith.select %51, %49, %53 : vector<16x1024xi1>, vector<16x1024xf32>
    %55 = arith.truncf %54 : vector<16x1024xf32> to vector<16x1024xbf16>
    %c3_i32_24 = arith.constant 3 : i32
    %56 = tpu.memref_slice %arg20[%c3_i32_24] : memref<7x!tpu.dma_semaphore, #tpu.memory_space<semaphore_mem>> -> memref<1x!tpu.dma_semaphore, #tpu.memory_space<semaphore_mem>>
    %57 = tpu.memref_squeeze %56 : memref<1x!tpu.dma_semaphore, #tpu.memory_space<semaphore_mem>> -> memref<!tpu.dma_semaphore, #tpu.memory_space<semaphore_mem>>
    tpu.wait_dma2 semaphore(%57 : memref<!tpu.dma_semaphore, #tpu.memory_space<semaphore_mem>>) src(%arg8 : memref<1024x512xbf16, #tpu.memory_space<any>>) dst(%arg16 : memref<1024x512xbf16, #tpu.memory_space<vmem>>)
    %c0_25 = arith.constant 0 : index
    %c0_26 = arith.constant 0 : index
    %58 = vector.load %arg16[%c0_25, %c0_26] : memref<1024x512xbf16, #tpu.memory_space<vmem>>, vector<1024x512xbf16>
    %cst_27 = arith.constant dense<0.000000e+00> : vector<16x512xf32>
    %59 = tpu.matmul %55, %58, %cst_27 {dimension_numbers = #tpu.dot_dimension_numbers<[1], [0], [0], [1], [0, 0, 1, 1], [], []>} : vector<16x1024xbf16>, vector<1024x512xbf16>, vector<16x512xf32> -> vector<16x512xf32>
    %c0_28 = arith.constant 0 : index
    %c1536 = arith.constant 1536 : index
    %60 = vector.load %arg4[%c0_28, %c1536] : memref<1x3456xf32, #tpu.memory_space<vmem>>, vector<1x512xf32>
    %61 = vector.broadcast %60 : vector<1x512xf32> to vector<16x512xf32>
    %62 = arith.addf %59, %61 : vector<16x512xf32>
    %cst_29 = arith.constant 0.000000e+00 : f32
    %63 = vector.broadcast %cst_29 : f32 to vector<16x512xf32>
    %64 = arith.cmpf ogt, %62, %63 : vector<16x512xf32>
    %cst_30 = arith.constant 2.000000e-01 : f32
    %65 = vector.broadcast %cst_30 : f32 to vector<16x512xf32>
    %66 = arith.mulf %65, %62 : vector<16x512xf32>
    %67 = arith.select %64, %62, %66 : vector<16x512xi1>, vector<16x512xf32>
    %68 = arith.truncf %67 : vector<16x512xf32> to vector<16x512xbf16>
    %c4_i32_31 = arith.constant 4 : i32
    %69 = tpu.memref_slice %arg20[%c4_i32_31] : memref<7x!tpu.dma_semaphore, #tpu.memory_space<semaphore_mem>> -> memref<1x!tpu.dma_semaphore, #tpu.memory_space<semaphore_mem>>
    %70 = tpu.memref_squeeze %69 : memref<1x!tpu.dma_semaphore, #tpu.memory_space<semaphore_mem>> -> memref<!tpu.dma_semaphore, #tpu.memory_space<semaphore_mem>>
    tpu.wait_dma2 semaphore(%70 : memref<!tpu.dma_semaphore, #tpu.memory_space<semaphore_mem>>) src(%arg9 : memref<512x1024xbf16, #tpu.memory_space<any>>) dst(%arg17 : memref<512x1024xbf16, #tpu.memory_space<vmem>>)
    %c0_32 = arith.constant 0 : index
    %c0_33 = arith.constant 0 : index
    %71 = vector.load %arg17[%c0_32, %c0_33] : memref<512x1024xbf16, #tpu.memory_space<vmem>>, vector<512x1024xbf16>
    %cst_34 = arith.constant dense<0.000000e+00> : vector<16x1024xf32>
    %72 = tpu.matmul %68, %71, %cst_34 {dimension_numbers = #tpu.dot_dimension_numbers<[1], [0], [0], [1], [0, 0, 1, 1], [], []>} : vector<16x512xbf16>, vector<512x1024xbf16>, vector<16x1024xf32> -> vector<16x1024xf32>
    %c0_35 = arith.constant 0 : index
    %c2048 = arith.constant 2048 : index
    %73 = vector.load %arg4[%c0_35, %c2048] : memref<1x3456xf32, #tpu.memory_space<vmem>>, vector<1x1024xf32>
    %74 = vector.broadcast %73 : vector<1x1024xf32> to vector<16x1024xf32>
    %75 = arith.addf %72, %74 : vector<16x1024xf32>
    %cst_36 = arith.constant 0.000000e+00 : f32
    %76 = vector.broadcast %cst_36 : f32 to vector<16x1024xf32>
    %77 = arith.cmpf ogt, %75, %76 : vector<16x1024xf32>
    %cst_37 = arith.constant 2.000000e-01 : f32
    %78 = vector.broadcast %cst_37 : f32 to vector<16x1024xf32>
    %79 = arith.mulf %78, %75 : vector<16x1024xf32>
    %80 = arith.select %77, %75, %79 : vector<16x1024xi1>, vector<16x1024xf32>
    %81 = arith.truncf %80 : vector<16x1024xf32> to vector<16x1024xbf16>
    %c5_i32_38 = arith.constant 5 : i32
    %82 = tpu.memref_slice %arg20[%c5_i32_38] : memref<7x!tpu.dma_semaphore, #tpu.memory_space<semaphore_mem>> -> memref<1x!tpu.dma_semaphore, #tpu.memory_space<semaphore_mem>>
    %83 = tpu.memref_squeeze %82 : memref<1x!tpu.dma_semaphore, #tpu.memory_space<semaphore_mem>> -> memref<!tpu.dma_semaphore, #tpu.memory_space<semaphore_mem>>
    tpu.wait_dma2 semaphore(%83 : memref<!tpu.dma_semaphore, #tpu.memory_space<semaphore_mem>>) src(%arg10 : memref<1024x256xbf16, #tpu.memory_space<any>>) dst(%arg18 : memref<1024x256xbf16, #tpu.memory_space<vmem>>)
    %c0_39 = arith.constant 0 : index
    %c0_40 = arith.constant 0 : index
    %84 = vector.load %arg18[%c0_39, %c0_40] : memref<1024x256xbf16, #tpu.memory_space<vmem>>, vector<1024x256xbf16>
    %cst_41 = arith.constant dense<0.000000e+00> : vector<16x256xf32>
    %85 = tpu.matmul %81, %84, %cst_41 {dimension_numbers = #tpu.dot_dimension_numbers<[1], [0], [0], [1], [0, 0, 1, 1], [], []>} : vector<16x1024xbf16>, vector<1024x256xbf16>, vector<16x256xf32> -> vector<16x256xf32>
    %c0_42 = arith.constant 0 : index
    %c3072 = arith.constant 3072 : index
    %86 = vector.load %arg4[%c0_42, %c3072] : memref<1x3456xf32, #tpu.memory_space<vmem>>, vector<1x256xf32>
    %87 = vector.broadcast %86 : vector<1x256xf32> to vector<16x256xf32>
    %88 = arith.addf %85, %87 : vector<16x256xf32>
    %cst_43 = arith.constant 0.000000e+00 : f32
    %89 = vector.broadcast %cst_43 : f32 to vector<16x256xf32>
    %90 = arith.cmpf ogt, %88, %89 : vector<16x256xf32>
    %cst_44 = arith.constant 2.000000e-01 : f32
    %91 = vector.broadcast %cst_44 : f32 to vector<16x256xf32>
    %92 = arith.mulf %91, %88 : vector<16x256xf32>
    %93 = arith.select %90, %88, %92 : vector<16x256xi1>, vector<16x256xf32>
    %94 = arith.truncf %93 : vector<16x256xf32> to vector<16x256xbf16>
    %c6_i32_45 = arith.constant 6 : i32
    %95 = tpu.memref_slice %arg20[%c6_i32_45] : memref<7x!tpu.dma_semaphore, #tpu.memory_space<semaphore_mem>> -> memref<1x!tpu.dma_semaphore, #tpu.memory_space<semaphore_mem>>
    %96 = tpu.memref_squeeze %95 : memref<1x!tpu.dma_semaphore, #tpu.memory_space<semaphore_mem>> -> memref<!tpu.dma_semaphore, #tpu.memory_space<semaphore_mem>>
    tpu.wait_dma2 semaphore(%96 : memref<!tpu.dma_semaphore, #tpu.memory_space<semaphore_mem>>) src(%arg11 : memref<256x128xbf16, #tpu.memory_space<any>>) dst(%arg19 : memref<256x128xbf16, #tpu.memory_space<vmem>>)
    %c0_46 = arith.constant 0 : index
    %c0_47 = arith.constant 0 : index
    %97 = vector.load %arg19[%c0_46, %c0_47] : memref<256x128xbf16, #tpu.memory_space<vmem>>, vector<256x128xbf16>
    %cst_48 = arith.constant dense<0.000000e+00> : vector<16x128xf32>
    %98 = tpu.matmul %94, %97, %cst_48 {dimension_numbers = #tpu.dot_dimension_numbers<[1], [0], [0], [1], [0, 0, 1, 1], [], []>} : vector<16x256xbf16>, vector<256x128xbf16>, vector<16x128xf32> -> vector<16x128xf32>
    %c0_49 = arith.constant 0 : index
    %c3328 = arith.constant 3328 : index
    %99 = vector.load %arg4[%c0_49, %c3328] : memref<1x3456xf32, #tpu.memory_space<vmem>>, vector<1x128xf32>
    %100 = vector.broadcast %99 : vector<1x128xf32> to vector<16x128xf32>
    %101 = arith.addf %98, %100 : vector<16x128xf32>
    %102 = math.absf %101 : vector<16x128xf32>
    %cst_50 = arith.constant 0.000000e+00 : f32
    %103 = vector.broadcast %cst_50 : f32 to vector<16x128xf32>
    %104 = arith.subf %103, %102 : vector<16x128xf32>
    %105 = math.exp %104 : vector<16x128xf32>
    %cst_51 = arith.constant 1.000000e+00 : f32
    %106 = vector.broadcast %cst_51 : f32 to vector<16x128xf32>
    %107 = arith.addf %106, %105 : vector<16x128xf32>
    %108 = tpu.reciprocal %107 : vector<16x128xf32> -> vector<16x128xf32>
    %cst_52 = arith.constant 0.000000e+00 : f32
    %109 = vector.broadcast %cst_52 : f32 to vector<16x128xf32>
    %110 = arith.cmpf oge, %101, %109 : vector<16x128xf32>
    %111 = arith.mulf %105, %108 : vector<16x128xf32>
    %112 = arith.select %110, %108, %111 : vector<16x128xi1>, vector<16x128xf32>
    %c0_53 = arith.constant 0 : index
    %c0_54 = arith.constant 0 : index
    %113 = vector.load %arg12[%c0_53, %c0_54] : memref<16x128xf32, #tpu.memory_space<vmem>>, vector<16x128xf32>
    tpu.vector_store %arg12[%c0_53, %c0_54], %112 {strides = array<i32>} : memref<16x128xf32, #tpu.memory_space<vmem>>, vector<16x128xf32>,
    return
  }
  func.func @transform_0(%arg0: i32) -> (i32, i32) {
    %c0_i32 = arith.constant 0 : i32
    %c0_i32_0 = arith.constant 0 : i32
    %c0_i32_1 = arith.constant 0 : i32
    return %c0_i32, %c0_i32_0 : i32, i32
  }
  func.func @transform_1(%arg0: i32) -> (i32, i32) {
    %c0_i32 = arith.constant 0 : i32
    %c0_i32_0 = arith.constant 0 : i32
    %c0_i32_1 = arith.constant 0 : i32
    return %c0_i32, %c0_i32_0 : i32, i32
  }
  func.func @transform_2(%arg0: i32) -> (i32, i32) {
    %c0_i32 = arith.constant 0 : i32
    %c0_i32_0 = arith.constant 0 : i32
    %c0_i32_1 = arith.constant 0 : i32
    return %c0_i32, %c0_i32_0 : i32, i32
  }
  func.func @transform_3(%arg0: i32) -> (i32, i32) {
    %c0_i32 = arith.constant 0 : i32
    %c0_i32_0 = arith.constant 0 : i32
    %c0_i32_1 = arith.constant 0 : i32
    return %c0_i32, %c0_i32_0 : i32, i32
  }
  func.func @transform_11(%arg0: i32) -> (i32, i32) {
    %c0_i32 = arith.constant 0 : i32
    %c0_i32_0 = arith.constant 0 : i32
    %c0_i32_1 = arith.constant 0 : i32
    return %c0_i32, %c0_i32_0 : i32, i32
  }
}

</mosaic_0001>

<llo_original>
// kernel: cdiscriminator_forward.1
$region0: #{cdiscriminator_forward.1}
  #allocation0 [shape = 'u32[]', space=smem, size = 0x4, offset = 0x4, fixed_abs, tag = 'smem constant byte address 0x4 - core index']
  #allocation1 [shape = 'u32[144,128]{1,0:T(1,128)}', space=vmem, size = 0x12000, scoped, tag = 'internal scratch']
  #allocation2 [shape = 'bf16[896,512]{1,0:T(16,128)(2,1)}', space=vmem, size = 0xe0000, scoped, tag = 'scratch operand']
  #allocation3 [shape = 'bf16[128,512]{1,0:T(16,128)(2,1)}', space=vmem, size = 0x20000, scoped, tag = 'scratch operand']
  #allocation4 [shape = 'bf16[512,1024]{1,0:T(16,128)(2,1)}', space=vmem, size = 0x100000, scoped, tag = 'scratch operand']
  #allocation5 [shape = 'bf16[1024,512]{1,0:T(16,128)(2,1)}', space=vmem, size = 0x100000, scoped, tag = 'scratch operand']
  #allocation6 [shape = 'bf16[512,1024]{1,0:T(16,128)(2,1)}', space=vmem, size = 0x100000, scoped, tag = 'scratch operand']
  #allocation7 [shape = 'bf16[1024,256]{1,0:T(16,128)(2,1)}', space=vmem, size = 0x80000, scoped, tag = 'scratch operand']
  #allocation8 [shape = 'bf16[256,128]{1,0:T(16,128)(2,1)}', space=vmem, size = 0x10000, scoped, tag = 'scratch operand']
  #allocation9 [shape = 's32[7]{0}', space=sflag, size = 0x1c, scoped, tag = 'scratch operand']
  #allocation10 [shape = 's32[]', space=sflag, size = 0x4, offset = 0, fixed_abs, tag = 'sflag constant byte address 0x0 - dummy sync flag']
  #allocation12 [shape = 's32[]', space=sflag, size = 0x4, offset = 0, fixed_abs, tag = 'sflag constant byte address 0x0 - dummy sync flag']
  #allocation13 [shape = 's32[]', space=sflag, size = 0x4, offset = 0, fixed_abs, tag = 'sflag constant byte address 0x0 - dummy sync flag']
  #allocation15 [shape = 's32[]', space=sflag, size = 0x4, offset = 0, fixed_abs, tag = 'sflag constant byte address 0x0 - dummy sync flag']
  #allocation17 [shape = 's32[]', space=sflag, size = 0x4, offset = 0, fixed_abs, tag = 'sflag constant byte address 0x0 - dummy sync flag']
  #allocation19 [shape = 's32[]', space=sflag, size = 0x4, offset = 0, fixed_abs, tag = 'sflag constant byte address 0x0 - dummy sync flag']
  #allocation21 [shape = 's32[]', space=sflag, size = 0x4, offset = 0, fixed_abs, tag = 'sflag constant byte address 0x0 - dummy sync flag']
  %s0 = inlined_call_operand.vmem [shape: f32[16,896], index: 0, kind: input, shape index: {}]
  %s1 = inlined_call_operand.vmem [shape: s32[16,1], index: 1, kind: input, shape index: {}]
  %s2 = inlined_call_operand.vmem [shape: f32[16,128], index: 2, kind: input, shape index: {}]
  %s3 = inlined_call_operand.vmem [shape: f32[1,3456], index: 3, kind: input, shape index: {}]
  %s4 = inlined_call_operand.hbm [shape: bf16[896,512], index: 4, kind: input, shape index: {}]
  %s5 = inlined_call_operand.vmem [shape: bf16[128,512], index: 5, kind: input, shape index: {}]
  %s6 = inlined_call_operand.hbm [shape: bf16[512,1024], index: 6, kind: input, shape index: {}]
  %s7 = inlined_call_operand.hbm [shape: bf16[1024,512], index: 7, kind: input, shape index: {}]
  %s8 = inlined_call_operand.hbm [shape: bf16[512,1024], index: 8, kind: input, shape index: {}]
  %s9 = inlined_call_operand.hbm [shape: bf16[1024,256], index: 9, kind: input, shape index: {}]
  %s10 = inlined_call_operand.vmem [shape: bf16[256,128], index: 10, kind: input, shape index: {}]
  %s11 = inlined_call_operand.vmem [shape: f32[16,128], index: 11, kind: output, shape index: {}]
  %s12 = sld [smem:[#allocation0]]
  $region97: #{cdiscriminator_forward.1} parent=0
    _
  %s14 = ssub.s32 1, %s12
  %s15 = scalar_select 0, %s14, %s12
  $region1: #{cdiscriminator_forward.1} parent=0
    #allocation11 [shape = 'u32[9]{0}', space=smem, size = 0x24, scoped, tag = 'DMA stride descriptor']
    #allocation14 [shape = 'u32[9]{0}', space=smem, size = 0x24, scoped, tag = 'DMA stride descriptor']
    #allocation16 [shape = 'u32[9]{0}', space=smem, size = 0x24, scoped, tag = 'DMA stride descriptor']
    #allocation18 [shape = 'u32[9]{0}', space=smem, size = 0x24, scoped, tag = 'DMA stride descriptor']
    #allocation20 [shape = 'u32[9]{0}', space=smem, size = 0x24, scoped, tag = 'DMA stride descriptor']
    // Predicated region
    $region2: #{cdiscriminator_forward.1} parent=1 // pred_check
      _
    $region3: #{cdiscriminator_forward.1} parent=1 // pred_check_branch
      %17 = sbr.rel (0) target = $region5
    $region4: #{cdiscriminator_forward.1} parent=1 // pred_region
      _
    $region5: #{cdiscriminator_forward.1} parent=1 // pred_fallthru
      _
    // Predicated region
    $region6: #{cdiscriminator_forward.1} parent=1 // pred_check
      _
    $region7: #{cdiscriminator_forward.1} parent=1 // pred_check_branch
      %19 = sbr.rel (0) target = $region9
    $region8: #{cdiscriminator_forward.1} parent=1 // pred_region
      _
    $region9: #{cdiscriminator_forward.1} parent=1 // pred_fallthru
      _
    // Predicated region
    $region10: #{cdiscriminator_forward.1} parent=1 // pred_check
      _
    $region11: #{cdiscriminator_forward.1} parent=1 // pred_check_branch
      %21 = sbr.rel (0) target = $region13
    $region12: #{cdiscriminator_forward.1} parent=1 // pred_region
      _
    $region13: #{cdiscriminator_forward.1} parent=1 // pred_fallthru
      _
    // Predicated region
    $region14: #{cdiscriminator_forward.1} parent=1 // pred_check
      _
    $region15: #{cdiscriminator_forward.1} parent=1 // pred_check_branch
      %23 = sbr.rel (0) target = $region17
    $region16: #{cdiscriminator_forward.1} parent=1 // pred_region
      _
    $region17: #{cdiscriminator_forward.1} parent=1 // pred_fallthru
      _
    %s26 = sshll.u32 1, 14
    %s27 = sxor.u32 4294967295, %s26
    %s29 = sld [smem:[#allocation0]]
    %s30 = sadd.s32 2, %s29
    %s32 = sshll.u32 7, 26
    %s33 = sxor.u32 4294967295, %s32
    %s34 = sand.u32 0, %s33
    %s35 = sshll.u32 %s30, 26
    %s36 = sor.u32 %s34, %s35
    %s37 = sshll.u32 [#allocation2], 4
    %s38 = int_to_ptr.vmem [resolvable:$true] %s37
    %41 = sst [smem:[#allocation11]] 512
    %s42 = scalar_lea.smem [#allocation11], 1
    %43 = sst [smem:[%s42]] 512
    %s44 = scalar_lea.smem [#allocation11], 2
    %45 = sst [smem:[%s44]] 4
    %s46 = scalar_lea.smem [#allocation11], 3
    %47 = sst [smem:[%s46]] 64
    %s48 = scalar_lea.smem [#allocation11], 4
    %49 = sst [smem:[%s48]] 128
    %s50 = scalar_lea.smem [#allocation11], 5
    %51 = sst [smem:[%s50]] 2
    %s52 = scalar_lea.smem [#allocation11], 6
    %53 = sst [smem:[%s52]] 256
    %s54 = scalar_lea.smem [#allocation11], 7
    %55 = sst [smem:[%s54]] 64
    %s56 = scalar_lea.smem [#allocation11], 8
    %57 = sst [smem:[%s56]] 4
    %59 = dma.general %s4, 28672, %s38, [#allocation9], [#allocation10], [#allocation11], %s36, 0
    %s60 = scalar_lea.sflag [#allocation9], 1
    %p62 = scmp.lt.u32.totalorder 4, 8
    %p63 = pneg %p62
    // Predicated region
    $region18: #{cdiscriminator_forward.1} parent=1 // pred_check
      _
    $region19: #{cdiscriminator_forward.1} parent=1 // pred_check_branch
      %65 = sbr.rel (%p62) target = $region21
    $region20: #{cdiscriminator_forward.1} parent=1 // pred_region
      %s206 = sand.u32 4, 7
      %p207 = scmp.eq.s32.totalorder %s206, 0
      %p208 = pneg %p207
      // Predicated region
      $region33: #{cdiscriminator_forward.1} parent=20 // pred_check
        _
      $region34: #{cdiscriminator_forward.1} parent=20 // pred_check_branch
        %210 = sbr.rel (%p207) target = $region36
      $region35: #{cdiscriminator_forward.1} parent=20 // pred_region
        %s211 = sand.u32 4, 7
        %s212 = ssub.s32 4, %s211
        %s213 = scalar_lea.vmem %s5, %s212
        %s214 = ssub.s32 4, %s211
        %s215 = scalar_lea.vmem [#allocation3], %s214
        loop: start=0, step=1, limit=1
        $region37: #{cdiscriminator_forward.1} parent=35 // loop_pre_header
          _
        $region38: #{cdiscriminator_forward.1} parent=35 // loop_header
          %s217 = sphi 0, %s221
          %p218 = scmp.ge.s32.totalorder %s217, 1
          %s222 = sphi %s5, %s5
          %s223 = sphi [#allocation3], [#allocation3]
        $region39: #{cdiscriminator_forward.1} parent=35 // loop_header_branch
          %220 = sbr.rel (%p218) target = $region43
        $region40: #{cdiscriminator_forward.1} parent=35 // loop_body
          _
        $region41: #{cdiscriminator_forward.1} parent=35 // loop_footer
          %s221 = sadd.s32 1, %s217
        $region42: #{cdiscriminator_forward.1} parent=35 // loop_footer_branch
          %216 = sbr.rel target = $region38
        $region43: #{cdiscriminator_forward.1} parent=35 // loop_exit
          _
        %s224 = sshllo.u32 0, %s211
        loop: start=0, step=1, limit=1
        $region44: #{cdiscriminator_forward.1} parent=35 // loop_pre_header
          _
        $region45: #{cdiscriminator_forward.1} parent=35 // loop_header
          %s226 = sphi 0, %s230
          %p227 = scmp.ge.s32.totalorder %s226, 1
          %s231 = sphi %s213, %s213
          %s232 = sphi %s215, %s215
        $region46: #{cdiscriminator_forward.1} parent=35 // loop_header_branch
          %229 = sbr.rel (%p227) target = $region50
        $region47: #{cdiscriminator_forward.1} parent=35 // loop_body
          %v233 = vld [vmem:[%s231] sm:%s224]
          %234 = vst [vmem:[%s232] sm:%s224] %v233
          %v235 = vld [vmem:[%s231 + $0x10] sm:%s224]
          %236 = vst [vmem:[%s232 + $0x4] sm:%s224] %v235
          %v237 = vld [vmem:[%s231 + $0x4] sm:%s224]
          %238 = vst [vmem:[%s232 + $0x8] sm:%s224] %v237
          %v239 = vld [vmem:[%s231 + $0x14] sm:%s224]
          %240 = vst [vmem:[%s232 + $0xc] sm:%s224] %v239
          %v241 = vld [vmem:[%s231 + $0x8] sm:%s224]
          %242 = vst [vmem:[%s232 + $0x10] sm:%s224] %v241
          %v243 = vld [vmem:[%s231 + $0x18] sm:%s224]
          %244 = vst [vmem:[%s232 + $0x14] sm:%s224] %v243
          %v245 = vld [vmem:[%s231 + $0xc] sm:%s224]
          %246 = vst [vmem:[%s232 + $0x18] sm:%s224] %v245
          %v247 = vld [vmem:[%s231 + $0x1c] sm:%s224]
          %248 = vst [vmem:[%s232 + $0x1c] sm:%s224] %v247
          %v249 = vld [vmem:[%s231 + $0x20] sm:%s224]
          %250 = vst [vmem:[%s232 + $0x20] sm:%s224] %v249
          %v251 = vld [vmem:[%s231 + $0x30] sm:%s224]
          %252 = vst [vmem:[%s232 + $0x24] sm:%s224] %v251
          %v253 = vld [vmem:[%s231 + $0x24] sm:%s224]
          %254 = vst [vmem:[%s232 + $0x28] sm:%s224] %v253
          %v255 = vld [vmem:[%s231 + $0x34] sm:%s224]
          %256 = vst [vmem:[%s232 + $0x2c] sm:%s224] %v255
          %v257 = vld [vmem:[%s231 + $0x28] sm:%s224]
          %258 = vst [vmem:[%s232 + $0x30] sm:%s224] %v257
          %v259 = vld [vmem:[%s231 + $0x38] sm:%s224]
          %260 = vst [vmem:[%s232 + $0x34] sm:%s224] %v259
          %v261 = vld [vmem:[%s231 + $0x2c] sm:%s224]
          %262 = vst [vmem:[%s232 + $0x38] sm:%s224] %v261
          %v263 = vld [vmem:[%s231 + $0x3c] sm:%s224]
          %264 = vst [vmem:[%s232 + $0x3c] sm:%s224] %v263
          %v265 = vld [vmem:[%s231 + $0x40] sm:%s224]
          %266 = vst [vmem:[%s232 + $0x40] sm:%s224] %v265
          %v267 = vld [vmem:[%s231 + $0x50] sm:%s224]
          %268 = vst [vmem:[%s232 + $0x44] sm:%s224] %v267
          %v269 = vld [vmem:[%s231 + $0x44] sm:%s224]
          %270 = vst [vmem:[%s232 + $0x48] sm:%s224] %v269
          %v271 = vld [vmem:[%s231 + $0x54] sm:%s224]
          %272 = vst [vmem:[%s232 + $0x4c] sm:%s224] %v271
          %v273 = vld [vmem:[%s231 + $0x48] sm:%s224]
          %274 = vst [vmem:[%s232 + $0x50] sm:%s224] %v273
          %v275 = vld [vmem:[%s231 + $0x58] sm:%s224]
          %276 = vst [vmem:[%s232 + $0x54] sm:%s224] %v275
          %v277 = vld [vmem:[%s231 + $0x4c] sm:%s224]
          %278 = vst [vmem:[%s232 + $0x58] sm:%s224] %v277
          %v279 = vld [vmem:[%s231 + $0x5c] sm:%s224]
          %280 = vst [vmem:[%s232 + $0x5c] sm:%s224] %v279
          %v281 = vld [vmem:[%s231 + $0x60] sm:%s224]
          %282 = vst [vmem:[%s232 + $0x60] sm:%s224] %v281
          %v283 = vld [vmem:[%s231 + $0x70] sm:%s224]
          %284 = vst [vmem:[%s232 + $0x64] sm:%s224] %v283
          %v285 = vld [vmem:[%s231 + $0x64] sm:%s224]
          %286 = vst [vmem:[%s232 + $0x68] sm:%s224] %v285
          %v287 = vld [vmem:[%s231 + $0x74] sm:%s224]
          %288 = vst [vmem:[%s232 + $0x6c] sm:%s224] %v287
          %v289 = vld [vmem:[%s231 + $0x68] sm:%s224]
          %290 = vst [vmem:[%s232 + $0x70] sm:%s224] %v289
          %v291 = vld [vmem:[%s231 + $0x78] sm:%s224]
          %292 = vst [vmem:[%s232 + $0x74] sm:%s224] %v291
          %v293 = vld [vmem:[%s231 + $0x6c] sm:%s224]
          %294 = vst [vmem:[%s232 + $0x78] sm:%s224] %v293
          %v295 = vld [vmem:[%s231 + $0x7c] sm:%s224]
          %296 = vst [vmem:[%s232 + $0x7c] sm:%s224] %v295
          %v297 = vld [vmem:[%s231 + $0x80] sm:%s224]
          %298 = vst [vmem:[%s232 + $0x80] sm:%s224] %v297
          %v299 = vld [vmem:[%s231 + $0x90] sm:%s224]
          %300 = vst [vmem:[%s232 + $0x84] sm:%s224] %v299
          %v301 = vld [vmem:[%s231 + $0x84] sm:%s224]
          %302 = vst [vmem:[%s232 + $0x88] sm:%s224] %v301
          %v303 = vld [vmem:[%s231 + $0x94] sm:%s224]
          %304 = vst [vmem:[%s232 + $0x8c] sm:%s224] %v303
          %v305 = vld [vmem:[%s231 + $0x88] sm:%s224]
          %306 = vst [vmem:[%s232 + $0x90] sm:%s224] %v305
          %v307 = vld [vmem:[%s231 + $0x98] sm:%s224]
          %308 = vst [vmem:[%s232 + $0x94] sm:%s224] %v307
          %v309 = vld [vmem:[%s231 + $0x8c] sm:%s224]
          %310 = vst [vmem:[%s232 + $0x98] sm:%s224] %v309
          %v311 = vld [vmem:[%s231 + $0x9c] sm:%s224]
          %312 = vst [vmem:[%s232 + $0x9c] sm:%s224] %v311
          %v313 = vld [vmem:[%s231 + $0xa0] sm:%s224]
          %314 = vst [vmem:[%s232 + $0xa0] sm:%s224] %v313
          %v315 = vld [vmem:[%s231 + $0xb0] sm:%s224]
          %316 = vst [vmem:[%s232 + $0xa4] sm:%s224] %v315
          %v317 = vld [vmem:[%s231 + $0xa4] sm:%s224]
          %318 = vst [vmem:[%s232 + $0xa8] sm:%s224] %v317
          %v319 = vld [vmem:[%s231 + $0xb4] sm:%s224]
          %320 = vst [vmem:[%s232 + $0xac] sm:%s224] %v319
          %v321 = vld [vmem:[%s231 + $0xa8] sm:%s224]
          %322 = vst [vmem:[%s232 + $0xb0] sm:%s224] %v321
          %v323 = vld [vmem:[%s231 + $0xb8] sm:%s224]
          %324 = vst [vmem:[%s232 + $0xb4] sm:%s224] %v323
          %v325 = vld [vmem:[%s231 + $0xac] sm:%s224]
          %326 = vst [vmem:[%s232 + $0xb8] sm:%s224] %v325
          %v327 = vld [vmem:[%s231 + $0xbc] sm:%s224]
          %328 = vst [vmem:[%s232 + $0xbc] sm:%s224] %v327
          %v329 = vld [vmem:[%s231 + $0xc0] sm:%s224]
          %330 = vst [vmem:[%s232 + $0xc0] sm:%s224] %v329
          %v331 = vld [vmem:[%s231 + $0xd0] sm:%s224]
          %332 = vst [vmem:[%s232 + $0xc4] sm:%s224] %v331
          %v333 = vld [vmem:[%s231 + $0xc4] sm:%s224]
          %334 = vst [vmem:[%s232 + $0xc8] sm:%s224] %v333
          %v335 = vld [vmem:[%s231 + $0xd4] sm:%s224]
          %336 = vst [vmem:[%s232 + $0xcc] sm:%s224] %v335
          %v337 = vld [vmem:[%s231 + $0xc8] sm:%s224]
          %338 = vst [vmem:[%s232 + $0xd0] sm:%s224] %v337
          %v339 = vld [vmem:[%s231 + $0xd8] sm:%s224]
          %340 = vst [vmem:[%s232 + $0xd4] sm:%s224] %v339
          %v341 = vld [vmem:[%s231 + $0xcc] sm:%s224]
          %342 = vst [vmem:[%s232 + $0xd8] sm:%s224] %v341
          %v343 = vld [vmem:[%s231 + $0xdc] sm:%s224]
          %344 = vst [vmem:[%s232 + $0xdc] sm:%s224] %v343
          %v345 = vld [vmem:[%s231 + $0xe0] sm:%s224]
          %346 = vst [vmem:[%s232 + $0xe0] sm:%s224] %v345
          %v347 = vld [vmem:[%s231 + $0xf0] sm:%s224]
          %348 = vst [vmem:[%s232 + $0xe4] sm:%s224] %v347
          %v349 = vld [vmem:[%s231 + $0xe4] sm:%s224]
          %350 = vst [vmem:[%s232 + $0xe8] sm:%s224] %v349
          %v351 = vld [vmem:[%s231 + $0xf4] sm:%s224]
          %352 = vst [vmem:[%s232 + $0xec] sm:%s224] %v351
          %v353 = vld [vmem:[%s231 + $0xe8] sm:%s224]
          %354 = vst [vmem:[%s232 + $0xf0] sm:%s224] %v353
          %v355 = vld [vmem:[%s231 + $0xf8] sm:%s224]
          %356 = vst [vmem:[%s232 + $0xf4] sm:%s224] %v355
          %v357 = vld [vmem:[%s231 + $0xec] sm:%s224]
          %358 = vst [vmem:[%s232 + $0xf8] sm:%s224] %v357
          %v359 = vld [vmem:[%s231 + $0xfc] sm:%s224]
          %360 = vst [vmem:[%s232 + $0xfc] sm:%s224] %v359
        $region48: #{cdiscriminator_forward.1} parent=35 // loop_footer
          %s230 = sadd.s32 1, %s226
        $region49: #{cdiscriminator_forward.1} parent=35 // loop_footer_branch
          %225 = sbr.rel target = $region45
        $region50: #{cdiscriminator_forward.1} parent=35 // loop_exit
          _
      $region36: #{cdiscriminator_forward.1} parent=20 // pred_fallthru
        _
    $region21: #{cdiscriminator_forward.1} parent=1 // pred_fallthru
      _
    // Predicated region
    $region22: #{cdiscriminator_forward.1} parent=1 // pred_check
      %p66 = pneg %p62
    $region23: #{cdiscriminator_forward.1} parent=1 // pred_check_branch
      %68 = sbr.rel (%p66) target = $region25
    $region24: #{cdiscriminator_forward.1} parent=1 // pred_region
      %s69 = sshllo.u32 0, 4
      loop: start=0, step=1, limit=1
      $region26: #{cdiscriminator_forward.1} parent=24 // loop_pre_header
        _
      $region27: #{cdiscriminator_forward.1} parent=24 // loop_header
        %s71 = sphi 0, %s75
        %p72 = scmp.ge.s32.totalorder %s71, 1
        %s76 = sphi %s5, %s5
        %s77 = sphi [#allocation3], [#allocation3]
      $region28: #{cdiscriminator_forward.1} parent=24 // loop_header_branch
        %74 = sbr.rel (%p72) target = $region32
      $region29: #{cdiscriminator_forward.1} parent=24 // loop_body
        %v78 = vld [vmem:[%s76] sm:%s69]
        %79 = vst [vmem:[%s77] sm:%s69] %v78
        %v80 = vld [vmem:[%s76 + $0x10] sm:%s69]
        %81 = vst [vmem:[%s77 + $0x4] sm:%s69] %v80
        %v82 = vld [vmem:[%s76 + $0x4] sm:%s69]
        %83 = vst [vmem:[%s77 + $0x8] sm:%s69] %v82
        %v84 = vld [vmem:[%s76 + $0x14] sm:%s69]
        %85 = vst [vmem:[%s77 + $0xc] sm:%s69] %v84
        %v86 = vld [vmem:[%s76 + $0x8] sm:%s69]
        %87 = vst [vmem:[%s77 + $0x10] sm:%s69] %v86
        %v88 = vld [vmem:[%s76 + $0x18] sm:%s69]
        %89 = vst [vmem:[%s77 + $0x14] sm:%s69] %v88
        %v90 = vld [vmem:[%s76 + $0xc] sm:%s69]
        %91 = vst [vmem:[%s77 + $0x18] sm:%s69] %v90
        %v92 = vld [vmem:[%s76 + $0x1c] sm:%s69]
        %93 = vst [vmem:[%s77 + $0x1c] sm:%s69] %v92
        %v94 = vld [vmem:[%s76 + $0x20] sm:%s69]
        %95 = vst [vmem:[%s77 + $0x20] sm:%s69] %v94
        %v96 = vld [vmem:[%s76 + $0x30] sm:%s69]
        %97 = vst [vmem:[%s77 + $0x24] sm:%s69] %v96
        %v98 = vld [vmem:[%s76 + $0x24] sm:%s69]
        %99 = vst [vmem:[%s77 + $0x28] sm:%s69] %v98
        %v100 = vld [vmem:[%s76 + $0x34] sm:%s69]
        %101 = vst [vmem:[%s77 + $0x2c] sm:%s69] %v100
        %v102 = vld [vmem:[%s76 + $0x28] sm:%s69]
        %103 = vst [vmem:[%s77 + $0x30] sm:%s69] %v102
        %v104 = vld [vmem:[%s76 + $0x38] sm:%s69]
        %105 = vst [vmem:[%s77 + $0x34] sm:%s69] %v104
        %v106 = vld [vmem:[%s76 + $0x2c] sm:%s69]
        %107 = vst [vmem:[%s77 + $0x38] sm:%s69] %v106
        %v108 = vld [vmem:[%s76 + $0x3c] sm:%s69]
        %109 = vst [vmem:[%s77 + $0x3c] sm:%s69] %v108
        %v110 = vld [vmem:[%s76 + $0x40] sm:%s69]
        %111 = vst [vmem:[%s77 + $0x40] sm:%s69] %v110
        %v112 = vld [vmem:[%s76 + $0x50] sm:%s69]
        %113 = vst [vmem:[%s77 + $0x44] sm:%s69] %v112
        %v114 = vld [vmem:[%s76 + $0x44] sm:%s69]
        %115 = vst [vmem:[%s77 + $0x48] sm:%s69] %v114
        %v116 = vld [vmem:[%s76 + $0x54] sm:%s69]
        %117 = vst [vmem:[%s77 + $0x4c] sm:%s69] %v116
        %v118 = vld [vmem:[%s76 + $0x48] sm:%s69]
        %119 = vst [vmem:[%s77 + $0x50] sm:%s69] %v118
        %v120 = vld [vmem:[%s76 + $0x58] sm:%s69]
        %121 = vst [vmem:[%s77 + $0x54] sm:%s69] %v120
        %v122 = vld [vmem:[%s76 + $0x4c] sm:%s69]
        %123 = vst [vmem:[%s77 + $0x58] sm:%s69] %v122
        %v124 = vld [vmem:[%s76 + $0x5c] sm:%s69]
        %125 = vst [vmem:[%s77 + $0x5c] sm:%s69] %v124
        %v126 = vld [vmem:[%s76 + $0x60] sm:%s69]
        %127 = vst [vmem:[%s77 + $0x60] sm:%s69] %v126
        %v128 = vld [vmem:[%s76 + $0x70] sm:%s69]
        %129 = vst [vmem:[%s77 + $0x64] sm:%s69] %v128
        %v130 = vld [vmem:[%s76 + $0x64] sm:%s69]
        %131 = vst [vmem:[%s77 + $0x68] sm:%s69] %v130
        %v132 = vld [vmem:[%s76 + $0x74] sm:%s69]
        %133 = vst [vmem:[%s77 + $0x6c] sm:%s69] %v132
        %v134 = vld [vmem:[%s76 + $0x68] sm:%s69]
        %135 = vst [vmem:[%s77 + $0x70] sm:%s69] %v134
        %v136 = vld [vmem:[%s76 + $0x78] sm:%s69]
        %137 = vst [vmem:[%s77 + $0x74] sm:%s69] %v136
        %v138 = vld [vmem:[%s76 + $0x6c] sm:%s69]
        %139 = vst [vmem:[%s77 + $0x78] sm:%s69] %v138
        %v140 = vld [vmem:[%s76 + $0x7c] sm:%s69]
        %141 = vst [vmem:[%s77 + $0x7c] sm:%s69] %v140
        %v142 = vld [vmem:[%s76 + $0x80] sm:%s69]
        %143 = vst [vmem:[%s77 + $0x80] sm:%s69] %v142
        %v144 = vld [vmem:[%s76 + $0x90] sm:%s69]
        %145 = vst [vmem:[%s77 + $0x84] sm:%s69] %v144
        %v146 = vld [vmem:[%s76 + $0x84] sm:%s69]
        %147 = vst [vmem:[%s77 + $0x88] sm:%s69] %v146
        %v148 = vld [vmem:[%s76 + $0x94] sm:%s69]
        %149 = vst [vmem:[%s77 + $0x8c] sm:%s69] %v148
        %v150 = vld [vmem:[%s76 + $0x88] sm:%s69]
        %151 = vst [vmem:[%s77 + $0x90] sm:%s69] %v150
        %v152 = vld [vmem:[%s76 + $0x98] sm:%s69]
        %153 = vst [vmem:[%s77 + $0x94] sm:%s69] %v152
        %v154 = vld [vmem:[%s76 + $0x8c] sm:%s69]
        %155 = vst [vmem:[%s77 + $0x98] sm:%s69] %v154
        %v156 = vld [vmem:[%s76 + $0x9c] sm:%s69]
        %157 = vst [vmem:[%s77 + $0x9c] sm:%s69] %v156
        %v158 = vld [vmem:[%s76 + $0xa0] sm:%s69]
        %159 = vst [vmem:[%s77 + $0xa0] sm:%s69] %v158
        %v160 = vld [vmem:[%s76 + $0xb0] sm:%s69]
        %161 = vst [vmem:[%s77 + $0xa4] sm:%s69] %v160
        %v162 = vld [vmem:[%s76 + $0xa4] sm:%s69]
        %163 = vst [vmem:[%s77 + $0xa8] sm:%s69] %v162
        %v164 = vld [vmem:[%s76 + $0xb4] sm:%s69]
        %165 = vst [vmem:[%s77 + $0xac] sm:%s69] %v164
        %v166 = vld [vmem:[%s76 + $0xa8] sm:%s69]
        %167 = vst [vmem:[%s77 + $0xb0] sm:%s69] %v166
        %v168 = vld [vmem:[%s76 + $0xb8] sm:%s69]
        %169 = vst [vmem:[%s77 + $0xb4] sm:%s69] %v168
        %v170 = vld [vmem:[%s76 + $0xac] sm:%s69]
        %171 = vst [vmem:[%s77 + $0xb8] sm:%s69] %v170
        %v172 = vld [vmem:[%s76 + $0xbc] sm:%s69]
        %173 = vst [vmem:[%s77 + $0xbc] sm:%s69] %v172
        %v174 = vld [vmem:[%s76 + $0xc0] sm:%s69]
        %175 = vst [vmem:[%s77 + $0xc0] sm:%s69] %v174
        %v176 = vld [vmem:[%s76 + $0xd0] sm:%s69]
        %177 = vst [vmem:[%s77 + $0xc4] sm:%s69] %v176
        %v178 = vld [vmem:[%s76 + $0xc4] sm:%s69]
        %179 = vst [vmem:[%s77 + $0xc8] sm:%s69] %v178
        %v180 = vld [vmem:[%s76 + $0xd4] sm:%s69]
        %181 = vst [vmem:[%s77 + $0xcc] sm:%s69] %v180
        %v182 = vld [vmem:[%s76 + $0xc8] sm:%s69]
        %183 = vst [vmem:[%s77 + $0xd0] sm:%s69] %v182
        %v184 = vld [vmem:[%s76 + $0xd8] sm:%s69]
        %185 = vst [vmem:[%s77 + $0xd4] sm:%s69] %v184
        %v186 = vld [vmem:[%s76 + $0xcc] sm:%s69]
        %187 = vst [vmem:[%s77 + $0xd8] sm:%s69] %v186
        %v188 = vld [vmem:[%s76 + $0xdc] sm:%s69]
        %189 = vst [vmem:[%s77 + $0xdc] sm:%s69] %v188
        %v190 = vld [vmem:[%s76 + $0xe0] sm:%s69]
        %191 = vst [vmem:[%s77 + $0xe0] sm:%s69] %v190
        %v192 = vld [vmem:[%s76 + $0xf0] sm:%s69]
        %193 = vst [vmem:[%s77 + $0xe4] sm:%s69] %v192
        %v194 = vld [vmem:[%s76 + $0xe4] sm:%s69]
        %195 = vst [vmem:[%s77 + $0xe8] sm:%s69] %v194
        %v196 = vld [vmem:[%s76 + $0xf4] sm:%s69]
        %197 = vst [vmem:[%s77 + $0xec] sm:%s69] %v196
        %v198 = vld [vmem:[%s76 + $0xe8] sm:%s69]
        %199 = vst [vmem:[%s77 + $0xf0] sm:%s69] %v198
        %v200 = vld [vmem:[%s76 + $0xf8] sm:%s69]
        %201 = vst [vmem:[%s77 + $0xf4] sm:%s69] %v200
        %v202 = vld [vmem:[%s76 + $0xec] sm:%s69]
        %203 = vst [vmem:[%s77 + $0xf8] sm:%s69] %v202
        %v204 = vld [vmem:[%s76 + $0xfc] sm:%s69]
        %205 = vst [vmem:[%s77 + $0xfc] sm:%s69] %v204
      $region30: #{cdiscriminator_forward.1} parent=24 // loop_footer
        %s75 = sadd.s32 1, %s71
      $region31: #{cdiscriminator_forward.1} parent=24 // loop_footer_branch
        %70 = sbr.rel target = $region27
      $region32: #{cdiscriminator_forward.1} parent=24 // loop_exit
        _
    $region25: #{cdiscriminator_forward.1} parent=1 // pred_fallthru
      _
    // Predicated region
    $region51: #{cdiscriminator_forward.1} parent=1 // pred_check
      _
    $region52: #{cdiscriminator_forward.1} parent=1 // pred_check_branch
      %363 = sbr.rel (0) target = $region54
    $region53: #{cdiscriminator_forward.1} parent=1 // pred_region
      %364 = vsyncadd %s60, 4096
    $region54: #{cdiscriminator_forward.1} parent=1 // pred_fallthru
      _
    %s365 = scalar_lea.sflag [#allocation9], 2
    %s367 = sshll.u32 1, 14
    %s368 = sxor.u32 4294967295, %s367
    %s370 = sadd.s32 2, %s29
    %s372 = sshll.u32 7, 26
    %s373 = sxor.u32 4294967295, %s372
    %s374 = sand.u32 0, %s373
    %s375 = sshll.u32 %s370, 26
    %s376 = sor.u32 %s374, %s375
    %s377 = sshll.u32 [#allocation4], 4
    %s378 = int_to_ptr.vmem [resolvable:$true] %s377
    %381 = sst [smem:[#allocation14]] 1024
    %s382 = scalar_lea.smem [#allocation14], 1
    %383 = sst [smem:[%s382]] 1024
    %s384 = scalar_lea.smem [#allocation14], 2
    %385 = sst [smem:[%s384]] 8
    %s386 = scalar_lea.smem [#allocation14], 3
    %387 = sst [smem:[%s386]] 64
    %s388 = scalar_lea.smem [#allocation14], 4
    %389 = sst [smem:[%s388]] 128
    %s390 = scalar_lea.smem [#allocation14], 5
    %391 = sst [smem:[%s390]] 2
    %s392 = scalar_lea.smem [#allocation14], 6
    %393 = sst [smem:[%s392]] 512
    %s394 = scalar_lea.smem [#allocation14], 7
    %395 = sst [smem:[%s394]] 64
    %s396 = scalar_lea.smem [#allocation14], 8
    %397 = sst [smem:[%s396]] 4
    %399 = dma.general %s6, 32768, %s378, %s365, [#allocation13], [#allocation14], %s376, 0
    %s400 = scalar_lea.sflag [#allocation9], 3
    %s402 = sshll.u32 1, 14
    %s403 = sxor.u32 4294967295, %s402
    %s405 = sadd.s32 2, %s29
    %s407 = sshll.u32 7, 26
    %s408 = sxor.u32 4294967295, %s407
    %s409 = sand.u32 0, %s408
    %s410 = sshll.u32 %s405, 26
    %s411 = sor.u32 %s409, %s410
    %s412 = sshll.u32 [#allocation5], 4
    %s413 = int_to_ptr.vmem [resolvable:$true] %s412
    %416 = sst [smem:[#allocation16]] 512
    %s417 = scalar_lea.smem [#allocation16], 1
    %418 = sst [smem:[%s417]] 512
    %s419 = scalar_lea.smem [#allocation16], 2
    %420 = sst [smem:[%s419]] 4
    %s421 = scalar_lea.smem [#allocation16], 3
    %422 = sst [smem:[%s421]] 64
    %s423 = scalar_lea.smem [#allocation16], 4
    %424 = sst [smem:[%s423]] 128
    %s425 = scalar_lea.smem [#allocation16], 5
    %426 = sst [smem:[%s425]] 2
    %s427 = scalar_lea.smem [#allocation16], 6
    %428 = sst [smem:[%s427]] 256
    %s429 = scalar_lea.smem [#allocation16], 7
    %430 = sst [smem:[%s429]] 64
    %s431 = scalar_lea.smem [#allocation16], 8
    %432 = sst [smem:[%s431]] 4
    %434 = dma.general %s7, 32768, %s413, %s400, [#allocation15], [#allocation16], %s411, 0
    %s435 = scalar_lea.sflag [#allocation9], 4
    %s437 = sshll.u32 1, 14
    %s438 = sxor.u32 4294967295, %s437
    %s440 = sadd.s32 2, %s29
    %s442 = sshll.u32 7, 26
    %s443 = sxor.u32 4294967295, %s442
    %s444 = sand.u32 0, %s443
    %s445 = sshll.u32 %s440, 26
    %s446 = sor.u32 %s444, %s445
    %s447 = sshll.u32 [#allocation6], 4
    %s448 = int_to_ptr.vmem [resolvable:$true] %s447
    %451 = sst [smem:[#allocation18]] 1024
    %s452 = scalar_lea.smem [#allocation18], 1
    %453 = sst [smem:[%s452]] 1024
    %s454 = scalar_lea.smem [#allocation18], 2
    %455 = sst [smem:[%s454]] 8
    %s456 = scalar_lea.smem [#allocation18], 3
    %457 = sst [smem:[%s456]] 64
    %s458 = scalar_lea.smem [#allocation18], 4
    %459 = sst [smem:[%s458]] 128
    %s460 = scalar_lea.smem [#allocation18], 5
    %461 = sst [smem:[%s460]] 2
    %s462 = scalar_lea.smem [#allocation18], 6
    %463 = sst [smem:[%s462]] 512
    %s464 = scalar_lea.smem [#allocation18], 7
    %465 = sst [smem:[%s464]] 64
    %s466 = scalar_lea.smem [#allocation18], 8
    %467 = sst [smem:[%s466]] 4
    %469 = dma.general %s8, 32768, %s448, %s435, [#allocation17], [#allocation18], %s446, 0
    %s470 = scalar_lea.sflag [#allocation9], 5
    %s472 = sshll.u32 1, 14
    %s473 = sxor.u32 4294967295, %s472
    %s475 = sadd.s32 2, %s29
    %s477 = sshll.u32 7, 26
    %s478 = sxor.u32 4294967295, %s477
    %s479 = sand.u32 0, %s478
    %s480 = sshll.u32 %s475, 26
    %s481 = sor.u32 %s479, %s480
    %s482 = sshll.u32 [#allocation7], 4
    %s483 = int_to_ptr.vmem [resolvable:$true] %s482
    %486 = sst [smem:[#allocation20]] 256
    %s487 = scalar_lea.smem [#allocation20], 1
    %488 = sst [smem:[%s487]] 256
    %s489 = scalar_lea.smem [#allocation20], 2
    %490 = sst [smem:[%s489]] 2
    %s491 = scalar_lea.smem [#allocation20], 3
    %492 = sst [smem:[%s491]] 64
    %s493 = scalar_lea.smem [#allocation20], 4
    %494 = sst [smem:[%s493]] 128
    %s495 = scalar_lea.smem [#allocation20], 5
    %496 = sst [smem:[%s495]] 2
    %s497 = scalar_lea.smem [#allocation20], 6
    %498 = sst [smem:[%s497]] 128
    %s499 = scalar_lea.smem [#allocation20], 7
    %500 = sst [smem:[%s499]] 64
    %s501 = scalar_lea.smem [#allocation20], 8
    %502 = sst [smem:[%s501]] 4
    %504 = dma.general %s9, 16384, %s483, %s470, [#allocation19], [#allocation20], %s481, 0
    %s505 = scalar_lea.sflag [#allocation9], 6
    %p507 = scmp.lt.u32.totalorder 128, 8
    %p508 = pneg %p507
    // Predicated region
    $region55: #{cdiscriminator_forward.1} parent=1 // pred_check
      _
    $region56: #{cdiscriminator_forward.1} parent=1 // pred_check_branch
      %510 = sbr.rel (%p507) target = $region58
    $region57: #{cdiscriminator_forward.1} parent=1 // pred_region
      %s525 = sand.u32 128, 7
      %p526 = scmp.eq.s32.totalorder %s525, 0
      // Predicated region
      $region70: #{cdiscriminator_forward.1} parent=57 // pred_check
        %p527 = pneg %p526
      $region71: #{cdiscriminator_forward.1} parent=57 // pred_check_branch
        %529 = sbr.rel (%p527) target = $region73
      $region72: #{cdiscriminator_forward.1} parent=57 // pred_region
        loop: start=0, step=1, limit=1
        $region74: #{cdiscriminator_forward.1} parent=72 // loop_pre_header
          _
        $region75: #{cdiscriminator_forward.1} parent=72 // loop_header
          %s531 = sphi 0, %s535
          %p532 = scmp.ge.s32.totalorder %s531, 1
          %s536 = sphi %s10, %s10
          %s537 = sphi [#allocation8], [#allocation8]
        $region76: #{cdiscriminator_forward.1} parent=72 // loop_header_branch
          %534 = sbr.rel (%p532) target = $region80
        $region77: #{cdiscriminator_forward.1} parent=72 // loop_body
          %v538 = vld [vmem:[%s536] sm:$0xff]
          %539 = vst [vmem:[%s537] sm:$0xff] %v538
          %v540 = vld [vmem:[%s536 + $0x8] sm:$0xff]
          %541 = vst [vmem:[%s537 + $0x8] sm:$0xff] %v540
          %v542 = vld [vmem:[%s536 + $0x10] sm:$0xff]
          %543 = vst [vmem:[%s537 + $0x10] sm:$0xff] %v542
          %v544 = vld [vmem:[%s536 + $0x18] sm:$0xff]
          %545 = vst [vmem:[%s537 + $0x18] sm:$0xff] %v544
          %v546 = vld [vmem:[%s536 + $0x20] sm:$0xff]
          %547 = vst [vmem:[%s537 + $0x20] sm:$0xff] %v546
          %v548 = vld [vmem:[%s536 + $0x28] sm:$0xff]
          %549 = vst [vmem:[%s537 + $0x28] sm:$0xff] %v548
          %v550 = vld [vmem:[%s536 + $0x30] sm:$0xff]
          %551 = vst [vmem:[%s537 + $0x30] sm:$0xff] %v550
          %v552 = vld [vmem:[%s536 + $0x38] sm:$0xff]
          %553 = vst [vmem:[%s537 + $0x38] sm:$0xff] %v552
          %v554 = vld [vmem:[%s536 + $0x40] sm:$0xff]
          %555 = vst [vmem:[%s537 + $0x40] sm:$0xff] %v554
          %v556 = vld [vmem:[%s536 + $0x48] sm:$0xff]
          %557 = vst [vmem:[%s537 + $0x48] sm:$0xff] %v556
          %v558 = vld [vmem:[%s536 + $0x50] sm:$0xff]
          %559 = vst [vmem:[%s537 + $0x50] sm:$0xff] %v558
          %v560 = vld [vmem:[%s536 + $0x58] sm:$0xff]
          %561 = vst [vmem:[%s537 + $0x58] sm:$0xff] %v560
          %v562 = vld [vmem:[%s536 + $0x60] sm:$0xff]
          %563 = vst [vmem:[%s537 + $0x60] sm:$0xff] %v562
          %v564 = vld [vmem:[%s536 + $0x68] sm:$0xff]
          %565 = vst [vmem:[%s537 + $0x68] sm:$0xff] %v564
          %v566 = vld [vmem:[%s536 + $0x70] sm:$0xff]
          %567 = vst [vmem:[%s537 + $0x70] sm:$0xff] %v566
          %v568 = vld [vmem:[%s536 + $0x78] sm:$0xff]
          %569 = vst [vmem:[%s537 + $0x78] sm:$0xff] %v568
        $region78: #{cdiscriminator_forward.1} parent=72 // loop_footer
          %s535 = sadd.s32 1, %s531
        $region79: #{cdiscriminator_forward.1} parent=72 // loop_footer_branch
          %530 = sbr.rel target = $region75
        $region80: #{cdiscriminator_forward.1} parent=72 // loop_exit
          _
      $region73: #{cdiscriminator_forward.1} parent=57 // pred_fallthru
        _
      %p570 = pneg %p526
      // Predicated region
      $region81: #{cdiscriminator_forward.1} parent=57 // pred_check
        _
      $region82: #{cdiscriminator_forward.1} parent=57 // pred_check_branch
        %572 = sbr.rel (%p526) target = $region84
      $region83: #{cdiscriminator_forward.1} parent=57 // pred_region
        %s573 = sand.u32 128, 7
      $region84: #{cdiscriminator_forward.1} parent=57 // pred_fallthru
        _
    $region58: #{cdiscriminator_forward.1} parent=1 // pred_fallthru
      _
    // Predicated region
    $region59: #{cdiscriminator_forward.1} parent=1 // pred_check
      %p511 = pneg %p507
    $region60: #{cdiscriminator_forward.1} parent=1 // pred_check_branch
      %513 = sbr.rel (%p511) target = $region62
    $region61: #{cdiscriminator_forward.1} parent=1 // pred_region
      %s514 = sshllo.u32 0, 128
      loop: start=0, step=1, limit=1
      $region63: #{cdiscriminator_forward.1} parent=61 // loop_pre_header
        _
      $region64: #{cdiscriminator_forward.1} parent=61 // loop_header
        %s516 = sphi 0, %s520
        %p517 = scmp.ge.s32.totalorder %s516, 1
        %s521 = sphi %s10, %s10
        %s522 = sphi [#allocation8], [#allocation8]
      $region65: #{cdiscriminator_forward.1} parent=61 // loop_header_branch
        %519 = sbr.rel (%p517) target = $region69
      $region66: #{cdiscriminator_forward.1} parent=61 // loop_body
        %v523 = vld [vmem:[%s521] sm:%s514]
        %524 = vst [vmem:[%s522] sm:%s514] %v523
      $region67: #{cdiscriminator_forward.1} parent=61 // loop_footer
        %s520 = sadd.s32 1, %s516
      $region68: #{cdiscriminator_forward.1} parent=61 // loop_footer_branch
        %515 = sbr.rel target = $region64
      $region69: #{cdiscriminator_forward.1} parent=61 // loop_exit
        _
    $region62: #{cdiscriminator_forward.1} parent=1 // pred_fallthru
      _
    // Predicated region
    $region85: #{cdiscriminator_forward.1} parent=1 // pred_check
      _
    $region86: #{cdiscriminator_forward.1} parent=1 // pred_check_branch
      %576 = sbr.rel (0) target = $region88
    $region87: #{cdiscriminator_forward.1} parent=1 // pred_region
      %577 = vsyncadd %s505, 2048
    $region88: #{cdiscriminator_forward.1} parent=1 // pred_fallthru
      _
    %v578 = vld [vmem:[%s1] sm:$0xff]
    %v579 = vld [vmem:[%s1 + $0x8] sm:$0xff]
    %v580 = vlaneseq
    %v581 = vand.u32 %v580, 127
    %582 = vset.pattern.permute.xlu0 0
    %583 = vperm.xlu0 %582, %v578
    %v584 = vpop.permute.xlu0 %583
    %585 = vset.pattern.permute.xlu0 0
    %586 = vperm.xlu0 %585, %v579
    %v587 = vpop.permute.xlu0 %586
    %vm588 = vcmp.eq.s32.totalorder %v581, %v584
    %vm589 = vcmp.eq.s32.totalorder %v581, %v587
    %v590 = vsel %vm588, 1, 0
    %v591 = vsel %vm589, 1, 0
    %v592 = vcvt.s32.f32 %v590
    %v593 = vcvt.s32.f32 %v591
    %v594 = vld [vmem:[%s2] sm:$0xff]
    %v595 = vld [vmem:[%s2 + $0x8] sm:$0xff]
    %vm596 = vcmask 130048
    %v598 = vsel %vm596, %v592, 0
    %v601 = vsel %vm596, %v593, 0
    %603 = vmatprep.subr.mxu0 0.0
    %604 = vmatpush1.msra.mxu0 %v594
    %605 = vmatprep.subr.mxu0 0.0
    %606 = vmatpush1.msra.mxu0 %v595
    %607 = vmatprep.subr.mxu0 0.0
    %608 = vmatpush1.msra.mxu0 0.0
    %609 = vmatprep.subr.mxu0 0.0
    %610 = vmatpush1.msra.mxu0 0.0
    %611 = vmatprep.subr.mxu0 0.0
    %612 = vmatpush1.msra.mxu0 0.0
    %613 = vmatprep.subr.mxu0 0.0
    %614 = vmatpush1.msra.mxu0 0.0
    %615 = vmatprep.subr.mxu0 0.0
    %616 = vmatpush1.msra.mxu0 0.0
    %617 = vmatprep.subr.mxu0 0.0
    %618 = vmatpush1.msra.mxu0 0.0
    %619 = vmatprep.subr.mxu0 0.0
    %620 = vmatpush1.msra.mxu0 0.0
    %621 = vmatprep.subr.mxu0 0.0
    %622 = vmatpush1.msra.mxu0 0.0
    %623 = vmatprep.subr.mxu0 0.0
    %624 = vmatpush1.msra.mxu0 0.0
    %625 = vmatprep.subr.mxu0 0.0
    %626 = vmatpush1.msra.mxu0 0.0
    %627 = vmatprep.subr.mxu0 0.0
    %628 = vmatpush1.msra.mxu0 0.0
    %629 = vmatprep.subr.mxu0 0.0
    %630 = vmatpush1.msra.mxu0 0.0
    %631 = vmatprep.subr.mxu0 0.0
    %632 = vmatpush1.msra.mxu0 0.0
    %633 = vmatprep.subr.mxu0 0.0
    %634 = vmatpush1.msra.mxu0 0.0
    %635 = vmatprep.subr.mxu0 0.0
    %636 = vmatpush1.msra.mxu0 0.0
    %637 = vmatprep.subr.mxu0 0.0
    %638 = vmatpush1.msra.mxu0 0.0
    %639 = vmatprep.subr.mxu0 0.0
    %640 = vmatpush1.msra.mxu0 0.0
    %641 = vmatprep.subr.mxu0 0.0
    %642 = vmatpush1.msra.mxu0 0.0
    %643 = vmatprep.subr.mxu0 0.0
    %644 = vmatpush1.msra.mxu0 0.0
    %645 = vmatprep.subr.mxu0 0.0
    %646 = vmatpush1.msra.mxu0 0.0
    %647 = vmatprep.subr.mxu0 0.0
    %648 = vmatpush1.msra.mxu0 0.0
    %649 = vmatprep.subr.mxu0 0.0
    %650 = vmatpush1.msra.mxu0 0.0
    %651 = vmatprep.subr.mxu0 0.0
    %652 = vmatpush1.msra.mxu0 0.0
    %653 = vmatprep.subr.mxu0 0.0
    %654 = vmatpush1.msra.mxu0 0.0
    %655 = vmatprep.subr.mxu0 0.0
    %656 = vmatpush1.msra.mxu0 0.0
    %657 = vmatprep.subr.mxu0 0.0
    %658 = vmatpush1.msra.mxu0 0.0
    %659 = vmatprep.subr.mxu0 0.0
    %660 = vmatpush1.msra.mxu0 0.0
    %661 = vmatprep.subr.mxu0 0.0
    %662 = vmatpush1.msra.mxu0 0.0
    %663 = vmatprep.subr.mxu0 0.0
    %664 = vmatpush1.msra.mxu0 0.0
    %665 = vmatprep.subr.mxu0 0.0
    %666 = vmatpush1.msra.mxu0 0.0
    %667 = vmatprep.mubr.f32.mxu0 0.0
    %668 = vmatmul.mubr.f32.gmra.mrb[0].mxu0 %v598
    %v669 = vpop.f32.mrb[0].mxu0
    %v670 = vadd.f32 0.0, %v669
    %v671 = vpop.f32.mrb[0].mxu0
    %672 = vmatprep.mubr.f32.mxu0 0.0
    %673 = vmatmul.mubr.f32.gmra.mrb[0].mxu0 %v601
    %v674 = vpop.f32.mrb[0].mxu0
    %v675 = vadd.f32 0.0, %v674
    %v676 = vpop.f32.mrb[0].mxu0
    %677 = vdwg.mxu0
    %v678 = vld [vmem:[%s0] sm:$0xff]
    %v679 = vld [vmem:[%s0 + $0x8] sm:$0xff]
    %v680 = vld [vmem:[%s0 + $0x10] sm:$0xff]
    %v681 = vld [vmem:[%s0 + $0x18] sm:$0xff]
    %v682 = vld [vmem:[%s0 + $0x20] sm:$0xff]
    %v683 = vld [vmem:[%s0 + $0x28] sm:$0xff]
    %v684 = vld [vmem:[%s0 + $0x30] sm:$0xff]
    %v685 = vld [vmem:[%s0 + $0x38] sm:$0xff]
    %v686 = vld [vmem:[%s0 + $0x40] sm:$0xff]
    %v687 = vld [vmem:[%s0 + $0x48] sm:$0xff]
    %v688 = vld [vmem:[%s0 + $0x50] sm:$0xff]
    %v689 = vld [vmem:[%s0 + $0x58] sm:$0xff]
    %v690 = vld [vmem:[%s0 + $0x60] sm:$0xff]
    %v691 = vld [vmem:[%s0 + $0x68] sm:$0xff]
    %v692 = vpack.c.bf16 %v685, %v678
    %v693 = vpack.c.bf16 %v686, %v679
    %v694 = vpack.c.bf16 %v687, %v680
    %v695 = vpack.c.bf16 %v688, %v681
    %v696 = vpack.c.bf16 %v689, %v682
    %v697 = vpack.c.bf16 %v690, %v683
    %v698 = vpack.c.bf16 %v691, %v684
    %v699 = vpack.c.bf16 %v675, %v670
    %s700 = smul.u32 4, 112
    %s701 = smul.u32 %s700, 4
    %s702 = sshll.u32 %s701, 4
    %703 = dma.done [#allocation9], %s702
    %v704 = vld [vmem:[#allocation2] sm:$0xff]
    %v705 = vld [vmem:[#allocation2 + $0x8] sm:$0xff]
    %v706 = vld [vmem:[#allocation2 + $0x10] sm:$0xff]
    %v707 = vld [vmem:[#allocation2 + $0x18] sm:$0xff]
    %v708 = vld [vmem:[#allocation2 + $0x20] sm:$0xff]
    %v709 = vld [vmem:[#allocation2 + $0x28] sm:$0xff]
    %v710 = vld [vmem:[#allocation2 + $0x30] sm:$0xff]
    %v711 = vld [vmem:[#allocation2 + $0x38] sm:$0xff]
    %v712 = vld [vmem:[#allocation2 + $0x40] sm:$0xff]
    %v713 = vld [vmem:[#allocation2 + $0x48] sm:$0xff]
    %v714 = vld [vmem:[#allocation2 + $0x50] sm:$0xff]
    %v715 = vld [vmem:[#allocation2 + $0x58] sm:$0xff]
    %v716 = vld [vmem:[#allocation2 + $0x60] sm:$0xff]
    %v717 = vld [vmem:[#allocation2 + $0x68] sm:$0xff]
    %v718 = vld [vmem:[#allocation2 + $0x70] sm:$0xff]
    %v719 = vld [vmem:[#allocation2 + $0x78] sm:$0xff]
    %v720 = vld [vmem:[#allocation2 + $0x80] sm:$0xff]
    %v721 = vld [vmem:[#allocation2 + $0x88] sm:$0xff]
    %v722 = vld [vmem:[#allocation2 + $0x90] sm:$0xff]
    %v723 = vld [vmem:[#allocation2 + $0x98] sm:$0xff]
    %v724 = vld [vmem:[#allocation2 + $0xa0] sm:$0xff]
    %v725 = vld [vmem:[#allocation2 + $0xa8] sm:$0xff]
    %v726 = vld [vmem:[#allocation2 + $0xb0] sm:$0xff]
    %v727 = vld [vmem:[#allocation2 + $0xb8] sm:$0xff]
    %v728 = vld [vmem:[#allocation2 + $0xc0] sm:$0xff]
    %v729 = vld [vmem:[#allocation2 + $0xc8] sm:$0xff]
    %v730 = vld [vmem:[#allocation2 + $0xd0] sm:$0xff]
    %v731 = vld [vmem:[#allocation2 + $0xd8] sm:$0xff]
    %v732 = vld [vmem:[#allocation2 + $0xe0] sm:$0xff]
    %v733 = vld [vmem:[#allocation2 + $0xe8] sm:$0xff]
    %v734 = vld [vmem:[#allocation2 + $0xf0] sm:$0xff]
    %v735 = vld [vmem:[#allocation2 + $0xf8] sm:$0xff]
    %v736 = vld [vmem:[#allocation2 + $0x100] sm:$0xff]
    %v737 = vld [vmem:[#allocation2 + $0x108] sm:$0xff]
    %v738 = vld [vmem:[#allocation2 + $0x110] sm:$0xff]
    %v739 = vld [vmem:[#allocation2 + $0x118] sm:$0xff]
    %v740 = vld [vmem:[#allocation2 + $0x120] sm:$0xff]
    %v741 = vld [vmem:[#allocation2 + $0x128] sm:$0xff]
    %v742 = vld [vmem:[#allocation2 + $0x130] sm:$0xff]
    %v743 = vld [vmem:[#allocation2 + $0x138] sm:$0xff]
    %v744 = vld [vmem:[#allocation2 + $0x140] sm:$0xff]
    %v745 = vld [vmem:[#allocation2 + $0x148] sm:$0xff]
    %v746 = vld [vmem:[#allocation2 + $0x150] sm:$0xff]
    %v747 = vld [vmem:[#allocation2 + $0x158] sm:$0xff]
    %v748 = vld [vmem:[#allocation2 + $0x160] sm:$0xff]
    %v749 = vld [vmem:[#allocation2 + $0x168] sm:$0xff]
    %v750 = vld [vmem:[#allocation2 + $0x170] sm:$0xff]
    %v751 = vld [vmem:[#allocation2 + $0x178] sm:$0xff]
    %v752 = vld [vmem:[#allocation2 + $0x180] sm:$0xff]
    %v753 = vld [vmem:[#allocation2 + $0x188] sm:$0xff]
    %v754 = vld [vmem:[#allocation2 + $0x190] sm:$0xff]
    %v755 = vld [vmem:[#allocation2 + $0x198] sm:$0xff]
    %v756 = vld [vmem:[#allocation2 + $0x1a0] sm:$0xff]
    %v757 = vld [vmem:[#allocation2 + $0x1a8] sm:$0xff]
    %v758 = vld [vmem:[#allocation2 + $0x1b0] sm:$0xff]
    %v759 = vld [vmem:[#allocation2 + $0x1b8] sm:$0xff]
    %v760 = vld [vmem:[#allocation2 + $0x1c0] sm:$0xff]
    %v761 = vld [vmem:[#allocation2 + $0x1c8] sm:$0xff]
    %v762 = vld [vmem:[#allocation2 + $0x1d0] sm:$0xff]
    %v763 = vld [vmem:[#allocation2 + $0x1d8] sm:$0xff]
    %v764 = vld [vmem:[#allocation2 + $0x1e0] sm:$0xff]
    %v765 = vld [vmem:[#allocation2 + $0x1e8] sm:$0xff]
    %v766 = vld [vmem:[#allocation2 + $0x1f0] sm:$0xff]
    %v767 = vld [vmem:[#allocation2 + $0x1f8] sm:$0xff]
    %v768 = vld [vmem:[#allocation2 + $0x200] sm:$0xff]
    %v769 = vld [vmem:[#allocation2 + $0x208] sm:$0xff]
    %v770 = vld [vmem:[#allocation2 + $0x210] sm:$0xff]
    %v771 = vld [vmem:[#allocation2 + $0x218] sm:$0xff]
    %v772 = vld [vmem:[#allocation2 + $0x220] sm:$0xff]
    %v773 = vld [vmem:[#allocation2 + $0x228] sm:$0xff]
    %v774 = vld [vmem:[#allocation2 + $0x230] sm:$0xff]
    %v775 = vld [vmem:[#allocation2 + $0x238] sm:$0xff]
    %v776 = vld [vmem:[#allocation2 + $0x240] sm:$0xff]
    %v777 = vld [vmem:[#allocation2 + $0x248] sm:$0xff]
    %v778 = vld [vmem:[#allocation2 + $0x250] sm:$0xff]
    %v779 = vld [vmem:[#allocation2 + $0x258] sm:$0xff]
    %v780 = vld [vmem:[#allocation2 + $0x260] sm:$0xff]
    %v781 = vld [vmem:[#allocation2 + $0x268] sm:$0xff]
    %v782 = vld [vmem:[#allocation2 + $0x270] sm:$0xff]
    %v783 = vld [vmem:[#allocation2 + $0x278] sm:$0xff]
    %v784 = vld [vmem:[#allocation2 + $0x280] sm:$0xff]
    %v785 = vld [vmem:[#allocation2 + $0x288] sm:$0xff]
    %v786 = vld [vmem:[#allocation2 + $0x290] sm:$0xff]
    %v787 = vld [vmem:[#allocation2 + $0x298] sm:$0xff]
    %v788 = vld [vmem:[#allocation2 + $0x2a0] sm:$0xff]
    %v789 = vld [vmem:[#allocation2 + $0x2a8] sm:$0xff]
    %v790 = vld [vmem:[#allocation2 + $0x2b0] sm:$0xff]
    %v791 = vld [vmem:[#allocation2 + $0x2b8] sm:$0xff]
    %v792 = vld [vmem:[#allocation2 + $0x2c0] sm:$0xff]
    %v793 = vld [vmem:[#allocation2 + $0x2c8] sm:$0xff]
    %v794 = vld [vmem:[#allocation2 + $0x2d0] sm:$0xff]
    %v795 = vld [vmem:[#allocation2 + $0x2d8] sm:$0xff]
    %v796 = vld [vmem:[#allocation2 + $0x2e0] sm:$0xff]
    %v797 = vld [vmem:[#allocation2 + $0x2e8] sm:$0xff]
    %v798 = vld [vmem:[#allocation2 + $0x2f0] sm:$0xff]
    %v799 = vld [vmem:[#allocation2 + $0x2f8] sm:$0xff]
    %v800 = vld [vmem:[#allocation2 + $0x300] sm:$0xff]
    %v801 = vld [vmem:[#allocation2 + $0x308] sm:$0xff]
    %v802 = vld [vmem:[#allocation2 + $0x310] sm:$0xff]
    %v803 = vld [vmem:[#allocation2 + $0x318] sm:$0xff]
    %v804 = vld [vmem:[#allocation2 + $0x320] sm:$0xff]
    %v805 = vld [vmem:[#allocation2 + $0x328] sm:$0xff]
    %v806 = vld [vmem:[#allocation2 + $0x330] sm:$0xff]
    %v807 = vld [vmem:[#allocation2 + $0x338] sm:$0xff]
    %v808 = vld [vmem:[#allocation2 + $0x340] sm:$0xff]
    %v809 = vld [vmem:[#allocation2 + $0x348] sm:$0xff]
    %v810 = vld [vmem:[#allocation2 + $0x350] sm:$0xff]
    %v811 = vld [vmem:[#allocation2 + $0x358] sm:$0xff]
    %v812 = vld [vmem:[#allocation2 + $0x360] sm:$0xff]
    %v813 = vld [vmem:[#allocation2 + $0x368] sm:$0xff]
    %v814 = vld [vmem:[#allocation2 + $0x370] sm:$0xff]
    %v815 = vld [vmem:[#allocation2 + $0x378] sm:$0xff]
    %v816 = vld [vmem:[#allocation2 + $0x380] sm:$0xff]
    %v817 = vld [vmem:[#allocation2 + $0x388] sm:$0xff]
    %v818 = vld [vmem:[#allocation2 + $0x390] sm:$0xff]
    %v819 = vld [vmem:[#allocation2 + $0x398] sm:$0xff]
    %v820 = vld [vmem:[#allocation2 + $0x3a0] sm:$0xff]
    %v821 = vld [vmem:[#allocation2 + $0x3a8] sm:$0xff]
    %v822 = vld [vmem:[#allocation2 + $0x3b0] sm:$0xff]
    %v823 = vld [vmem:[#allocation2 + $0x3b8] sm:$0xff]
    %v824 = vld [vmem:[#allocation2 + $0x3c0] sm:$0xff]
    %v825 = vld [vmem:[#allocation2 + $0x3c8] sm:$0xff]
    %v826 = vld [vmem:[#allocation2 + $0x3d0] sm:$0xff]
    %v827 = vld [vmem:[#allocation2 + $0x3d8] sm:$0xff]
    %v828 = vld [vmem:[#allocation2 + $0x3e0] sm:$0xff]
    %v829 = vld [vmem:[#allocation2 + $0x3e8] sm:$0xff]
    %v830 = vld [vmem:[#allocation2 + $0x3f0] sm:$0xff]
    %v831 = vld [vmem:[#allocation2 + $0x3f8] sm:$0xff]
    %v832 = vld [vmem:[#allocation2 + $0x400] sm:$0xff]
    %v833 = vld [vmem:[#allocation2 + $0x408] sm:$0xff]
    %v834 = vld [vmem:[#allocation2 + $0x410] sm:$0xff]
    %v835 = vld [vmem:[#allocation2 + $0x418] sm:$0xff]
    %v836 = vld [vmem:[#allocation2 + $0x420] sm:$0xff]
    %v837 = vld [vmem:[#allocation2 + $0x428] sm:$0xff]
    %v838 = vld [vmem:[#allocation2 + $0x430] sm:$0xff]
    %v839 = vld [vmem:[#allocation2 + $0x438] sm:$0xff]
    %v840 = vld [vmem:[#allocation2 + $0x440] sm:$0xff]
    %v841 = vld [vmem:[#allocation2 + $0x448] sm:$0xff]
    %v842 = vld [vmem:[#allocation2 + $0x450] sm:$0xff]
    %v843 = vld [vmem:[#allocation2 + $0x458] sm:$0xff]
    %v844 = vld [vmem:[#allocation2 + $0x460] sm:$0xff]
    %v845 = vld [vmem:[#allocation2 + $0x468] sm:$0xff]
    %v846 = vld [vmem:[#allocation2 + $0x470] sm:$0xff]
    %v847 = vld [vmem:[#allocation2 + $0x478] sm:$0xff]
    %v848 = vld [vmem:[#allocation2 + $0x480] sm:$0xff]
    %v849 = vld [vmem:[#allocation2 + $0x488] sm:$0xff]
    %v850 = vld [vmem:[#allocation2 + $0x490] sm:$0xff]
    %v851 = vld [vmem:[#allocation2 + $0x498] sm:$0xff]
    %v852 = vld [vmem:[#allocation2 + $0x4a0] sm:$0xff]
    %v853 = vld [vmem:[#allocation2 + $0x4a8] sm:$0xff]
    %v854 = vld [vmem:[#allocation2 + $0x4b0] sm:$0xff]
    %v855 = vld [vmem:[#allocation2 + $0x4b8] sm:$0xff]
    %v856 = vld [vmem:[#allocation2 + $0x4c0] sm:$0xff]
    %v857 = vld [vmem:[#allocation2 + $0x4c8] sm:$0xff]
    %v858 = vld [vmem:[#allocation2 + $0x4d0] sm:$0xff]
    %v859 = vld [vmem:[#allocation2 + $0x4d8] sm:$0xff]
    %v860 = vld [vmem:[#allocation2 + $0x4e0] sm:$0xff]
    %v861 = vld [vmem:[#allocation2 + $0x4e8] sm:$0xff]
    %v862 = vld [vmem:[#allocation2 + $0x4f0] sm:$0xff]
    %v863 = vld [vmem:[#allocation2 + $0x4f8] sm:$0xff]
    %v864 = vld [vmem:[#allocation2 + $0x500] sm:$0xff]
    %v865 = vld [vmem:[#allocation2 + $0x508] sm:$0xff]
    %v866 = vld [vmem:[#allocation2 + $0x510] sm:$0xff]
    %v867 = vld [vmem:[#allocation2 + $0x518] sm:$0xff]
    %v868 = vld [vmem:[#allocation2 + $0x520] sm:$0xff]
    %v869 = vld [vmem:[#allocation2 + $0x528] sm:$0xff]
    %v870 = vld [vmem:[#allocation2 + $0x530] sm:$0xff]
    %v871 = vld [vmem:[#allocation2 + $0x538] sm:$0xff]
    %v872 = vld [vmem:[#allocation2 + $0x540] sm:$0xff]
    %v873 = vld [vmem:[#allocation2 + $0x548] sm:$0xff]
    %v874 = vld [vmem:[#allocation2 + $0x550] sm:$0xff]
    %v875 = vld [vmem:[#allocation2 + $0x558] sm:$0xff]
    %v876 = vld [vmem:[#allocation2 + $0x560] sm:$0xff]
    %v877 = vld [vmem:[#allocation2 + $0x568] sm:$0xff]
    %v878 = vld [vmem:[#allocation2 + $0x570] sm:$0xff]
    %v879 = vld [vmem:[#allocation2 + $0x578] sm:$0xff]
    %v880 = vld [vmem:[#allocation2 + $0x580] sm:$0xff]
    %v881 = vld [vmem:[#allocation2 + $0x588] sm:$0xff]
    %v882 = vld [vmem:[#allocation2 + $0x590] sm:$0xff]
    %v883 = vld [vmem:[#allocation2 + $0x598] sm:$0xff]
    %v884 = vld [vmem:[#allocation2 + $0x5a0] sm:$0xff]
    %v885 = vld [vmem:[#allocation2 + $0x5a8] sm:$0xff]
    %v886 = vld [vmem:[#allocation2 + $0x5b0] sm:$0xff]
    %v887 = vld [vmem:[#allocation2 + $0x5b8] sm:$0xff]
    %v888 = vld [vmem:[#allocation2 + $0x5c0] sm:$0xff]
    %v889 = vld [vmem:[#allocation2 + $0x5c8] sm:$0xff]
    %v890 = vld [vmem:[#allocation2 + $0x5d0] sm:$0xff]
    %v891 = vld [vmem:[#allocation2 + $0x5d8] sm:$0xff]
    %v892 = vld [vmem:[#allocation2 + $0x5e0] sm:$0xff]
    %v893 = vld [vmem:[#allocation2 + $0x5e8] sm:$0xff]
    %v894 = vld [vmem:[#allocation2 + $0x5f0] sm:$0xff]
    %v895 = vld [vmem:[#allocation2 + $0x5f8] sm:$0xff]
    %v896 = vld [vmem:[#allocation2 + $0x600] sm:$0xff]
    %v897 = vld [vmem:[#allocation2 + $0x608] sm:$0xff]
    %v898 = vld [vmem:[#allocation2 + $0x610] sm:$0xff]
    %v899 = vld [vmem:[#allocation2 + $0x618] sm:$0xff]
    %v900 = vld [vmem:[#allocation2 + $0x620] sm:$0xff]
    %v901 = vld [vmem:[#allocation2 + $0x628] sm:$0xff]
    %v902 = vld [vmem:[#allocation2 + $0x630] sm:$0xff]
    %v903 = vld [vmem:[#allocation2 + $0x638] sm:$0xff]
    %v904 = vld [vmem:[#allocation2 + $0x640] sm:$0xff]
    %v905 = vld [vmem:[#allocation2 + $0x648] sm:$0xff]
    %v906 = vld [vmem:[#allocation2 + $0x650] sm:$0xff]
    %v907 = vld [vmem:[#allocation2 + $0x658] sm:$0xff]
    %v908 = vld [vmem:[#allocation2 + $0x660] sm:$0xff]
    %v909 = vld [vmem:[#allocation2 + $0x668] sm:$0xff]
    %v910 = vld [vmem:[#allocation2 + $0x670] sm:$0xff]
    %v911 = vld [vmem:[#allocation2 + $0x678] sm:$0xff]
    %v912 = vld [vmem:[#allocation2 + $0x680] sm:$0xff]
    %v913 = vld [vmem:[#allocation2 + $0x688] sm:$0xff]
    %v914 = vld [vmem:[#allocation2 + $0x690] sm:$0xff]
    %v915 = vld [vmem:[#allocation2 + $0x698] sm:$0xff]
    %v916 = vld [vmem:[#allocation2 + $0x6a0] sm:$0xff]
    %v917 = vld [vmem:[#allocation2 + $0x6a8] sm:$0xff]
    %v918 = vld [vmem:[#allocation2 + $0x6b0] sm:$0xff]
    %v919 = vld [vmem:[#allocation2 + $0x6b8] sm:$0xff]
    %v920 = vld [vmem:[#allocation2 + $0x6c0] sm:$0xff]
    %v921 = vld [vmem:[#allocation2 + $0x6c8] sm:$0xff]
    %v922 = vld [vmem:[#allocation2 + $0x6d0] sm:$0xff]
    %v923 = vld [vmem:[#allocation2 + $0x6d8] sm:$0xff]
    %v924 = vld [vmem:[#allocation2 + $0x6e0] sm:$0xff]
    %v925 = vld [vmem:[#allocation2 + $0x6e8] sm:$0xff]
    %v926 = vld [vmem:[#allocation2 + $0x6f0] sm:$0xff]
    %v927 = vld [vmem:[#allocation2 + $0x6f8] sm:$0xff]
    %s928 = smul.u32 4, 16
    %s929 = smul.u32 %s928, 4
    %s930 = sshll.u32 %s929, 4
    %931 = dma.done %s60, %s930
    %v932 = vld [vmem:[#allocation3] sm:$0xff]
    %v933 = vld [vmem:[#allocation3 + $0x8] sm:$0xff]
    %v934 = vld [vmem:[#allocation3 + $0x10] sm:$0xff]
    %v935 = vld [vmem:[#allocation3 + $0x18] sm:$0xff]
    %v936 = vld [vmem:[#allocation3 + $0x20] sm:$0xff]
    %v937 = vld [vmem:[#allocation3 + $0x28] sm:$0xff]
    %v938 = vld [vmem:[#allocation3 + $0x30] sm:$0xff]
    %v939 = vld [vmem:[#allocation3 + $0x38] sm:$0xff]
    %v940 = vld [vmem:[#allocation3 + $0x40] sm:$0xff]
    %v941 = vld [vmem:[#allocation3 + $0x48] sm:$0xff]
    %v942 = vld [vmem:[#allocation3 + $0x50] sm:$0xff]
    %v943 = vld [vmem:[#allocation3 + $0x58] sm:$0xff]
    %v944 = vld [vmem:[#allocation3 + $0x60] sm:$0xff]
    %v945 = vld [vmem:[#allocation3 + $0x68] sm:$0xff]
    %v946 = vld [vmem:[#allocation3 + $0x70] sm:$0xff]
    %v947 = vld [vmem:[#allocation3 + $0x78] sm:$0xff]
    %v948 = vld [vmem:[#allocation3 + $0x80] sm:$0xff]
    %v949 = vld [vmem:[#allocation3 + $0x88] sm:$0xff]
    %v950 = vld [vmem:[#allocation3 + $0x90] sm:$0xff]
    %v951 = vld [vmem:[#allocation3 + $0x98] sm:$0xff]
    %v952 = vld [vmem:[#allocation3 + $0xa0] sm:$0xff]
    %v953 = vld [vmem:[#allocation3 + $0xa8] sm:$0xff]
    %v954 = vld [vmem:[#allocation3 + $0xb0] sm:$0xff]
    %v955 = vld [vmem:[#allocation3 + $0xb8] sm:$0xff]
    %v956 = vld [vmem:[#allocation3 + $0xc0] sm:$0xff]
    %v957 = vld [vmem:[#allocation3 + $0xc8] sm:$0xff]
    %v958 = vld [vmem:[#allocation3 + $0xd0] sm:$0xff]
    %v959 = vld [vmem:[#allocation3 + $0xd8] sm:$0xff]
    %v960 = vld [vmem:[#allocation3 + $0xe0] sm:$0xff]
    %v961 = vld [vmem:[#allocation3 + $0xe8] sm:$0xff]
    %v962 = vld [vmem:[#allocation3 + $0xf0] sm:$0xff]
    %v963 = vld [vmem:[#allocation3 + $0xf8] sm:$0xff]
    %964 = vmatprep.subr.bf16.mxu0 %v933
    %965 = vmatpush1.bf16.msra.mxu0 %v932
    %966 = vmatprep.subr.bf16.mxu0 %v937
    %967 = vmatpush1.bf16.msra.mxu0 %v936
    %968 = vmatprep.subr.bf16.mxu0 %v941
    %969 = vmatpush1.bf16.msra.mxu0 %v940
    %970 = vmatprep.subr.bf16.mxu0 %v945
    %971 = vmatpush1.bf16.msra.mxu0 %v944
    %972 = vmatprep.subr.bf16.mxu0 %v949
    %973 = vmatpush1.bf16.msra.mxu0 %v948
    %974 = vmatprep.subr.bf16.mxu0 %v953
    %975 = vmatpush1.bf16.msra.mxu0 %v952
    %976 = vmatprep.subr.bf16.mxu0 %v957
    %977 = vmatpush1.bf16.msra.mxu0 %v956
    %978 = vmatprep.subr.bf16.mxu0 %v961
    %979 = vmatpush1.bf16.msra.mxu0 %v960
    %980 = vmatprep.subr.bf16.mxu0 0
    %981 = vmatpush1.bf16.msra.mxu0 0
    %982 = vmatprep.subr.bf16.mxu0 0
    %983 = vmatpush1.bf16.msra.mxu0 0
    %984 = vmatprep.subr.bf16.mxu0 0
    %985 = vmatpush1.bf16.msra.mxu0 0
    %986 = vmatprep.subr.bf16.mxu0 0
    %987 = vmatpush1.bf16.msra.mxu0 0
    %988 = vmatprep.subr.bf16.mxu0 0
    %989 = vmatpush1.bf16.msra.mxu0 0
    %990 = vmatprep.subr.bf16.mxu0 0
    %991 = vmatpush1.bf16.msra.mxu0 0
    %992 = vmatprep.subr.bf16.mxu0 0
    %993 = vmatpush1.bf16.msra.mxu0 0
    %994 = vmatprep.subr.bf16.mxu0 0
    %995 = vmatpush1.bf16.msra.mxu0 0
    %996 = vmatprep.mubr.bf16.mxu0 0
    %997 = vmatmul.mubr.bf16.gmra.mrb[0].mxu0 %v699
    %v998 = vpop.f32.mrb[0].mxu0
    %v999 = vadd.f32 0.0, %v998
    %v1000 = vpop.f32.mrb[0].mxu0
    %v1001 = vadd.f32 0.0, %v1000
    %v1002 = vpop.f32.mrb[0].mxu0
    %v1003 = vadd.f32 0.0, %v1002
    %v1004 = vpop.f32.mrb[0].mxu0
    %v1005 = vadd.f32 0.0, %v1004
    %1006 = vdwg.mxu0
    %1007 = vmatprep.subr.bf16.mxu0 %v935
    %1008 = vmatpush1.bf16.msra.mxu0 %v934
    %1009 = vmatprep.subr.bf16.mxu0 %v939
    %1010 = vmatpush1.bf16.msra.mxu0 %v938
    %1011 = vmatprep.subr.bf16.mxu0 %v943
    %1012 = vmatpush1.bf16.msra.mxu0 %v942
    %1013 = vmatprep.subr.bf16.mxu0 %v947
    %1014 = vmatpush1.bf16.msra.mxu0 %v946
    %1015 = vmatprep.subr.bf16.mxu0 %v951
    %1016 = vmatpush1.bf16.msra.mxu0 %v950
    %1017 = vmatprep.subr.bf16.mxu0 %v955
    %1018 = vmatpush1.bf16.msra.mxu0 %v954
    %1019 = vmatprep.subr.bf16.mxu0 %v959
    %1020 = vmatpush1.bf16.msra.mxu0 %v958
    %1021 = vmatprep.subr.bf16.mxu0 %v963
    %1022 = vmatpush1.bf16.msra.mxu0 %v962
    %1023 = vmatprep.subr.bf16.mxu0 0
    %1024 = vmatpush1.bf16.msra.mxu0 0
    %1025 = vmatprep.subr.bf16.mxu0 0
    %1026 = vmatpush1.bf16.msra.mxu0 0
    %1027 = vmatprep.subr.bf16.mxu0 0
    %1028 = vmatpush1.bf16.msra.mxu0 0
    %1029 = vmatprep.subr.bf16.mxu0 0
    %1030 = vmatpush1.bf16.msra.mxu0 0
    %1031 = vmatprep.subr.bf16.mxu0 0
    %1032 = vmatpush1.bf16.msra.mxu0 0
    %1033 = vmatprep.subr.bf16.mxu0 0
    %1034 = vmatpush1.bf16.msra.mxu0 0
    %1035 = vmatprep.subr.bf16.mxu0 0
    %1036 = vmatpush1.bf16.msra.mxu0 0
    %1037 = vmatprep.subr.bf16.mxu0 0
    %1038 = vmatpush1.bf16.msra.mxu0 0
    %1039 = vmatprep.mubr.bf16.mxu0 0
    %1040 = vmatmul.mubr.bf16.gmra.mrb[0].mxu0 %v699
    %v1041 = vpop.f32.mrb[0].mxu0
    %v1042 = vadd.f32 0.0, %v1041
    %v1043 = vpop.f32.mrb[0].mxu0
    %v1044 = vadd.f32 0.0, %v1043
    %v1045 = vpop.f32.mrb[0].mxu0
    %v1046 = vadd.f32 0.0, %v1045
    %v1047 = vpop.f32.mrb[0].mxu0
    %v1048 = vadd.f32 0.0, %v1047
    %1049 = vdwg.mxu0
    %1050 = vmatprep.subr.bf16.mxu0 %v705
    %1051 = vmatpush1.bf16.msra.mxu0 %v704
    %1052 = vmatprep.subr.bf16.mxu0 %v709
    %1053 = vmatpush1.bf16.msra.mxu0 %v708
    %1054 = vmatprep.subr.bf16.mxu0 %v713
    %1055 = vmatpush1.bf16.msra.mxu0 %v712
    %1056 = vmatprep.subr.bf16.mxu0 %v717
    %1057 = vmatpush1.bf16.msra.mxu0 %v716
    %1058 = vmatprep.subr.bf16.mxu0 %v721
    %1059 = vmatpush1.bf16.msra.mxu0 %v720
    %1060 = vmatprep.subr.bf16.mxu0 %v725
    %1061 = vmatpush1.bf16.msra.mxu0 %v724
    %1062 = vmatprep.subr.bf16.mxu0 %v729
    %1063 = vmatpush1.bf16.msra.mxu0 %v728
    %1064 = vmatprep.subr.bf16.mxu0 %v733
    %1065 = vmatpush1.bf16.msra.mxu0 %v732
    %1066 = vmatprep.subr.bf16.mxu0 %v737
    %1067 = vmatpush1.bf16.msra.mxu0 %v736
    %1068 = vmatprep.subr.bf16.mxu0 %v741
    %1069 = vmatpush1.bf16.msra.mxu0 %v740
    %1070 = vmatprep.subr.bf16.mxu0 %v745
    %1071 = vmatpush1.bf16.msra.mxu0 %v744
    %1072 = vmatprep.subr.bf16.mxu0 %v749
    %1073 = vmatpush1.bf16.msra.mxu0 %v748
    %1074 = vmatprep.subr.bf16.mxu0 %v753
    %1075 = vmatpush1.bf16.msra.mxu0 %v752
    %1076 = vmatprep.subr.bf16.mxu0 %v757
    %1077 = vmatpush1.bf16.msra.mxu0 %v756
    %1078 = vmatprep.subr.bf16.mxu0 %v761
    %1079 = vmatpush1.bf16.msra.mxu0 %v760
    %1080 = vmatprep.subr.bf16.mxu0 %v765
    %1081 = vmatpush1.bf16.msra.mxu0 %v764
    %1082 = vmatprep.mubr.bf16.mxu0 %v693
    %1083 = vmatmul.mubr.bf16.gmra.mrb[0].mxu0 %v692
    %v1084 = vpop.f32.mrb[0].mxu0
    %v1085 = vadd.f32 %v999, %v1084
    %v1086 = vpop.f32.mrb[0].mxu0
    %v1087 = vadd.f32 %v1001, %v1086
    %v1088 = vpop.f32.mrb[0].mxu0
    %v1089 = vadd.f32 %v1003, %v1088
    %v1090 = vpop.f32.mrb[0].mxu0
    %v1091 = vadd.f32 %v1005, %v1090
    %1092 = vdwg.mxu0
    %1093 = vmatprep.subr.bf16.mxu0 %v769
    %1094 = vmatpush1.bf16.msra.mxu0 %v768
    %1095 = vmatprep.subr.bf16.mxu0 %v773
    %1096 = vmatpush1.bf16.msra.mxu0 %v772
    %1097 = vmatprep.subr.bf16.mxu0 %v777
    %1098 = vmatpush1.bf16.msra.mxu0 %v776
    %1099 = vmatprep.subr.bf16.mxu0 %v781
    %1100 = vmatpush1.bf16.msra.mxu0 %v780
    %1101 = vmatprep.subr.bf16.mxu0 %v785
    %1102 = vmatpush1.bf16.msra.mxu0 %v784
    %1103 = vmatprep.subr.bf16.mxu0 %v789
    %1104 = vmatpush1.bf16.msra.mxu0 %v788
    %1105 = vmatprep.subr.bf16.mxu0 %v793
    %1106 = vmatpush1.bf16.msra.mxu0 %v792
    %1107 = vmatprep.subr.bf16.mxu0 %v797
    %1108 = vmatpush1.bf16.msra.mxu0 %v796
    %1109 = vmatprep.subr.bf16.mxu0 %v801
    %1110 = vmatpush1.bf16.msra.mxu0 %v800
    %1111 = vmatprep.subr.bf16.mxu0 %v805
    %1112 = vmatpush1.bf16.msra.mxu0 %v804
    %1113 = vmatprep.subr.bf16.mxu0 %v809
    %1114 = vmatpush1.bf16.msra.mxu0 %v808
    %1115 = vmatprep.subr.bf16.mxu0 %v813
    %1116 = vmatpush1.bf16.msra.mxu0 %v812
    %1117 = vmatprep.subr.bf16.mxu0 %v817
    %1118 = vmatpush1.bf16.msra.mxu0 %v816
    %1119 = vmatprep.subr.bf16.mxu0 %v821
    %1120 = vmatpush1.bf16.msra.mxu0 %v820
    %1121 = vmatprep.subr.bf16.mxu0 %v825
    %1122 = vmatpush1.bf16.msra.mxu0 %v824
    %1123 = vmatprep.subr.bf16.mxu0 %v829
    %1124 = vmatpush1.bf16.msra.mxu0 %v828
    %1125 = vmatprep.mubr.bf16.mxu0 %v695
    %1126 = vmatmul.mubr.bf16.gmra.mrb[0].mxu0 %v694
    %v1127 = vpop.f32.mrb[0].mxu0
    %v1128 = vadd.f32 %v1085, %v1127
    %v1129 = vpop.f32.mrb[0].mxu0
    %v1130 = vadd.f32 %v1087, %v1129
    %v1131 = vpop.f32.mrb[0].mxu0
    %v1132 = vadd.f32 %v1089, %v1131
    %v1133 = vpop.f32.mrb[0].mxu0
    %v1134 = vadd.f32 %v1091, %v1133
    %1135 = vdwg.mxu0
    %1136 = vmatprep.subr.bf16.mxu0 %v833
    %1137 = vmatpush1.bf16.msra.mxu0 %v832
    %1138 = vmatprep.subr.bf16.mxu0 %v837
    %1139 = vmatpush1.bf16.msra.mxu0 %v836
    %1140 = vmatprep.subr.bf16.mxu0 %v841
    %1141 = vmatpush1.bf16.msra.mxu0 %v840
    %1142 = vmatprep.subr.bf16.mxu0 %v845
    %1143 = vmatpush1.bf16.msra.mxu0 %v844
    %1144 = vmatprep.subr.bf16.mxu0 %v849
    %1145 = vmatpush1.bf16.msra.mxu0 %v848
    %1146 = vmatprep.subr.bf16.mxu0 %v853
    %1147 = vmatpush1.bf16.msra.mxu0 %v852
    %1148 = vmatprep.subr.bf16.mxu0 %v857
    %1149 = vmatpush1.bf16.msra.mxu0 %v856
    %1150 = vmatprep.subr.bf16.mxu0 %v861
    %1151 = vmatpush1.bf16.msra.mxu0 %v860
    %1152 = vmatprep.subr.bf16.mxu0 %v865
    %1153 = vmatpush1.bf16.msra.mxu0 %v864
    %1154 = vmatprep.subr.bf16.mxu0 %v869
    %1155 = vmatpush1.bf16.msra.mxu0 %v868
    %1156 = vmatprep.subr.bf16.mxu0 %v873
    %1157 = vmatpush1.bf16.msra.mxu0 %v872
    %1158 = vmatprep.subr.bf16.mxu0 %v877
    %1159 = vmatpush1.bf16.msra.mxu0 %v876
    %1160 = vmatprep.subr.bf16.mxu0 %v881
    %1161 = vmatpush1.bf16.msra.mxu0 %v880
    %1162 = vmatprep.subr.bf16.mxu0 %v885
    %1163 = vmatpush1.bf16.msra.mxu0 %v884
    %1164 = vmatprep.subr.bf16.mxu0 %v889
    %1165 = vmatpush1.bf16.msra.mxu0 %v888
    %1166 = vmatprep.subr.bf16.mxu0 %v893
    %1167 = vmatpush1.bf16.msra.mxu0 %v892
    %1168 = vmatprep.mubr.bf16.mxu0 %v697
    %1169 = vmatmul.mubr.bf16.gmra.mrb[0].mxu0 %v696
    %v1170 = vpop.f32.mrb[0].mxu0
    %v1171 = vadd.f32 %v1128, %v1170
    %v1172 = vpop.f32.mrb[0].mxu0
    %v1173 = vadd.f32 %v1130, %v1172
    %v1174 = vpop.f32.mrb[0].mxu0
    %v1175 = vadd.f32 %v1132, %v1174
    %v1176 = vpop.f32.mrb[0].mxu0
    %v1177 = vadd.f32 %v1134, %v1176
    %1178 = vdwg.mxu0
    %1179 = vmatprep.subr.bf16.mxu0 %v897
    %1180 = vmatpush1.bf16.msra.mxu0 %v896
    %1181 = vmatprep.subr.bf16.mxu0 %v901
    %1182 = vmatpush1.bf16.msra.mxu0 %v900
    %1183 = vmatprep.subr.bf16.mxu0 %v905
    %1184 = vmatpush1.bf16.msra.mxu0 %v904
    %1185 = vmatprep.subr.bf16.mxu0 %v909
    %1186 = vmatpush1.bf16.msra.mxu0 %v908
    %1187 = vmatprep.subr.bf16.mxu0 %v913
    %1188 = vmatpush1.bf16.msra.mxu0 %v912
    %1189 = vmatprep.subr.bf16.mxu0 %v917
    %1190 = vmatpush1.bf16.msra.mxu0 %v916
    %1191 = vmatprep.subr.bf16.mxu0 %v921
    %1192 = vmatpush1.bf16.msra.mxu0 %v920
    %1193 = vmatprep.subr.bf16.mxu0 %v925
    %1194 = vmatpush1.bf16.msra.mxu0 %v924
    %1195 = vmatprep.subr.bf16.mxu0 0
    %1196 = vmatpush1.bf16.msra.mxu0 0
    %1197 = vmatprep.subr.bf16.mxu0 0
    %1198 = vmatpush1.bf16.msra.mxu0 0
    %1199 = vmatprep.subr.bf16.mxu0 0
    %1200 = vmatpush1.bf16.msra.mxu0 0
    %1201 = vmatprep.subr.bf16.mxu0 0
    %1202 = vmatpush1.bf16.msra.mxu0 0
    %1203 = vmatprep.subr.bf16.mxu0 0
    %1204 = vmatpush1.bf16.msra.mxu0 0
    %1205 = vmatprep.subr.bf16.mxu0 0
    %1206 = vmatpush1.bf16.msra.mxu0 0
    %1207 = vmatprep.subr.bf16.mxu0 0
    %1208 = vmatpush1.bf16.msra.mxu0 0
    %1209 = vmatprep.subr.bf16.mxu0 0
    %1210 = vmatpush1.bf16.msra.mxu0 0
    %1211 = vmatprep.mubr.bf16.mxu0 0
    %1212 = vmatmul.mubr.bf16.gmra.mrb[0].mxu0 %v698
    %v1213 = vpop.f32.mrb[0].mxu0
    %v1214 = vadd.f32 %v1171, %v1213
    %v1215 = vpop.f32.mrb[0].mxu0
    %v1216 = vadd.f32 %v1173, %v1215
    %v1217 = vpop.f32.mrb[0].mxu0
    %v1218 = vadd.f32 %v1175, %v1217
    %v1219 = vpop.f32.mrb[0].mxu0
    %v1220 = vadd.f32 %v1177, %v1219
    %1221 = vdwg.mxu0
    %1222 = vmatprep.subr.bf16.mxu0 %v707
    %1223 = vmatpush1.bf16.msra.mxu0 %v706
    %1224 = vmatprep.subr.bf16.mxu0 %v711
    %1225 = vmatpush1.bf16.msra.mxu0 %v710
    %1226 = vmatprep.subr.bf16.mxu0 %v715
    %1227 = vmatpush1.bf16.msra.mxu0 %v714
    %1228 = vmatprep.subr.bf16.mxu0 %v719
    %1229 = vmatpush1.bf16.msra.mxu0 %v718
    %1230 = vmatprep.subr.bf16.mxu0 %v723
    %1231 = vmatpush1.bf16.msra.mxu0 %v722
    %1232 = vmatprep.subr.bf16.mxu0 %v727
    %1233 = vmatpush1.bf16.msra.mxu0 %v726
    %1234 = vmatprep.subr.bf16.mxu0 %v731
    %1235 = vmatpush1.bf16.msra.mxu0 %v730
    %1236 = vmatprep.subr.bf16.mxu0 %v735
    %1237 = vmatpush1.bf16.msra.mxu0 %v734
    %1238 = vmatprep.subr.bf16.mxu0 %v739
    %1239 = vmatpush1.bf16.msra.mxu0 %v738
    %1240 = vmatprep.subr.bf16.mxu0 %v743
    %1241 = vmatpush1.bf16.msra.mxu0 %v742
    %1242 = vmatprep.subr.bf16.mxu0 %v747
    %1243 = vmatpush1.bf16.msra.mxu0 %v746
    %1244 = vmatprep.subr.bf16.mxu0 %v751
    %1245 = vmatpush1.bf16.msra.mxu0 %v750
    %1246 = vmatprep.subr.bf16.mxu0 %v755
    %1247 = vmatpush1.bf16.msra.mxu0 %v754
    %1248 = vmatprep.subr.bf16.mxu0 %v759
    %1249 = vmatpush1.bf16.msra.mxu0 %v758
    %1250 = vmatprep.subr.bf16.mxu0 %v763
    %1251 = vmatpush1.bf16.msra.mxu0 %v762
    %1252 = vmatprep.subr.bf16.mxu0 %v767
    %1253 = vmatpush1.bf16.msra.mxu0 %v766
    %1254 = vmatprep.mubr.bf16.mxu0 %v693
    %1255 = vmatmul.mubr.bf16.gmra.mrb[0].mxu0 %v692
    %v1256 = vpop.f32.mrb[0].mxu0
    %v1257 = vadd.f32 %v1042, %v1256
    %v1258 = vpop.f32.mrb[0].mxu0
    %v1259 = vadd.f32 %v1044, %v1258
    %v1260 = vpop.f32.mrb[0].mxu0
    %v1261 = vadd.f32 %v1046, %v1260
    %v1262 = vpop.f32.mrb[0].mxu0
    %v1263 = vadd.f32 %v1048, %v1262
    %1264 = vdwg.mxu0
    %1265 = vmatprep.subr.bf16.mxu0 %v771
    %1266 = vmatpush1.bf16.msra.mxu0 %v770
    %1267 = vmatprep.subr.bf16.mxu0 %v775
    %1268 = vmatpush1.bf16.msra.mxu0 %v774
    %1269 = vmatprep.subr.bf16.mxu0 %v779
    %1270 = vmatpush1.bf16.msra.mxu0 %v778
    %1271 = vmatprep.subr.bf16.mxu0 %v783
    %1272 = vmatpush1.bf16.msra.mxu0 %v782
    %1273 = vmatprep.subr.bf16.mxu0 %v787
    %1274 = vmatpush1.bf16.msra.mxu0 %v786
    %1275 = vmatprep.subr.bf16.mxu0 %v791
    %1276 = vmatpush1.bf16.msra.mxu0 %v790
    %1277 = vmatprep.subr.bf16.mxu0 %v795
    %1278 = vmatpush1.bf16.msra.mxu0 %v794
    %1279 = vmatprep.subr.bf16.mxu0 %v799
    %1280 = vmatpush1.bf16.msra.mxu0 %v798
    %1281 = vmatprep.subr.bf16.mxu0 %v803
    %1282 = vmatpush1.bf16.msra.mxu0 %v802
    %1283 = vmatprep.subr.bf16.mxu0 %v807
    %1284 = vmatpush1.bf16.msra.mxu0 %v806
    %1285 = vmatprep.subr.bf16.mxu0 %v811
    %1286 = vmatpush1.bf16.msra.mxu0 %v810
    %1287 = vmatprep.subr.bf16.mxu0 %v815
    %1288 = vmatpush1.bf16.msra.mxu0 %v814
    %1289 = vmatprep.subr.bf16.mxu0 %v819
    %1290 = vmatpush1.bf16.msra.mxu0 %v818
    %1291 = vmatprep.subr.bf16.mxu0 %v823
    %1292 = vmatpush1.bf16.msra.mxu0 %v822
    %1293 = vmatprep.subr.bf16.mxu0 %v827
    %1294 = vmatpush1.bf16.msra.mxu0 %v826
    %1295 = vmatprep.subr.bf16.mxu0 %v831
    %1296 = vmatpush1.bf16.msra.mxu0 %v830
    %1297 = vmatprep.mubr.bf16.mxu0 %v695
    %1298 = vmatmul.mubr.bf16.gmra.mrb[0].mxu0 %v694
    %v1299 = vpop.f32.mrb[0].mxu0
    %v1300 = vadd.f32 %v1257, %v1299
    %v1301 = vpop.f32.mrb[0].mxu0
    %v1302 = vadd.f32 %v1259, %v1301
    %v1303 = vpop.f32.mrb[0].mxu0
    %v1304 = vadd.f32 %v1261, %v1303
    %v1305 = vpop.f32.mrb[0].mxu0
    %v1306 = vadd.f32 %v1263, %v1305
    %1307 = vdwg.mxu0
    %1308 = vmatprep.subr.bf16.mxu0 %v835
    %1309 = vmatpush1.bf16.msra.mxu0 %v834
    %1310 = vmatprep.subr.bf16.mxu0 %v839
    %1311 = vmatpush1.bf16.msra.mxu0 %v838
    %1312 = vmatprep.subr.bf16.mxu0 %v843
    %1313 = vmatpush1.bf16.msra.mxu0 %v842
    %1314 = vmatprep.subr.bf16.mxu0 %v847
    %1315 = vmatpush1.bf16.msra.mxu0 %v846
    %1316 = vmatprep.subr.bf16.mxu0 %v851
    %1317 = vmatpush1.bf16.msra.mxu0 %v850
    %1318 = vmatprep.subr.bf16.mxu0 %v855
    %1319 = vmatpush1.bf16.msra.mxu0 %v854
    %1320 = vmatprep.subr.bf16.mxu0 %v859
    %1321 = vmatpush1.bf16.msra.mxu0 %v858
    %1322 = vmatprep.subr.bf16.mxu0 %v863
    %1323 = vmatpush1.bf16.msra.mxu0 %v862
    %1324 = vmatprep.subr.bf16.mxu0 %v867
    %1325 = vmatpush1.bf16.msra.mxu0 %v866
    %1326 = vmatprep.subr.bf16.mxu0 %v871
    %1327 = vmatpush1.bf16.msra.mxu0 %v870
    %1328 = vmatprep.subr.bf16.mxu0 %v875
    %1329 = vmatpush1.bf16.msra.mxu0 %v874
    %1330 = vmatprep.subr.bf16.mxu0 %v879
    %1331 = vmatpush1.bf16.msra.mxu0 %v878
    %1332 = vmatprep.subr.bf16.mxu0 %v883
    %1333 = vmatpush1.bf16.msra.mxu0 %v882
    %1334 = vmatprep.subr.bf16.mxu0 %v887
    %1335 = vmatpush1.bf16.msra.mxu0 %v886
    %1336 = vmatprep.subr.bf16.mxu0 %v891
    %1337 = vmatpush1.bf16.msra.mxu0 %v890
    %1338 = vmatprep.subr.bf16.mxu0 %v895
    %1339 = vmatpush1.bf16.msra.mxu0 %v894
    %1340 = vmatprep.mubr.bf16.mxu0 %v697
    %1341 = vmatmul.mubr.bf16.gmra.mrb[0].mxu0 %v696
    %v1342 = vpop.f32.mrb[0].mxu0
    %v1343 = vadd.f32 %v1300, %v1342
    %v1344 = vpop.f32.mrb[0].mxu0
    %v1345 = vadd.f32 %v1302, %v1344
    %v1346 = vpop.f32.mrb[0].mxu0
    %v1347 = vadd.f32 %v1304, %v1346
    %v1348 = vpop.f32.mrb[0].mxu0
    %v1349 = vadd.f32 %v1306, %v1348
    %1350 = vdwg.mxu0
    %1351 = vmatprep.subr.bf16.mxu0 %v899
    %1352 = vmatpush1.bf16.msra.mxu0 %v898
    %1353 = vmatprep.subr.bf16.mxu0 %v903
    %1354 = vmatpush1.bf16.msra.mxu0 %v902
    %1355 = vmatprep.subr.bf16.mxu0 %v907
    %1356 = vmatpush1.bf16.msra.mxu0 %v906
    %1357 = vmatprep.subr.bf16.mxu0 %v911
    %1358 = vmatpush1.bf16.msra.mxu0 %v910
    %1359 = vmatprep.subr.bf16.mxu0 %v915
    %1360 = vmatpush1.bf16.msra.mxu0 %v914
    %1361 = vmatprep.subr.bf16.mxu0 %v919
    %1362 = vmatpush1.bf16.msra.mxu0 %v918
    %1363 = vmatprep.subr.bf16.mxu0 %v923
    %1364 = vmatpush1.bf16.msra.mxu0 %v922
    %1365 = vmatprep.subr.bf16.mxu0 %v927
    %1366 = vmatpush1.bf16.msra.mxu0 %v926
    %1367 = vmatprep.subr.bf16.mxu0 0
    %1368 = vmatpush1.bf16.msra.mxu0 0
    %1369 = vmatprep.subr.bf16.mxu0 0
    %1370 = vmatpush1.bf16.msra.mxu0 0
    %1371 = vmatprep.subr.bf16.mxu0 0
    %1372 = vmatpush1.bf16.msra.mxu0 0
    %1373 = vmatprep.subr.bf16.mxu0 0
    %1374 = vmatpush1.bf16.msra.mxu0 0
    %1375 = vmatprep.subr.bf16.mxu0 0
    %1376 = vmatpush1.bf16.msra.mxu0 0
    %1377 = vmatprep.subr.bf16.mxu0 0
    %1378 = vmatpush1.bf16.msra.mxu0 0
    %1379 = vmatprep.subr.bf16.mxu0 0
    %1380 = vmatpush1.bf16.msra.mxu0 0
    %1381 = vmatprep.subr.bf16.mxu0 0
    %1382 = vmatpush1.bf16.msra.mxu0 0
    %1383 = vmatprep.mubr.bf16.mxu0 0
    %1384 = vmatmul.mubr.bf16.gmra.mrb[0].mxu0 %v698
    %v1385 = vpop.f32.mrb[0].mxu0
    %v1386 = vadd.f32 %v1343, %v1385
    %v1387 = vpop.f32.mrb[0].mxu0
    %v1388 = vadd.f32 %v1345, %v1387
    %v1389 = vpop.f32.mrb[0].mxu0
    %v1390 = vadd.f32 %v1347, %v1389
    %v1391 = vpop.f32.mrb[0].mxu0
    %v1392 = vadd.f32 %v1349, %v1391
    %1393 = vdwg.mxu0
    %v1394 = vld [vmem:[%s3] sm:$0xf]
    %v1396 = vlaneseq
    %v1397 = vshrl.u32 %v1396, 7
    %v1398 = vsub.s32 0, %v1397
    %v1399 = vrot.slane %v1394, %v1398
    %v1400 = vlaneseq
    %v1401 = vshrl.u32 %v1400, 7
    %v1402 = vsub.s32 1, %v1401
    %v1403 = vrot.slane %v1394, %v1402
    %v1404 = vlaneseq
    %v1405 = vshrl.u32 %v1404, 7
    %v1406 = vsub.s32 2, %v1405
    %v1407 = vrot.slane %v1394, %v1406
    %v1408 = vlaneseq
    %v1409 = vshrl.u32 %v1408, 7
    %v1410 = vsub.s32 3, %v1409
    %v1411 = vrot.slane %v1394, %v1410
    %v1416 = vadd.f32 %v1214, %v1399
    %v1417 = vadd.f32 %v1216, %v1403
    %v1418 = vadd.f32 %v1386, %v1407
    %v1419 = vadd.f32 %v1388, %v1411
    %v1420 = vadd.f32 %v1218, %v1399
    %v1421 = vadd.f32 %v1220, %v1403
    %v1422 = vadd.f32 %v1390, %v1407
    %v1423 = vadd.f32 %v1392, %v1411
    %vm1424 = vcmp.gt.f32.partialorder %v1416, 0.0
    %vm1425 = vcmp.gt.f32.partialorder %v1417, 0.0
    %vm1426 = vcmp.gt.f32.partialorder %v1418, 0.0
    %vm1427 = vcmp.gt.f32.partialorder %v1419, 0.0
    %vm1428 = vcmp.gt.f32.partialorder %v1420, 0.0
    %vm1429 = vcmp.gt.f32.partialorder %v1421, 0.0
    %vm1430 = vcmp.gt.f32.partialorder %v1422, 0.0
    %vm1431 = vcmp.gt.f32.partialorder %v1423, 0.0
    %v1432 = vmul.f32 %v1416, 0.2
    %v1433 = vmul.f32 %v1417, 0.2
    %v1434 = vmul.f32 %v1418, 0.2
    %v1435 = vmul.f32 %v1419, 0.2
    %v1436 = vmul.f32 %v1420, 0.2
    %v1437 = vmul.f32 %v1421, 0.2
    %v1438 = vmul.f32 %v1422, 0.2
    %v1439 = vmul.f32 %v1423, 0.2
    %v1440 = vsel %vm1424, %v1416, %v1432
    %v1441 = vsel %vm1425, %v1417, %v1433
    %v1442 = vsel %vm1426, %v1418, %v1434
    %v1443 = vsel %vm1427, %v1419, %v1435
    %v1444 = vsel %vm1428, %v1420, %v1436
    %v1445 = vsel %vm1429, %v1421, %v1437
    %v1446 = vsel %vm1430, %v1422, %v1438
    %v1447 = vsel %vm1431, %v1423, %v1439
    %v1448 = vpack.c.bf16 %v1444, %v1440
    %v1449 = vpack.c.bf16 %v1445, %v1441
    %v1450 = vpack.c.bf16 %v1446, %v1442
    %v1451 = vpack.c.bf16 %v1447, %v1443
    %s1452 = smul.u32 4, 64
    %s1453 = smul.u32 %s1452, 8
    %s1454 = sshll.u32 %s1453, 4
    %1455 = dma.done %s365, %s1454
    %v1456 = vld [vmem:[#allocation4] sm:$0xff]
    %v1457 = vld [vmem:[#allocation4 + $0x8] sm:$0xff]
    %v1458 = vld [vmem:[#allocation4 + $0x10] sm:$0xff]
    %v1459 = vld [vmem:[#allocation4 + $0x18] sm:$0xff]
    %v1460 = vld [vmem:[#allocation4 + $0x20] sm:$0xff]
    %v1461 = vld [vmem:[#allocation4 + $0x28] sm:$0xff]
    %v1462 = vld [vmem:[#allocation4 + $0x30] sm:$0xff]
    %v1463 = vld [vmem:[#allocation4 + $0x38] sm:$0xff]
    %v1464 = vld [vmem:[#allocation4 + $0x40] sm:$0xff]
    %v1465 = vld [vmem:[#allocation4 + $0x48] sm:$0xff]
    %v1466 = vld [vmem:[#allocation4 + $0x50] sm:$0xff]
    %v1467 = vld [vmem:[#allocation4 + $0x58] sm:$0xff]
    %v1468 = vld [vmem:[#allocation4 + $0x60] sm:$0xff]
    %v1469 = vld [vmem:[#allocation4 + $0x68] sm:$0xff]
    %v1470 = vld [vmem:[#allocation4 + $0x70] sm:$0xff]
    %v1471 = vld [vmem:[#allocation4 + $0x78] sm:$0xff]
    %v1472 = vld [vmem:[#allocation4 + $0x80] sm:$0xff]
    %v1473 = vld [vmem:[#allocation4 + $0x88] sm:$0xff]
    %v1474 = vld [vmem:[#allocation4 + $0x90] sm:$0xff]
    %v1475 = vld [vmem:[#allocation4 + $0x98] sm:$0xff]
    %v1476 = vld [vmem:[#allocation4 + $0xa0] sm:$0xff]
    %v1477 = vld [vmem:[#allocation4 + $0xa8] sm:$0xff]
    %v1478 = vld [vmem:[#allocation4 + $0xb0] sm:$0xff]
    %v1479 = vld [vmem:[#allocation4 + $0xb8] sm:$0xff]
    %v1480 = vld [vmem:[#allocation4 + $0xc0] sm:$0xff]
    %v1481 = vld [vmem:[#allocation4 + $0xc8] sm:$0xff]
    %v1482 = vld [vmem:[#allocation4 + $0xd0] sm:$0xff]
    %v1483 = vld [vmem:[#allocation4 + $0xd8] sm:$0xff]
    %v1484 = vld [vmem:[#allocation4 + $0xe0] sm:$0xff]
    %v1485 = vld [vmem:[#allocation4 + $0xe8] sm:$0xff]
    %v1486 = vld [vmem:[#allocation4 + $0xf0] sm:$0xff]
    %v1487 = vld [vmem:[#allocation4 + $0xf8] sm:$0xff]
    %v1488 = vld [vmem:[#allocation4 + $0x100] sm:$0xff]
    %v1489 = vld [vmem:[#allocation4 + $0x108] sm:$0xff]
    %v1490 = vld [vmem:[#allocation4 + $0x110] sm:$0xff]
    %v1491 = vld [vmem:[#allocation4 + $0x118] sm:$0xff]
    %v1492 = vld [vmem:[#allocation4 + $0x120] sm:$0xff]
    %v1493 = vld [vmem:[#allocation4 + $0x128] sm:$0xff]
    %v1494 = vld [vmem:[#allocation4 + $0x130] sm:$0xff]
    %v1495 = vld [vmem:[#allocation4 + $0x138] sm:$0xff]
    %v1496 = vld [vmem:[#allocation4 + $0x140] sm:$0xff]
    %v1497 = vld [vmem:[#allocation4 + $0x148] sm:$0xff]
    %v1498 = vld [vmem:[#allocation4 + $0x150] sm:$0xff]
    %v1499 = vld [vmem:[#allocation4 + $0x158] sm:$0xff]
    %v1500 = vld [vmem:[#allocation4 + $0x160] sm:$0xff]
    %v1501 = vld [vmem:[#allocation4 + $0x168] sm:$0xff]
    %v1502 = vld [vmem:[#allocation4 + $0x170] sm:$0xff]
    %v1503 = vld [vmem:[#allocation4 + $0x178] sm:$0xff]
    %v1504 = vld [vmem:[#allocation4 + $0x180] sm:$0xff]
    %v1505 = vld [vmem:[#allocation4 + $0x188] sm:$0xff]
    %v1506 = vld [vmem:[#allocation4 + $0x190] sm:$0xff]
    %v1507 = vld [vmem:[#allocation4 + $0x198] sm:$0xff]
    %v1508 = vld [vmem:[#allocation4 + $0x1a0] sm:$0xff]
    %v1509 = vld [vmem:[#allocation4 + $0x1a8] sm:$0xff]
    %v1510 = vld [vmem:[#allocation4 + $0x1b0] sm:$0xff]
    %v1511 = vld [vmem:[#allocation4 + $0x1b8] sm:$0xff]
    %v1512 = vld [vmem:[#allocation4 + $0x1c0] sm:$0xff]
    %v1513 = vld [vmem:[#allocation4 + $0x1c8] sm:$0xff]
    %v1514 = vld [vmem:[#allocation4 + $0x1d0] sm:$0xff]
    %v1515 = vld [vmem:[#allocation4 + $0x1d8] sm:$0xff]
    %v1516 = vld [vmem:[#allocation4 + $0x1e0] sm:$0xff]
    %v1517 = vld [vmem:[#allocation4 + $0x1e8] sm:$0xff]
    %v1518 = vld [vmem:[#allocation4 + $0x1f0] sm:$0xff]
    %v1519 = vld [vmem:[#allocation4 + $0x1f8] sm:$0xff]
    %v1520 = vld [vmem:[#allocation4 + $0x200] sm:$0xff]
    %v1521 = vld [vmem:[#allocation4 + $0x208] sm:$0xff]
    %v1522 = vld [vmem:[#allocation4 + $0x210] sm:$0xff]
    %v1523 = vld [vmem:[#allocation4 + $0x218] sm:$0xff]
    %v1524 = vld [vmem:[#allocation4 + $0x220] sm:$0xff]
    %v1525 = vld [vmem:[#allocation4 + $0x228] sm:$0xff]
    %v1526 = vld [vmem:[#allocation4 + $0x230] sm:$0xff]
    %v1527 = vld [vmem:[#allocation4 + $0x238] sm:$0xff]
    %v1528 = vld [vmem:[#allocation4 + $0x240] sm:$0xff]
    %v1529 = vld [vmem:[#allocation4 + $0x248] sm:$0xff]
    %v1530 = vld [vmem:[#allocation4 + $0x250] sm:$0xff]
    %v1531 = vld [vmem:[#allocation4 + $0x258] sm:$0xff]
    %v1532 = vld [vmem:[#allocation4 + $0x260] sm:$0xff]
    %v1533 = vld [vmem:[#allocation4 + $0x268] sm:$0xff]
    %v1534 = vld [vmem:[#allocation4 + $0x270] sm:$0xff]
    %v1535 = vld [vmem:[#allocation4 + $0x278] sm:$0xff]
    %v1536 = vld [vmem:[#allocation4 + $0x280] sm:$0xff]
    %v1537 = vld [vmem:[#allocation4 + $0x288] sm:$0xff]
    %v1538 = vld [vmem:[#allocation4 + $0x290] sm:$0xff]
    %v1539 = vld [vmem:[#allocation4 + $0x298] sm:$0xff]
    %v1540 = vld [vmem:[#allocation4 + $0x2a0] sm:$0xff]
    %v1541 = vld [vmem:[#allocation4 + $0x2a8] sm:$0xff]
    %v1542 = vld [vmem:[#allocation4 + $0x2b0] sm:$0xff]
    %v1543 = vld [vmem:[#allocation4 + $0x2b8] sm:$0xff]
    %v1544 = vld [vmem:[#allocation4 + $0x2c0] sm:$0xff]
    %v1545 = vld [vmem:[#allocation4 + $0x2c8] sm:$0xff]
    %v1546 = vld [vmem:[#allocation4 + $0x2d0] sm:$0xff]
    %v1547 = vld [vmem:[#allocation4 + $0x2d8] sm:$0xff]
    %v1548 = vld [vmem:[#allocation4 + $0x2e0] sm:$0xff]
    %v1549 = vld [vmem:[#allocation4 + $0x2e8] sm:$0xff]
    %v1550 = vld [vmem:[#allocation4 + $0x2f0] sm:$0xff]
    %v1551 = vld [vmem:[#allocation4 + $0x2f8] sm:$0xff]
    %v1552 = vld [vmem:[#allocation4 + $0x300] sm:$0xff]
    %v1553 = vld [vmem:[#allocation4 + $0x308] sm:$0xff]
    %v1554 = vld [vmem:[#allocation4 + $0x310] sm:$0xff]
    %v1555 = vld [vmem:[#allocation4 + $0x318] sm:$0xff]
    %v1556 = vld [vmem:[#allocation4 + $0x320] sm:$0xff]
    %v1557 = vld [vmem:[#allocation4 + $0x328] sm:$0xff]
    %v1558 = vld [vmem:[#allocation4 + $0x330] sm:$0xff]
    %v1559 = vld [vmem:[#allocation4 + $0x338] sm:$0xff]
    %v1560 = vld [vmem:[#allocation4 + $0x340] sm:$0xff]
    %v1561 = vld [vmem:[#allocation4 + $0x348] sm:$0xff]
    %v1562 = vld [vmem:[#allocation4 + $0x350] sm:$0xff]
    %v1563 = vld [vmem:[#allocation4 + $0x358] sm:$0xff]
    %v1564 = vld [vmem:[#allocation4 + $0x360] sm:$0xff]
    %v1565 = vld [vmem:[#allocation4 + $0x368] sm:$0xff]
    %v1566 = vld [vmem:[#allocation4 + $0x370] sm:$0xff]
    %v1567 = vld [vmem:[#allocation4 + $0x378] sm:$0xff]
    %v1568 = vld [vmem:[#allocation4 + $0x380] sm:$0xff]
    %v1569 = vld [vmem:[#allocation4 + $0x388] sm:$0xff]
    %v1570 = vld [vmem:[#allocation4 + $0x390] sm:$0xff]
    %v1571 = vld [vmem:[#allocation4 + $0x398] sm:$0xff]
    %v1572 = vld [vmem:[#allocation4 + $0x3a0] sm:$0xff]
    %v1573 = vld [vmem:[#allocation4 + $0x3a8] sm:$0xff]
    %v1574 = vld [vmem:[#allocation4 + $0x3b0] sm:$0xff]
    %v1575 = vld [vmem:[#allocation4 + $0x3b8] sm:$0xff]
    %v1576 = vld [vmem:[#allocation4 + $0x3c0] sm:$0xff]
    %v1577 = vld [vmem:[#allocation4 + $0x3c8] sm:$0xff]
    %v1578 = vld [vmem:[#allocation4 + $0x3d0] sm:$0xff]
    %v1579 = vld [vmem:[#allocation4 + $0x3d8] sm:$0xff]
    %v1580 = vld [vmem:[#allocation4 + $0x3e0] sm:$0xff]
    %v1581 = vld [vmem:[#allocation4 + $0x3e8] sm:$0xff]
    %v1582 = vld [vmem:[#allocation4 + $0x3f0] sm:$0xff]
    %v1583 = vld [vmem:[#allocation4 + $0x3f8] sm:$0xff]
    %v1584 = vld [vmem:[#allocation4 + $0x400] sm:$0xff]
    %v1585 = vld [vmem:[#allocation4 + $0x408] sm:$0xff]
    %v1586 = vld [vmem:[#allocation4 + $0x410] sm:$0xff]
    %v1587 = vld [vmem:[#allocation4 + $0x418] sm:$0xff]
    %v1588 = vld [vmem:[#allocation4 + $0x420] sm:$0xff]
    %v1589 = vld [vmem:[#allocation4 + $0x428] sm:$0xff]
    %v1590 = vld [vmem:[#allocation4 + $0x430] sm:$0xff]
    %v1591 = vld [vmem:[#allocation4 + $0x438] sm:$0xff]
    %v1592 = vld [vmem:[#allocation4 + $0x440] sm:$0xff]
    %v1593 = vld [vmem:[#allocation4 + $0x448] sm:$0xff]
    %v1594 = vld [vmem:[#allocation4 + $0x450] sm:$0xff]
    %v1595 = vld [vmem:[#allocation4 + $0x458] sm:$0xff]
    %v1596 = vld [vmem:[#allocation4 + $0x460] sm:$0xff]
    %v1597 = vld [vmem:[#allocation4 + $0x468] sm:$0xff]
    %v1598 = vld [vmem:[#allocation4 + $0x470] sm:$0xff]
    %v1599 = vld [vmem:[#allocation4 + $0x478] sm:$0xff]
    %v1600 = vld [vmem:[#allocation4 + $0x480] sm:$0xff]
    %v1601 = vld [vmem:[#allocation4 + $0x488] sm:$0xff]
    %v1602 = vld [vmem:[#allocation4 + $0x490] sm:$0xff]
    %v1603 = vld [vmem:[#allocation4 + $0x498] sm:$0xff]
    %v1604 = vld [vmem:[#allocation4 + $0x4a0] sm:$0xff]
    %v1605 = vld [vmem:[#allocation4 + $0x4a8] sm:$0xff]
    %v1606 = vld [vmem:[#allocation4 + $0x4b0] sm:$0xff]
    %v1607 = vld [vmem:[#allocation4 + $0x4b8] sm:$0xff]
    %v1608 = vld [vmem:[#allocation4 + $0x4c0] sm:$0xff]
    %v1609 = vld [vmem:[#allocation4 + $0x4c8] sm:$0xff]
    %v1610 = vld [vmem:[#allocation4 + $0x4d0] sm:$0xff]
    %v1611 = vld [vmem:[#allocation4 + $0x4d8] sm:$0xff]
    %v1612 = vld [vmem:[#allocation4 + $0x4e0] sm:$0xff]
    %v1613 = vld [vmem:[#allocation4 + $0x4e8] sm:$0xff]
    %v1614 = vld [vmem:[#allocation4 + $0x4f0] sm:$0xff]
    %v1615 = vld [vmem:[#allocation4 + $0x4f8] sm:$0xff]
    %v1616 = vld [vmem:[#allocation4 + $0x500] sm:$0xff]
    %v1617 = vld [vmem:[#allocation4 + $0x508] sm:$0xff]
    %v1618 = vld [vmem:[#allocation4 + $0x510] sm:$0xff]
    %v1619 = vld [vmem:[#allocation4 + $0x518] sm:$0xff]
    %v1620 = vld [vmem:[#allocation4 + $0x520] sm:$0xff]
    %v1621 = vld [vmem:[#allocation4 + $0x528] sm:$0xff]
    %v1622 = vld [vmem:[#allocation4 + $0x530] sm:$0xff]
    %v1623 = vld [vmem:[#allocation4 + $0x538] sm:$0xff]
    %v1624 = vld [vmem:[#allocation4 + $0x540] sm:$0xff]
    %v1625 = vld [vmem:[#allocation4 + $0x548] sm:$0xff]
    %v1626 = vld [vmem:[#allocation4 + $0x550] sm:$0xff]
    %v1627 = vld [vmem:[#allocation4 + $0x558] sm:$0xff]
    %v1628 = vld [vmem:[#allocation4 + $0x560] sm:$0xff]
    %v1629 = vld [vmem:[#allocation4 + $0x568] sm:$0xff]
    %v1630 = vld [vmem:[#allocation4 + $0x570] sm:$0xff]
    %v1631 = vld [vmem:[#allocation4 + $0x578] sm:$0xff]
    %v1632 = vld [vmem:[#allocation4 + $0x580] sm:$0xff]
    %v1633 = vld [vmem:[#allocation4 + $0x588] sm:$0xff]
    %v1634 = vld [vmem:[#allocation4 + $0x590] sm:$0xff]
    %v1635 = vld [vmem:[#allocation4 + $0x598] sm:$0xff]
    %v1636 = vld [vmem:[#allocation4 + $0x5a0] sm:$0xff]
    %v1637 = vld [vmem:[#allocation4 + $0x5a8] sm:$0xff]
    %v1638 = vld [vmem:[#allocation4 + $0x5b0] sm:$0xff]
    %v1639 = vld [vmem:[#allocation4 + $0x5b8] sm:$0xff]
    %v1640 = vld [vmem:[#allocation4 + $0x5c0] sm:$0xff]
    %v1641 = vld [vmem:[#allocation4 + $0x5c8] sm:$0xff]
    %v1642 = vld [vmem:[#allocation4 + $0x5d0] sm:$0xff]
    %v1643 = vld [vmem:[#allocation4 + $0x5d8] sm:$0xff]
    %v1644 = vld [vmem:[#allocation4 + $0x5e0] sm:$0xff]
    %v1645 = vld [vmem:[#allocation4 + $0x5e8] sm:$0xff]
    %v1646 = vld [vmem:[#allocation4 + $0x5f0] sm:$0xff]
    %v1647 = vld [vmem:[#allocation4 + $0x5f8] sm:$0xff]
    %v1648 = vld [vmem:[#allocation4 + $0x600] sm:$0xff]
    %v1649 = vld [vmem:[#allocation4 + $0x608] sm:$0xff]
    %v1650 = vld [vmem:[#allocation4 + $0x610] sm:$0xff]
    %v1651 = vld [vmem:[#allocation4 + $0x618] sm:$0xff]
    %v1652 = vld [vmem:[#allocation4 + $0x620] sm:$0xff]
    %v1653 = vld [vmem:[#allocation4 + $0x628] sm:$0xff]
    %v1654 = vld [vmem:[#allocation4 + $0x630] sm:$0xff]
    %v1655 = vld [vmem:[#allocation4 + $0x638] sm:$0xff]
    %v1656 = vld [vmem:[#allocation4 + $0x640] sm:$0xff]
    %v1657 = vld [vmem:[#allocation4 + $0x648] sm:$0xff]
    %v1658 = vld [vmem:[#allocation4 + $0x650] sm:$0xff]
    %v1659 = vld [vmem:[#allocation4 + $0x658] sm:$0xff]
    %v1660 = vld [vmem:[#allocation4 + $0x660] sm:$0xff]
    %v1661 = vld [vmem:[#allocation4 + $0x668] sm:$0xff]
    %v1662 = vld [vmem:[#allocation4 + $0x670] sm:$0xff]
    %v1663 = vld [vmem:[#allocation4 + $0x678] sm:$0xff]
    %v1664 = vld [vmem:[#allocation4 + $0x680] sm:$0xff]
    %v1665 = vld [vmem:[#allocation4 + $0x688] sm:$0xff]
    %v1666 = vld [vmem:[#allocation4 + $0x690] sm:$0xff]
    %v1667 = vld [vmem:[#allocation4 + $0x698] sm:$0xff]
    %v1668 = vld [vmem:[#allocation4 + $0x6a0] sm:$0xff]
    %v1669 = vld [vmem:[#allocation4 + $0x6a8] sm:$0xff]
    %v1670 = vld [vmem:[#allocation4 + $0x6b0] sm:$0xff]
    %v1671 = vld [vmem:[#allocation4 + $0x6b8] sm:$0xff]
    %v1672 = vld [vmem:[#allocation4 + $0x6c0] sm:$0xff]
    %v1673 = vld [vmem:[#allocation4 + $0x6c8] sm:$0xff]
    %v1674 = vld [vmem:[#allocation4 + $0x6d0] sm:$0xff]
    %v1675 = vld [vmem:[#allocation4 + $0x6d8] sm:$0xff]
    %v1676 = vld [vmem:[#allocation4 + $0x6e0] sm:$0xff]
    %v1677 = vld [vmem:[#allocation4 + $0x6e8] sm:$0xff]
    %v1678 = vld [vmem:[#allocation4 + $0x6f0] sm:$0xff]
    %v1679 = vld [vmem:[#allocation4 + $0x6f8] sm:$0xff]
    %v1680 = vld [vmem:[#allocation4 + $0x700] sm:$0xff]
    %v1681 = vld [vmem:[#allocation4 + $0x708] sm:$0xff]
    %v1682 = vld [vmem:[#allocation4 + $0x710] sm:$0xff]
    %v1683 = vld [vmem:[#allocation4 + $0x718] sm:$0xff]
    %v1684 = vld [vmem:[#allocation4 + $0x720] sm:$0xff]
    %v1685 = vld [vmem:[#allocation4 + $0x728] sm:$0xff]
    %v1686 = vld [vmem:[#allocation4 + $0x730] sm:$0xff]
    %v1687 = vld [vmem:[#allocation4 + $0x738] sm:$0xff]
    %v1688 = vld [vmem:[#allocation4 + $0x740] sm:$0xff]
    %v1689 = vld [vmem:[#allocation4 + $0x748] sm:$0xff]
    %v1690 = vld [vmem:[#allocation4 + $0x750] sm:$0xff]
    %v1691 = vld [vmem:[#allocation4 + $0x758] sm:$0xff]
    %v1692 = vld [vmem:[#allocation4 + $0x760] sm:$0xff]
    %v1693 = vld [vmem:[#allocation4 + $0x768] sm:$0xff]
    %v1694 = vld [vmem:[#allocation4 + $0x770] sm:$0xff]
    %v1695 = vld [vmem:[#allocation4 + $0x778] sm:$0xff]
    %v1696 = vld [vmem:[#allocation4 + $0x780] sm:$0xff]
    %v1697 = vld [vmem:[#allocation4 + $0x788] sm:$0xff]
    %v1698 = vld [vmem:[#allocation4 + $0x790] sm:$0xff]
    %v1699 = vld [vmem:[#allocation4 + $0x798] sm:$0xff]
    %v1700 = vld [vmem:[#allocation4 + $0x7a0] sm:$0xff]
    %v1701 = vld [vmem:[#allocation4 + $0x7a8] sm:$0xff]
    %v1702 = vld [vmem:[#allocation4 + $0x7b0] sm:$0xff]
    %v1703 = vld [vmem:[#allocation4 + $0x7b8] sm:$0xff]
    %v1704 = vld [vmem:[#allocation4 + $0x7c0] sm:$0xff]
    %v1705 = vld [vmem:[#allocation4 + $0x7c8] sm:$0xff]
    %v1706 = vld [vmem:[#allocation4 + $0x7d0] sm:$0xff]
    %v1707 = vld [vmem:[#allocation4 + $0x7d8] sm:$0xff]
    %v1708 = vld [vmem:[#allocation4 + $0x7e0] sm:$0xff]
    %v1709 = vld [vmem:[#allocation4 + $0x7e8] sm:$0xff]
    %v1710 = vld [vmem:[#allocation4 + $0x7f0] sm:$0xff]
    %v1711 = vld [vmem:[#allocation4 + $0x7f8] sm:$0xff]
    %v1712 = vld [vmem:[%s3 + $0x4] sm:$0xff]
    %v1714 = vlaneseq
    %v1715 = vshrl.u32 %v1714, 7
    %v1716 = vsub.s32 0, %v1715
    %v1717 = vrot.slane %v1712, %v1716
    %v1718 = vlaneseq
    %v1719 = vshrl.u32 %v1718, 7
    %v1720 = vsub.s32 1, %v1719
    %v1721 = vrot.slane %v1712, %v1720
    %v1722 = vlaneseq
    %v1723 = vshrl.u32 %v1722, 7
    %v1724 = vsub.s32 2, %v1723
    %v1725 = vrot.slane %v1712, %v1724
    %v1726 = vlaneseq
    %v1727 = vshrl.u32 %v1726, 7
    %v1728 = vsub.s32 3, %v1727
    %v1729 = vrot.slane %v1712, %v1728
    %v1730 = vlaneseq
    %v1731 = vshrl.u32 %v1730, 7
    %v1732 = vsub.s32 4, %v1731
    %v1733 = vrot.slane %v1712, %v1732
    %v1734 = vlaneseq
    %v1735 = vshrl.u32 %v1734, 7
    %v1736 = vsub.s32 5, %v1735
    %v1737 = vrot.slane %v1712, %v1736
    %v1738 = vlaneseq
    %v1739 = vshrl.u32 %v1738, 7
    %v1740 = vsub.s32 6, %v1739
    %v1741 = vrot.slane %v1712, %v1740
    %v1742 = vlaneseq
    %v1743 = vshrl.u32 %v1742, 7
    %v1744 = vsub.s32 7, %v1743
    %v1745 = vrot.slane %v1712, %v1744
    %1754 = vmatprep.subr.bf16.mxu0 %v1457
    %1755 = vmatpush1.bf16.msra.mxu0 %v1456
    %1756 = vmatprep.subr.bf16.mxu0 %v1465
    %1757 = vmatpush1.bf16.msra.mxu0 %v1464
    %1758 = vmatprep.subr.bf16.mxu0 %v1473
    %1759 = vmatpush1.bf16.msra.mxu0 %v1472
    %1760 = vmatprep.subr.bf16.mxu0 %v1481
    %1761 = vmatpush1.bf16.msra.mxu0 %v1480
    %1762 = vmatprep.subr.bf16.mxu0 %v1489
    %1763 = vmatpush1.bf16.msra.mxu0 %v1488
    %1764 = vmatprep.subr.bf16.mxu0 %v1497
    %1765 = vmatpush1.bf16.msra.mxu0 %v1496
    %1766 = vmatprep.subr.bf16.mxu0 %v1505
    %1767 = vmatpush1.bf16.msra.mxu0 %v1504
    %1768 = vmatprep.subr.bf16.mxu0 %v1513
    %1769 = vmatpush1.bf16.msra.mxu0 %v1512
    %1770 = vmatprep.subr.bf16.mxu0 %v1521
    %1771 = vmatpush1.bf16.msra.mxu0 %v1520
    %1772 = vmatprep.subr.bf16.mxu0 %v1529
    %1773 = vmatpush1.bf16.msra.mxu0 %v1528
    %1774 = vmatprep.subr.bf16.mxu0 %v1537
    %1775 = vmatpush1.bf16.msra.mxu0 %v1536
    %1776 = vmatprep.subr.bf16.mxu0 %v1545
    %1777 = vmatpush1.bf16.msra.mxu0 %v1544
    %1778 = vmatprep.subr.bf16.mxu0 %v1553
    %1779 = vmatpush1.bf16.msra.mxu0 %v1552
    %1780 = vmatprep.subr.bf16.mxu0 %v1561
    %1781 = vmatpush1.bf16.msra.mxu0 %v1560
    %1782 = vmatprep.subr.bf16.mxu0 %v1569
    %1783 = vmatpush1.bf16.msra.mxu0 %v1568
    %1784 = vmatprep.subr.bf16.mxu0 %v1577
    %1785 = vmatpush1.bf16.msra.mxu0 %v1576
    %1786 = vmatprep.mubr.bf16.mxu0 %v1449
    %1787 = vmatmul.mubr.bf16.gmra.mrb[0].mxu0 %v1448
    %v1788 = vpop.f32.mrb[0].mxu0
    %v1789 = vadd.f32 %v1717, %v1788
    %v1790 = vpop.f32.mrb[0].mxu0
    %v1791 = vadd.f32 %v1721, %v1790
    %v1792 = vpop.f32.mrb[0].mxu0
    %v1793 = vadd.f32 %v1717, %v1792
    %v1794 = vpop.f32.mrb[0].mxu0
    %v1795 = vadd.f32 %v1721, %v1794
    %1796 = vdwg.mxu0
    %1797 = vmatprep.subr.bf16.mxu0 %v1585
    %1798 = vmatpush1.bf16.msra.mxu0 %v1584
    %1799 = vmatprep.subr.bf16.mxu0 %v1593
    %1800 = vmatpush1.bf16.msra.mxu0 %v1592
    %1801 = vmatprep.subr.bf16.mxu0 %v1601
    %1802 = vmatpush1.bf16.msra.mxu0 %v1600
    %1803 = vmatprep.subr.bf16.mxu0 %v1609
    %1804 = vmatpush1.bf16.msra.mxu0 %v1608
    %1805 = vmatprep.subr.bf16.mxu0 %v1617
    %1806 = vmatpush1.bf16.msra.mxu0 %v1616
    %1807 = vmatprep.subr.bf16.mxu0 %v1625
    %1808 = vmatpush1.bf16.msra.mxu0 %v1624
    %1809 = vmatprep.subr.bf16.mxu0 %v1633
    %1810 = vmatpush1.bf16.msra.mxu0 %v1632
    %1811 = vmatprep.subr.bf16.mxu0 %v1641
    %1812 = vmatpush1.bf16.msra.mxu0 %v1640
    %1813 = vmatprep.subr.bf16.mxu0 %v1649
    %1814 = vmatpush1.bf16.msra.mxu0 %v1648
    %1815 = vmatprep.subr.bf16.mxu0 %v1657
    %1816 = vmatpush1.bf16.msra.mxu0 %v1656
    %1817 = vmatprep.subr.bf16.mxu0 %v1665
    %1818 = vmatpush1.bf16.msra.mxu0 %v1664
    %1819 = vmatprep.subr.bf16.mxu0 %v1673
    %1820 = vmatpush1.bf16.msra.mxu0 %v1672
    %1821 = vmatprep.subr.bf16.mxu0 %v1681
    %1822 = vmatpush1.bf16.msra.mxu0 %v1680
    %1823 = vmatprep.subr.bf16.mxu0 %v1689
    %1824 = vmatpush1.bf16.msra.mxu0 %v1688
    %1825 = vmatprep.subr.bf16.mxu0 %v1697
    %1826 = vmatpush1.bf16.msra.mxu0 %v1696
    %1827 = vmatprep.subr.bf16.mxu0 %v1705
    %1828 = vmatpush1.bf16.msra.mxu0 %v1704
    %1829 = vmatprep.mubr.bf16.mxu0 %v1451
    %1830 = vmatmul.mubr.bf16.gmra.mrb[0].mxu0 %v1450
    %v1831 = vpop.f32.mrb[0].mxu0
    %v1832 = vadd.f32 %v1789, %v1831
    %v1833 = vpop.f32.mrb[0].mxu0
    %v1834 = vadd.f32 %v1791, %v1833
    %v1835 = vpop.f32.mrb[0].mxu0
    %v1836 = vadd.f32 %v1793, %v1835
    %v1837 = vpop.f32.mrb[0].mxu0
    %v1838 = vadd.f32 %v1795, %v1837
    %1839 = vdwg.mxu0
    %1840 = vmatprep.subr.bf16.mxu0 %v1459
    %1841 = vmatpush1.bf16.msra.mxu0 %v1458
    %1842 = vmatprep.subr.bf16.mxu0 %v1467
    %1843 = vmatpush1.bf16.msra.mxu0 %v1466
    %1844 = vmatprep.subr.bf16.mxu0 %v1475
    %1845 = vmatpush1.bf16.msra.mxu0 %v1474
    %1846 = vmatprep.subr.bf16.mxu0 %v1483
    %1847 = vmatpush1.bf16.msra.mxu0 %v1482
    %1848 = vmatprep.subr.bf16.mxu0 %v1491
    %1849 = vmatpush1.bf16.msra.mxu0 %v1490
    %1850 = vmatprep.subr.bf16.mxu0 %v1499
    %1851 = vmatpush1.bf16.msra.mxu0 %v1498
    %1852 = vmatprep.subr.bf16.mxu0 %v1507
    %1853 = vmatpush1.bf16.msra.mxu0 %v1506
    %1854 = vmatprep.subr.bf16.mxu0 %v1515
    %1855 = vmatpush1.bf16.msra.mxu0 %v1514
    %1856 = vmatprep.subr.bf16.mxu0 %v1523
    %1857 = vmatpush1.bf16.msra.mxu0 %v1522
    %1858 = vmatprep.subr.bf16.mxu0 %v1531
    %1859 = vmatpush1.bf16.msra.mxu0 %v1530
    %1860 = vmatprep.subr.bf16.mxu0 %v1539
    %1861 = vmatpush1.bf16.msra.mxu0 %v1538
    %1862 = vmatprep.subr.bf16.mxu0 %v1547
    %1863 = vmatpush1.bf16.msra.mxu0 %v1546
    %1864 = vmatprep.subr.bf16.mxu0 %v1555
    %1865 = vmatpush1.bf16.msra.mxu0 %v1554
    %1866 = vmatprep.subr.bf16.mxu0 %v1563
    %1867 = vmatpush1.bf16.msra.mxu0 %v1562
    %1868 = vmatprep.subr.bf16.mxu0 %v1571
    %1869 = vmatpush1.bf16.msra.mxu0 %v1570
    %1870 = vmatprep.subr.bf16.mxu0 %v1579
    %1871 = vmatpush1.bf16.msra.mxu0 %v1578
    %1872 = vmatprep.mubr.bf16.mxu0 %v1449
    %1873 = vmatmul.mubr.bf16.gmra.mrb[0].mxu0 %v1448
    %v1874 = vpop.f32.mrb[0].mxu0
    %v1875 = vadd.f32 %v1725, %v1874
    %v1876 = vpop.f32.mrb[0].mxu0
    %v1877 = vadd.f32 %v1729, %v1876
    %v1878 = vpop.f32.mrb[0].mxu0
    %v1879 = vadd.f32 %v1725, %v1878
    %v1880 = vpop.f32.mrb[0].mxu0
    %v1881 = vadd.f32 %v1729, %v1880
    %1882 = vdwg.mxu0
    %1883 = vmatprep.subr.bf16.mxu0 %v1587
    %1884 = vmatpush1.bf16.msra.mxu0 %v1586
    %1885 = vmatprep.subr.bf16.mxu0 %v1595
    %1886 = vmatpush1.bf16.msra.mxu0 %v1594
    %1887 = vmatprep.subr.bf16.mxu0 %v1603
    %1888 = vmatpush1.bf16.msra.mxu0 %v1602
    %1889 = vmatprep.subr.bf16.mxu0 %v1611
    %1890 = vmatpush1.bf16.msra.mxu0 %v1610
    %1891 = vmatprep.subr.bf16.mxu0 %v1619
    %1892 = vmatpush1.bf16.msra.mxu0 %v1618
    %1893 = vmatprep.subr.bf16.mxu0 %v1627
    %1894 = vmatpush1.bf16.msra.mxu0 %v1626
    %1895 = vmatprep.subr.bf16.mxu0 %v1635
    %1896 = vmatpush1.bf16.msra.mxu0 %v1634
    %1897 = vmatprep.subr.bf16.mxu0 %v1643
    %1898 = vmatpush1.bf16.msra.mxu0 %v1642
    %1899 = vmatprep.subr.bf16.mxu0 %v1651
    %1900 = vmatpush1.bf16.msra.mxu0 %v1650
    %1901 = vmatprep.subr.bf16.mxu0 %v1659
    %1902 = vmatpush1.bf16.msra.mxu0 %v1658
    %1903 = vmatprep.subr.bf16.mxu0 %v1667
    %1904 = vmatpush1.bf16.msra.mxu0 %v1666
    %1905 = vmatprep.subr.bf16.mxu0 %v1675
    %1906 = vmatpush1.bf16.msra.mxu0 %v1674
    %1907 = vmatprep.subr.bf16.mxu0 %v1683
    %1908 = vmatpush1.bf16.msra.mxu0 %v1682
    %1909 = vmatprep.subr.bf16.mxu0 %v1691
    %1910 = vmatpush1.bf16.msra.mxu0 %v1690
    %1911 = vmatprep.subr.bf16.mxu0 %v1699
    %1912 = vmatpush1.bf16.msra.mxu0 %v1698
    %1913 = vmatprep.subr.bf16.mxu0 %v1707
    %1914 = vmatpush1.bf16.msra.mxu0 %v1706
    %1915 = vmatprep.mubr.bf16.mxu0 %v1451
    %1916 = vmatmul.mubr.bf16.gmra.mrb[0].mxu0 %v1450
    %v1917 = vpop.f32.mrb[0].mxu0
    %v1918 = vadd.f32 %v1875, %v1917
    %v1919 = vpop.f32.mrb[0].mxu0
    %v1920 = vadd.f32 %v1877, %v1919
    %v1921 = vpop.f32.mrb[0].mxu0
    %v1922 = vadd.f32 %v1879, %v1921
    %v1923 = vpop.f32.mrb[0].mxu0
    %v1924 = vadd.f32 %v1881, %v1923
    %1925 = vdwg.mxu0
    %1926 = vmatprep.subr.bf16.mxu0 %v1461
    %1927 = vmatpush1.bf16.msra.mxu0 %v1460
    %1928 = vmatprep.subr.bf16.mxu0 %v1469
    %1929 = vmatpush1.bf16.msra.mxu0 %v1468
    %1930 = vmatprep.subr.bf16.mxu0 %v1477
    %1931 = vmatpush1.bf16.msra.mxu0 %v1476
    %1932 = vmatprep.subr.bf16.mxu0 %v1485
    %1933 = vmatpush1.bf16.msra.mxu0 %v1484
    %1934 = vmatprep.subr.bf16.mxu0 %v1493
    %1935 = vmatpush1.bf16.msra.mxu0 %v1492
    %1936 = vmatprep.subr.bf16.mxu0 %v1501
    %1937 = vmatpush1.bf16.msra.mxu0 %v1500
    %1938 = vmatprep.subr.bf16.mxu0 %v1509
    %1939 = vmatpush1.bf16.msra.mxu0 %v1508
    %1940 = vmatprep.subr.bf16.mxu0 %v1517
    %1941 = vmatpush1.bf16.msra.mxu0 %v1516
    %1942 = vmatprep.subr.bf16.mxu0 %v1525
    %1943 = vmatpush1.bf16.msra.mxu0 %v1524
    %1944 = vmatprep.subr.bf16.mxu0 %v1533
    %1945 = vmatpush1.bf16.msra.mxu0 %v1532
    %1946 = vmatprep.subr.bf16.mxu0 %v1541
    %1947 = vmatpush1.bf16.msra.mxu0 %v1540
    %1948 = vmatprep.subr.bf16.mxu0 %v1549
    %1949 = vmatpush1.bf16.msra.mxu0 %v1548
    %1950 = vmatprep.subr.bf16.mxu0 %v1557
    %1951 = vmatpush1.bf16.msra.mxu0 %v1556
    %1952 = vmatprep.subr.bf16.mxu0 %v1565
    %1953 = vmatpush1.bf16.msra.mxu0 %v1564
    %1954 = vmatprep.subr.bf16.mxu0 %v1573
    %1955 = vmatpush1.bf16.msra.mxu0 %v1572
    %1956 = vmatprep.subr.bf16.mxu0 %v1581
    %1957 = vmatpush1.bf16.msra.mxu0 %v1580
    %1958 = vmatprep.mubr.bf16.mxu0 %v1449
    %1959 = vmatmul.mubr.bf16.gmra.mrb[0].mxu0 %v1448
    %v1960 = vpop.f32.mrb[0].mxu0
    %v1961 = vadd.f32 %v1733, %v1960
    %v1962 = vpop.f32.mrb[0].mxu0
    %v1963 = vadd.f32 %v1737, %v1962
    %v1964 = vpop.f32.mrb[0].mxu0
    %v1965 = vadd.f32 %v1733, %v1964
    %v1966 = vpop.f32.mrb[0].mxu0
    %v1967 = vadd.f32 %v1737, %v1966
    %1968 = vdwg.mxu0
    %1969 = vmatprep.subr.bf16.mxu0 %v1589
    %1970 = vmatpush1.bf16.msra.mxu0 %v1588
    %1971 = vmatprep.subr.bf16.mxu0 %v1597
    %1972 = vmatpush1.bf16.msra.mxu0 %v1596
    %1973 = vmatprep.subr.bf16.mxu0 %v1605
    %1974 = vmatpush1.bf16.msra.mxu0 %v1604
    %1975 = vmatprep.subr.bf16.mxu0 %v1613
    %1976 = vmatpush1.bf16.msra.mxu0 %v1612
    %1977 = vmatprep.subr.bf16.mxu0 %v1621
    %1978 = vmatpush1.bf16.msra.mxu0 %v1620
    %1979 = vmatprep.subr.bf16.mxu0 %v1629
    %1980 = vmatpush1.bf16.msra.mxu0 %v1628
    %1981 = vmatprep.subr.bf16.mxu0 %v1637
    %1982 = vmatpush1.bf16.msra.mxu0 %v1636
    %1983 = vmatprep.subr.bf16.mxu0 %v1645
    %1984 = vmatpush1.bf16.msra.mxu0 %v1644
    %1985 = vmatprep.subr.bf16.mxu0 %v1653
    %1986 = vmatpush1.bf16.msra.mxu0 %v1652
    %1987 = vmatprep.subr.bf16.mxu0 %v1661
    %1988 = vmatpush1.bf16.msra.mxu0 %v1660
    %1989 = vmatprep.subr.bf16.mxu0 %v1669
    %1990 = vmatpush1.bf16.msra.mxu0 %v1668
    %1991 = vmatprep.subr.bf16.mxu0 %v1677
    %1992 = vmatpush1.bf16.msra.mxu0 %v1676
    %1993 = vmatprep.subr.bf16.mxu0 %v1685
    %1994 = vmatpush1.bf16.msra.mxu0 %v1684
    %1995 = vmatprep.subr.bf16.mxu0 %v1693
    %1996 = vmatpush1.bf16.msra.mxu0 %v1692
    %1997 = vmatprep.subr.bf16.mxu0 %v1701
    %1998 = vmatpush1.bf16.msra.mxu0 %v1700
    %1999 = vmatprep.subr.bf16.mxu0 %v1709
    %2000 = vmatpush1.bf16.msra.mxu0 %v1708
    %2001 = vmatprep.mubr.bf16.mxu0 %v1451
    %2002 = vmatmul.mubr.bf16.gmra.mrb[0].mxu0 %v1450
    %v2003 = vpop.f32.mrb[0].mxu0
    %v2004 = vadd.f32 %v1961, %v2003
    %v2005 = vpop.f32.mrb[0].mxu0
    %v2006 = vadd.f32 %v1963, %v2005
    %v2007 = vpop.f32.mrb[0].mxu0
    %v2008 = vadd.f32 %v1965, %v2007
    %v2009 = vpop.f32.mrb[0].mxu0
    %v2010 = vadd.f32 %v1967, %v2009
    %2011 = vdwg.mxu0
    %2012 = vmatprep.subr.bf16.mxu0 %v1463
    %2013 = vmatpush1.bf16.msra.mxu0 %v1462
    %2014 = vmatprep.subr.bf16.mxu0 %v1471
    %2015 = vmatpush1.bf16.msra.mxu0 %v1470
    %2016 = vmatprep.subr.bf16.mxu0 %v1479
    %2017 = vmatpush1.bf16.msra.mxu0 %v1478
    %2018 = vmatprep.subr.bf16.mxu0 %v1487
    %2019 = vmatpush1.bf16.msra.mxu0 %v1486
    %2020 = vmatprep.subr.bf16.mxu0 %v1495
    %2021 = vmatpush1.bf16.msra.mxu0 %v1494
    %2022 = vmatprep.subr.bf16.mxu0 %v1503
    %2023 = vmatpush1.bf16.msra.mxu0 %v1502
    %2024 = vmatprep.subr.bf16.mxu0 %v1511
    %2025 = vmatpush1.bf16.msra.mxu0 %v1510
    %2026 = vmatprep.subr.bf16.mxu0 %v1519
    %2027 = vmatpush1.bf16.msra.mxu0 %v1518
    %2028 = vmatprep.subr.bf16.mxu0 %v1527
    %2029 = vmatpush1.bf16.msra.mxu0 %v1526
    %2030 = vmatprep.subr.bf16.mxu0 %v1535
    %2031 = vmatpush1.bf16.msra.mxu0 %v1534
    %2032 = vmatprep.subr.bf16.mxu0 %v1543
    %2033 = vmatpush1.bf16.msra.mxu0 %v1542
    %2034 = vmatprep.subr.bf16.mxu0 %v1551
    %2035 = vmatpush1.bf16.msra.mxu0 %v1550
    %2036 = vmatprep.subr.bf16.mxu0 %v1559
    %2037 = vmatpush1.bf16.msra.mxu0 %v1558
    %2038 = vmatprep.subr.bf16.mxu0 %v1567
    %2039 = vmatpush1.bf16.msra.mxu0 %v1566
    %2040 = vmatprep.subr.bf16.mxu0 %v1575
    %2041 = vmatpush1.bf16.msra.mxu0 %v1574
    %2042 = vmatprep.subr.bf16.mxu0 %v1583
    %2043 = vmatpush1.bf16.msra.mxu0 %v1582
    %2044 = vmatprep.mubr.bf16.mxu0 %v1449
    %2045 = vmatmul.mubr.bf16.gmra.mrb[0].mxu0 %v1448
    %v2046 = vpop.f32.mrb[0].mxu0
    %v2047 = vadd.f32 %v1741, %v2046
    %v2048 = vpop.f32.mrb[0].mxu0
    %v2049 = vadd.f32 %v1745, %v2048
    %v2050 = vpop.f32.mrb[0].mxu0
    %v2051 = vadd.f32 %v1741, %v2050
    %v2052 = vpop.f32.mrb[0].mxu0
    %v2053 = vadd.f32 %v1745, %v2052
    %2054 = vdwg.mxu0
    %2055 = vmatprep.subr.bf16.mxu0 %v1591
    %2056 = vmatpush1.bf16.msra.mxu0 %v1590
    %2057 = vmatprep.subr.bf16.mxu0 %v1599
    %2058 = vmatpush1.bf16.msra.mxu0 %v1598
    %2059 = vmatprep.subr.bf16.mxu0 %v1607
    %2060 = vmatpush1.bf16.msra.mxu0 %v1606
    %2061 = vmatprep.subr.bf16.mxu0 %v1615
    %2062 = vmatpush1.bf16.msra.mxu0 %v1614
    %2063 = vmatprep.subr.bf16.mxu0 %v1623
    %2064 = vmatpush1.bf16.msra.mxu0 %v1622
    %2065 = vmatprep.subr.bf16.mxu0 %v1631
    %2066 = vmatpush1.bf16.msra.mxu0 %v1630
    %2067 = vmatprep.subr.bf16.mxu0 %v1639
    %2068 = vmatpush1.bf16.msra.mxu0 %v1638
    %2069 = vmatprep.subr.bf16.mxu0 %v1647
    %2070 = vmatpush1.bf16.msra.mxu0 %v1646
    %2071 = vmatprep.subr.bf16.mxu0 %v1655
    %2072 = vmatpush1.bf16.msra.mxu0 %v1654
    %2073 = vmatprep.subr.bf16.mxu0 %v1663
    %2074 = vmatpush1.bf16.msra.mxu0 %v1662
    %2075 = vmatprep.subr.bf16.mxu0 %v1671
    %2076 = vmatpush1.bf16.msra.mxu0 %v1670
    %2077 = vmatprep.subr.bf16.mxu0 %v1679
    %2078 = vmatpush1.bf16.msra.mxu0 %v1678
    %2079 = vmatprep.subr.bf16.mxu0 %v1687
    %2080 = vmatpush1.bf16.msra.mxu0 %v1686
    %2081 = vmatprep.subr.bf16.mxu0 %v1695
    %2082 = vmatpush1.bf16.msra.mxu0 %v1694
    %2083 = vmatprep.subr.bf16.mxu0 %v1703
    %2084 = vmatpush1.bf16.msra.mxu0 %v1702
    %2085 = vmatprep.subr.bf16.mxu0 %v1711
    %2086 = vmatpush1.bf16.msra.mxu0 %v1710
    %2087 = vmatprep.mubr.bf16.mxu0 %v1451
    %2088 = vmatmul.mubr.bf16.gmra.mrb[0].mxu0 %v1450
    %v2089 = vpop.f32.mrb[0].mxu0
    %v2090 = vadd.f32 %v2047, %v2089
    %v2091 = vpop.f32.mrb[0].mxu0
    %v2092 = vadd.f32 %v2049, %v2091
    %v2093 = vpop.f32.mrb[0].mxu0
    %v2094 = vadd.f32 %v2051, %v2093
    %v2095 = vpop.f32.mrb[0].mxu0
    %v2096 = vadd.f32 %v2053, %v2095
    %2097 = vdwg.mxu0
    %vm2098 = vcmp.gt.f32.partialorder %v1832, 0.0
    %vm2099 = vcmp.gt.f32.partialorder %v1834, 0.0
    %vm2100 = vcmp.gt.f32.partialorder %v1918, 0.0
    %vm2101 = vcmp.gt.f32.partialorder %v1920, 0.0
    %vm2102 = vcmp.gt.f32.partialorder %v2004, 0.0
    %vm2103 = vcmp.gt.f32.partialorder %v2006, 0.0
    %vm2104 = vcmp.gt.f32.partialorder %v2090, 0.0
    %vm2105 = vcmp.gt.f32.partialorder %v2092, 0.0
    %vm2106 = vcmp.gt.f32.partialorder %v1836, 0.0
    %vm2107 = vcmp.gt.f32.partialorder %v1838, 0.0
    %vm2108 = vcmp.gt.f32.partialorder %v1922, 0.0
    %vm2109 = vcmp.gt.f32.partialorder %v1924, 0.0
    %vm2110 = vcmp.gt.f32.partialorder %v2008, 0.0
    %vm2111 = vcmp.gt.f32.partialorder %v2010, 0.0
    %vm2112 = vcmp.gt.f32.partialorder %v2094, 0.0
    %vm2113 = vcmp.gt.f32.partialorder %v2096, 0.0
    %v2114 = vmul.f32 %v1832, 0.2
    %v2115 = vmul.f32 %v1834, 0.2
    %v2116 = vmul.f32 %v1918, 0.2
    %v2117 = vmul.f32 %v1920, 0.2
    %v2118 = vmul.f32 %v2004, 0.2
    %v2119 = vmul.f32 %v2006, 0.2
    %v2120 = vmul.f32 %v2090, 0.2
    %v2121 = vmul.f32 %v2092, 0.2
    %v2122 = vmul.f32 %v1836, 0.2
    %v2123 = vmul.f32 %v1838, 0.2
    %v2124 = vmul.f32 %v1922, 0.2
    %v2125 = vmul.f32 %v1924, 0.2
    %v2126 = vmul.f32 %v2008, 0.2
    %v2127 = vmul.f32 %v2010, 0.2
    %v2128 = vmul.f32 %v2094, 0.2
    %v2129 = vmul.f32 %v2096, 0.2
    %v2130 = vsel %vm2098, %v1832, %v2114
    %v2131 = vsel %vm2099, %v1834, %v2115
    %v2132 = vsel %vm2100, %v1918, %v2116
    %v2133 = vsel %vm2101, %v1920, %v2117
    %v2134 = vsel %vm2102, %v2004, %v2118
    %v2135 = vsel %vm2103, %v2006, %v2119
    %v2136 = vsel %vm2104, %v2090, %v2120
    %v2137 = vsel %vm2105, %v2092, %v2121
    %v2138 = vsel %vm2106, %v1836, %v2122
    %v2139 = vsel %vm2107, %v1838, %v2123
    %v2140 = vsel %vm2108, %v1922, %v2124
    %v2141 = vsel %vm2109, %v1924, %v2125
    %v2142 = vsel %vm2110, %v2008, %v2126
    %v2143 = vsel %vm2111, %v2010, %v2127
    %v2144 = vsel %vm2112, %v2094, %v2128
    %v2145 = vsel %vm2113, %v2096, %v2129
    %v2146 = vpack.c.bf16 %v2138, %v2130
    %v2147 = vpack.c.bf16 %v2139, %v2131
    %v2148 = vpack.c.bf16 %v2140, %v2132
    %v2149 = vpack.c.bf16 %v2141, %v2133
    %v2150 = vpack.c.bf16 %v2142, %v2134
    %v2151 = vpack.c.bf16 %v2143, %v2135
    %v2152 = vpack.c.bf16 %v2144, %v2136
    %v2153 = vpack.c.bf16 %v2145, %v2137
    %s2154 = smul.u32 4, 128
    %s2155 = smul.u32 %s2154, 4
    %s2156 = sshll.u32 %s2155, 4
    %2157 = dma.done %s400, %s2156
    %v2158 = vld [vmem:[#allocation5] sm:$0xff]
    %v2159 = vld [vmem:[#allocation5 + $0x8] sm:$0xff]
    %v2160 = vld [vmem:[#allocation5 + $0x10] sm:$0xff]
    %v2161 = vld [vmem:[#allocation5 + $0x18] sm:$0xff]
    %v2162 = vld [vmem:[#allocation5 + $0x20] sm:$0xff]
    %v2163 = vld [vmem:[#allocation5 + $0x28] sm:$0xff]
    %v2164 = vld [vmem:[#allocation5 + $0x30] sm:$0xff]
    %v2165 = vld [vmem:[#allocation5 + $0x38] sm:$0xff]
    %v2166 = vld [vmem:[#allocation5 + $0x40] sm:$0xff]
    %v2167 = vld [vmem:[#allocation5 + $0x48] sm:$0xff]
    %v2168 = vld [vmem:[#allocation5 + $0x50] sm:$0xff]
    %v2169 = vld [vmem:[#allocation5 + $0x58] sm:$0xff]
    %v2170 = vld [vmem:[#allocation5 + $0x60] sm:$0xff]
    %v2171 = vld [vmem:[#allocation5 + $0x68] sm:$0xff]
    %v2172 = vld [vmem:[#allocation5 + $0x70] sm:$0xff]
    %v2173 = vld [vmem:[#allocation5 + $0x78] sm:$0xff]
    %v2174 = vld [vmem:[#allocation5 + $0x80] sm:$0xff]
    %v2175 = vld [vmem:[#allocation5 + $0x88] sm:$0xff]
    %v2176 = vld [vmem:[#allocation5 + $0x90] sm:$0xff]
    %v2177 = vld [vmem:[#allocation5 + $0x98] sm:$0xff]
    %v2178 = vld [vmem:[#allocation5 + $0xa0] sm:$0xff]
    %v2179 = vld [vmem:[#allocation5 + $0xa8] sm:$0xff]
    %v2180 = vld [vmem:[#allocation5 + $0xb0] sm:$0xff]
    %v2181 = vld [vmem:[#allocation5 + $0xb8] sm:$0xff]
    %v2182 = vld [vmem:[#allocation5 + $0xc0] sm:$0xff]
    %v2183 = vld [vmem:[#allocation5 + $0xc8] sm:$0xff]
    %v2184 = vld [vmem:[#allocation5 + $0xd0] sm:$0xff]
    %v2185 = vld [vmem:[#allocation5 + $0xd8] sm:$0xff]
    %v2186 = vld [vmem:[#allocation5 + $0xe0] sm:$0xff]
    %v2187 = vld [vmem:[#allocation5 + $0xe8] sm:$0xff]
    %v2188 = vld [vmem:[#allocation5 + $0xf0] sm:$0xff]
    %v2189 = vld [vmem:[#allocation5 + $0xf8] sm:$0xff]
    %v2190 = vld [vmem:[#allocation5 + $0x100] sm:$0xff]
    %v2191 = vld [vmem:[#allocation5 + $0x108] sm:$0xff]
    %v2192 = vld [vmem:[#allocation5 + $0x110] sm:$0xff]
    %v2193 = vld [vmem:[#allocation5 + $0x118] sm:$0xff]
    %v2194 = vld [vmem:[#allocation5 + $0x120] sm:$0xff]
    %v2195 = vld [vmem:[#allocation5 + $0x128] sm:$0xff]
    %v2196 = vld [vmem:[#allocation5 + $0x130] sm:$0xff]
    %v2197 = vld [vmem:[#allocation5 + $0x138] sm:$0xff]
    %v2198 = vld [vmem:[#allocation5 + $0x140] sm:$0xff]
    %v2199 = vld [vmem:[#allocation5 + $0x148] sm:$0xff]
    %v2200 = vld [vmem:[#allocation5 + $0x150] sm:$0xff]
    %v2201 = vld [vmem:[#allocation5 + $0x158] sm:$0xff]
    %v2202 = vld [vmem:[#allocation5 + $0x160] sm:$0xff]
    %v2203 = vld [vmem:[#allocation5 + $0x168] sm:$0xff]
    %v2204 = vld [vmem:[#allocation5 + $0x170] sm:$0xff]
    %v2205 = vld [vmem:[#allocation5 + $0x178] sm:$0xff]
    %v2206 = vld [vmem:[#allocation5 + $0x180] sm:$0xff]
    %v2207 = vld [vmem:[#allocation5 + $0x188] sm:$0xff]
    %v2208 = vld [vmem:[#allocation5 + $0x190] sm:$0xff]
    %v2209 = vld [vmem:[#allocation5 + $0x198] sm:$0xff]
    %v2210 = vld [vmem:[#allocation5 + $0x1a0] sm:$0xff]
    %v2211 = vld [vmem:[#allocation5 + $0x1a8] sm:$0xff]
    %v2212 = vld [vmem:[#allocation5 + $0x1b0] sm:$0xff]
    %v2213 = vld [vmem:[#allocation5 + $0x1b8] sm:$0xff]
    %v2214 = vld [vmem:[#allocation5 + $0x1c0] sm:$0xff]
    %v2215 = vld [vmem:[#allocation5 + $0x1c8] sm:$0xff]
    %v2216 = vld [vmem:[#allocation5 + $0x1d0] sm:$0xff]
    %v2217 = vld [vmem:[#allocation5 + $0x1d8] sm:$0xff]
    %v2218 = vld [vmem:[#allocation5 + $0x1e0] sm:$0xff]
    %v2219 = vld [vmem:[#allocation5 + $0x1e8] sm:$0xff]
    %v2220 = vld [vmem:[#allocation5 + $0x1f0] sm:$0xff]
    %v2221 = vld [vmem:[#allocation5 + $0x1f8] sm:$0xff]
    %v2222 = vld [vmem:[#allocation5 + $0x200] sm:$0xff]
    %v2223 = vld [vmem:[#allocation5 + $0x208] sm:$0xff]
    %v2224 = vld [vmem:[#allocation5 + $0x210] sm:$0xff]
    %v2225 = vld [vmem:[#allocation5 + $0x218] sm:$0xff]
    %v2226 = vld [vmem:[#allocation5 + $0x220] sm:$0xff]
    %v2227 = vld [vmem:[#allocation5 + $0x228] sm:$0xff]
    %v2228 = vld [vmem:[#allocation5 + $0x230] sm:$0xff]
    %v2229 = vld [vmem:[#allocation5 + $0x238] sm:$0xff]
    %v2230 = vld [vmem:[#allocation5 + $0x240] sm:$0xff]
    %v2231 = vld [vmem:[#allocation5 + $0x248] sm:$0xff]
    %v2232 = vld [vmem:[#allocation5 + $0x250] sm:$0xff]
    %v2233 = vld [vmem:[#allocation5 + $0x258] sm:$0xff]
    %v2234 = vld [vmem:[#allocation5 + $0x260] sm:$0xff]
    %v2235 = vld [vmem:[#allocation5 + $0x268] sm:$0xff]
    %v2236 = vld [vmem:[#allocation5 + $0x270] sm:$0xff]
    %v2237 = vld [vmem:[#allocation5 + $0x278] sm:$0xff]
    %v2238 = vld [vmem:[#allocation5 + $0x280] sm:$0xff]
    %v2239 = vld [vmem:[#allocation5 + $0x288] sm:$0xff]
    %v2240 = vld [vmem:[#allocation5 + $0x290] sm:$0xff]
    %v2241 = vld [vmem:[#allocation5 + $0x298] sm:$0xff]
    %v2242 = vld [vmem:[#allocation5 + $0x2a0] sm:$0xff]
    %v2243 = vld [vmem:[#allocation5 + $0x2a8] sm:$0xff]
    %v2244 = vld [vmem:[#allocation5 + $0x2b0] sm:$0xff]
    %v2245 = vld [vmem:[#allocation5 + $0x2b8] sm:$0xff]
    %v2246 = vld [vmem:[#allocation5 + $0x2c0] sm:$0xff]
    %v2247 = vld [vmem:[#allocation5 + $0x2c8] sm:$0xff]
    %v2248 = vld [vmem:[#allocation5 + $0x2d0] sm:$0xff]
    %v2249 = vld [vmem:[#allocation5 + $0x2d8] sm:$0xff]
    %v2250 = vld [vmem:[#allocation5 + $0x2e0] sm:$0xff]
    %v2251 = vld [vmem:[#allocation5 + $0x2e8] sm:$0xff]
    %v2252 = vld [vmem:[#allocation5 + $0x2f0] sm:$0xff]
    %v2253 = vld [vmem:[#allocation5 + $0x2f8] sm:$0xff]
    %v2254 = vld [vmem:[#allocation5 + $0x300] sm:$0xff]
    %v2255 = vld [vmem:[#allocation5 + $0x308] sm:$0xff]
    %v2256 = vld [vmem:[#allocation5 + $0x310] sm:$0xff]
    %v2257 = vld [vmem:[#allocation5 + $0x318] sm:$0xff]
    %v2258 = vld [vmem:[#allocation5 + $0x320] sm:$0xff]
    %v2259 = vld [vmem:[#allocation5 + $0x328] sm:$0xff]
    %v2260 = vld [vmem:[#allocation5 + $0x330] sm:$0xff]
    %v2261 = vld [vmem:[#allocation5 + $0x338] sm:$0xff]
    %v2262 = vld [vmem:[#allocation5 + $0x340] sm:$0xff]
    %v2263 = vld [vmem:[#allocation5 + $0x348] sm:$0xff]
    %v2264 = vld [vmem:[#allocation5 + $0x350] sm:$0xff]
    %v2265 = vld [vmem:[#allocation5 + $0x358] sm:$0xff]
    %v2266 = vld [vmem:[#allocation5 + $0x360] sm:$0xff]
    %v2267 = vld [vmem:[#allocation5 + $0x368] sm:$0xff]
    %v2268 = vld [vmem:[#allocation5 + $0x370] sm:$0xff]
    %v2269 = vld [vmem:[#allocation5 + $0x378] sm:$0xff]
    %v2270 = vld [vmem:[#allocation5 + $0x380] sm:$0xff]
    %v2271 = vld [vmem:[#allocation5 + $0x388] sm:$0xff]
    %v2272 = vld [vmem:[#allocation5 + $0x390] sm:$0xff]
    %v2273 = vld [vmem:[#allocation5 + $0x398] sm:$0xff]
    %v2274 = vld [vmem:[#allocation5 + $0x3a0] sm:$0xff]
    %v2275 = vld [vmem:[#allocation5 + $0x3a8] sm:$0xff]
    %v2276 = vld [vmem:[#allocation5 + $0x3b0] sm:$0xff]
    %v2277 = vld [vmem:[#allocation5 + $0x3b8] sm:$0xff]
    %v2278 = vld [vmem:[#allocation5 + $0x3c0] sm:$0xff]
    %v2279 = vld [vmem:[#allocation5 + $0x3c8] sm:$0xff]
    %v2280 = vld [vmem:[#allocation5 + $0x3d0] sm:$0xff]
    %v2281 = vld [vmem:[#allocation5 + $0x3d8] sm:$0xff]
    %v2282 = vld [vmem:[#allocation5 + $0x3e0] sm:$0xff]
    %v2283 = vld [vmem:[#allocation5 + $0x3e8] sm:$0xff]
    %v2284 = vld [vmem:[#allocation5 + $0x3f0] sm:$0xff]
    %v2285 = vld [vmem:[#allocation5 + $0x3f8] sm:$0xff]
    %v2286 = vld [vmem:[#allocation5 + $0x400] sm:$0xff]
    %v2287 = vld [vmem:[#allocation5 + $0x408] sm:$0xff]
    %v2288 = vld [vmem:[#allocation5 + $0x410] sm:$0xff]
    %v2289 = vld [vmem:[#allocation5 + $0x418] sm:$0xff]
    %v2290 = vld [vmem:[#allocation5 + $0x420] sm:$0xff]
    %v2291 = vld [vmem:[#allocation5 + $0x428] sm:$0xff]
    %v2292 = vld [vmem:[#allocation5 + $0x430] sm:$0xff]
    %v2293 = vld [vmem:[#allocation5 + $0x438] sm:$0xff]
    %v2294 = vld [vmem:[#allocation5 + $0x440] sm:$0xff]
    %v2295 = vld [vmem:[#allocation5 + $0x448] sm:$0xff]
    %v2296 = vld [vmem:[#allocation5 + $0x450] sm:$0xff]
    %v2297 = vld [vmem:[#allocation5 + $0x458] sm:$0xff]
    %v2298 = vld [vmem:[#allocation5 + $0x460] sm:$0xff]
    %v2299 = vld [vmem:[#allocation5 + $0x468] sm:$0xff]
    %v2300 = vld [vmem:[#allocation5 + $0x470] sm:$0xff]
    %v2301 = vld [vmem:[#allocation5 + $0x478] sm:$0xff]
    %v2302 = vld [vmem:[#allocation5 + $0x480] sm:$0xff]
    %v2303 = vld [vmem:[#allocation5 + $0x488] sm:$0xff]
    %v2304 = vld [vmem:[#allocation5 + $0x490] sm:$0xff]
    %v2305 = vld [vmem:[#allocation5 + $0x498] sm:$0xff]
    %v2306 = vld [vmem:[#allocation5 + $0x4a0] sm:$0xff]
    %v2307 = vld [vmem:[#allocation5 + $0x4a8] sm:$0xff]
    %v2308 = vld [vmem:[#allocation5 + $0x4b0] sm:$0xff]
    %v2309 = vld [vmem:[#allocation5 + $0x4b8] sm:$0xff]
    %v2310 = vld [vmem:[#allocation5 + $0x4c0] sm:$0xff]
    %v2311 = vld [vmem:[#allocation5 + $0x4c8] sm:$0xff]
    %v2312 = vld [vmem:[#allocation5 + $0x4d0] sm:$0xff]
    %v2313 = vld [vmem:[#allocation5 + $0x4d8] sm:$0xff]
    %v2314 = vld [vmem:[#allocation5 + $0x4e0] sm:$0xff]
    %v2315 = vld [vmem:[#allocation5 + $0x4e8] sm:$0xff]
    %v2316 = vld [vmem:[#allocation5 + $0x4f0] sm:$0xff]
    %v2317 = vld [vmem:[#allocation5 + $0x4f8] sm:$0xff]
    %v2318 = vld [vmem:[#allocation5 + $0x500] sm:$0xff]
    %v2319 = vld [vmem:[#allocation5 + $0x508] sm:$0xff]
    %v2320 = vld [vmem:[#allocation5 + $0x510] sm:$0xff]
    %v2321 = vld [vmem:[#allocation5 + $0x518] sm:$0xff]
    %v2322 = vld [vmem:[#allocation5 + $0x520] sm:$0xff]
    %v2323 = vld [vmem:[#allocation5 + $0x528] sm:$0xff]
    %v2324 = vld [vmem:[#allocation5 + $0x530] sm:$0xff]
    %v2325 = vld [vmem:[#allocation5 + $0x538] sm:$0xff]
    %v2326 = vld [vmem:[#allocation5 + $0x540] sm:$0xff]
    %v2327 = vld [vmem:[#allocation5 + $0x548] sm:$0xff]
    %v2328 = vld [vmem:[#allocation5 + $0x550] sm:$0xff]
    %v2329 = vld [vmem:[#allocation5 + $0x558] sm:$0xff]
    %v2330 = vld [vmem:[#allocation5 + $0x560] sm:$0xff]
    %v2331 = vld [vmem:[#allocation5 + $0x568] sm:$0xff]
    %v2332 = vld [vmem:[#allocation5 + $0x570] sm:$0xff]
    %v2333 = vld [vmem:[#allocation5 + $0x578] sm:$0xff]
    %v2334 = vld [vmem:[#allocation5 + $0x580] sm:$0xff]
    %v2335 = vld [vmem:[#allocation5 + $0x588] sm:$0xff]
    %v2336 = vld [vmem:[#allocation5 + $0x590] sm:$0xff]
    %v2337 = vld [vmem:[#allocation5 + $0x598] sm:$0xff]
    %v2338 = vld [vmem:[#allocation5 + $0x5a0] sm:$0xff]
    %v2339 = vld [vmem:[#allocation5 + $0x5a8] sm:$0xff]
    %v2340 = vld [vmem:[#allocation5 + $0x5b0] sm:$0xff]
    %v2341 = vld [vmem:[#allocation5 + $0x5b8] sm:$0xff]
    %v2342 = vld [vmem:[#allocation5 + $0x5c0] sm:$0xff]
    %v2343 = vld [vmem:[#allocation5 + $0x5c8] sm:$0xff]
    %v2344 = vld [vmem:[#allocation5 + $0x5d0] sm:$0xff]
    %v2345 = vld [vmem:[#allocation5 + $0x5d8] sm:$0xff]
    %v2346 = vld [vmem:[#allocation5 + $0x5e0] sm:$0xff]
    %v2347 = vld [vmem:[#allocation5 + $0x5e8] sm:$0xff]
    %v2348 = vld [vmem:[#allocation5 + $0x5f0] sm:$0xff]
    %v2349 = vld [vmem:[#allocation5 + $0x5f8] sm:$0xff]
    %v2350 = vld [vmem:[#allocation5 + $0x600] sm:$0xff]
    %v2351 = vld [vmem:[#allocation5 + $0x608] sm:$0xff]
    %v2352 = vld [vmem:[#allocation5 + $0x610] sm:$0xff]
    %v2353 = vld [vmem:[#allocation5 + $0x618] sm:$0xff]
    %v2354 = vld [vmem:[#allocation5 + $0x620] sm:$0xff]
    %v2355 = vld [vmem:[#allocation5 + $0x628] sm:$0xff]
    %v2356 = vld [vmem:[#allocation5 + $0x630] sm:$0xff]
    %v2357 = vld [vmem:[#allocation5 + $0x638] sm:$0xff]
    %v2358 = vld [vmem:[#allocation5 + $0x640] sm:$0xff]
    %v2359 = vld [vmem:[#allocation5 + $0x648] sm:$0xff]
    %v2360 = vld [vmem:[#allocation5 + $0x650] sm:$0xff]
    %v2361 = vld [vmem:[#allocation5 + $0x658] sm:$0xff]
    %v2362 = vld [vmem:[#allocation5 + $0x660] sm:$0xff]
    %v2363 = vld [vmem:[#allocation5 + $0x668] sm:$0xff]
    %v2364 = vld [vmem:[#allocation5 + $0x670] sm:$0xff]
    %v2365 = vld [vmem:[#allocation5 + $0x678] sm:$0xff]
    %v2366 = vld [vmem:[#allocation5 + $0x680] sm:$0xff]
    %v2367 = vld [vmem:[#allocation5 + $0x688] sm:$0xff]
    %v2368 = vld [vmem:[#allocation5 + $0x690] sm:$0xff]
    %v2369 = vld [vmem:[#allocation5 + $0x698] sm:$0xff]
    %v2370 = vld [vmem:[#allocation5 + $0x6a0] sm:$0xff]
    %v2371 = vld [vmem:[#allocation5 + $0x6a8] sm:$0xff]
    %v2372 = vld [vmem:[#allocation5 + $0x6b0] sm:$0xff]
    %v2373 = vld [vmem:[#allocation5 + $0x6b8] sm:$0xff]
    %v2374 = vld [vmem:[#allocation5 + $0x6c0] sm:$0xff]
    %v2375 = vld [vmem:[#allocation5 + $0x6c8] sm:$0xff]
    %v2376 = vld [vmem:[#allocation5 + $0x6d0] sm:$0xff]
    %v2377 = vld [vmem:[#allocation5 + $0x6d8] sm:$0xff]
    %v2378 = vld [vmem:[#allocation5 + $0x6e0] sm:$0xff]
    %v2379 = vld [vmem:[#allocation5 + $0x6e8] sm:$0xff]
    %v2380 = vld [vmem:[#allocation5 + $0x6f0] sm:$0xff]
    %v2381 = vld [vmem:[#allocation5 + $0x6f8] sm:$0xff]
    %v2382 = vld [vmem:[#allocation5 + $0x700] sm:$0xff]
    %v2383 = vld [vmem:[#allocation5 + $0x708] sm:$0xff]
    %v2384 = vld [vmem:[#allocation5 + $0x710] sm:$0xff]
    %v2385 = vld [vmem:[#allocation5 + $0x718] sm:$0xff]
    %v2386 = vld [vmem:[#allocation5 + $0x720] sm:$0xff]
    %v2387 = vld [vmem:[#allocation5 + $0x728] sm:$0xff]
    %v2388 = vld [vmem:[#allocation5 + $0x730] sm:$0xff]
    %v2389 = vld [vmem:[#allocation5 + $0x738] sm:$0xff]
    %v2390 = vld [vmem:[#allocation5 + $0x740] sm:$0xff]
    %v2391 = vld [vmem:[#allocation5 + $0x748] sm:$0xff]
    %v2392 = vld [vmem:[#allocation5 + $0x750] sm:$0xff]
    %v2393 = vld [vmem:[#allocation5 + $0x758] sm:$0xff]
    %v2394 = vld [vmem:[#allocation5 + $0x760] sm:$0xff]
    %v2395 = vld [vmem:[#allocation5 + $0x768] sm:$0xff]
    %v2396 = vld [vmem:[#allocation5 + $0x770] sm:$0xff]
    %v2397 = vld [vmem:[#allocation5 + $0x778] sm:$0xff]
    %v2398 = vld [vmem:[#allocation5 + $0x780] sm:$0xff]
    %v2399 = vld [vmem:[#allocation5 + $0x788] sm:$0xff]
    %v2400 = vld [vmem:[#allocation5 + $0x790] sm:$0xff]
    %v2401 = vld [vmem:[#allocation5 + $0x798] sm:$0xff]
    %v2402 = vld [vmem:[#allocation5 + $0x7a0] sm:$0xff]
    %v2403 = vld [vmem:[#allocation5 + $0x7a8] sm:$0xff]
    %v2404 = vld [vmem:[#allocation5 + $0x7b0] sm:$0xff]
    %v2405 = vld [vmem:[#allocation5 + $0x7b8] sm:$0xff]
    %v2406 = vld [vmem:[#allocation5 + $0x7c0] sm:$0xff]
    %v2407 = vld [vmem:[#allocation5 + $0x7c8] sm:$0xff]
    %v2408 = vld [vmem:[#allocation5 + $0x7d0] sm:$0xff]
    %v2409 = vld [vmem:[#allocation5 + $0x7d8] sm:$0xff]
    %v2410 = vld [vmem:[#allocation5 + $0x7e0] sm:$0xff]
    %v2411 = vld [vmem:[#allocation5 + $0x7e8] sm:$0xff]
    %v2412 = vld [vmem:[#allocation5 + $0x7f0] sm:$0xff]
    %v2413 = vld [vmem:[#allocation5 + $0x7f8] sm:$0xff]
    %v2414 = vld [vmem:[%s3 + $0xc] sm:$0xf]
    %v2416 = vlaneseq
    %v2417 = vshrl.u32 %v2416, 7
    %v2418 = vsub.s32 0, %v2417
    %v2419 = vrot.slane %v2414, %v2418
    %v2420 = vlaneseq
    %v2421 = vshrl.u32 %v2420, 7
    %v2422 = vsub.s32 1, %v2421
    %v2423 = vrot.slane %v2414, %v2422
    %v2424 = vlaneseq
    %v2425 = vshrl.u32 %v2424, 7
    %v2426 = vsub.s32 2, %v2425
    %v2427 = vrot.slane %v2414, %v2426
    %v2428 = vlaneseq
    %v2429 = vshrl.u32 %v2428, 7
    %v2430 = vsub.s32 3, %v2429
    %v2431 = vrot.slane %v2414, %v2430
    %2436 = vmatprep.subr.bf16.mxu0 %v2159
    %2437 = vmatpush1.bf16.msra.mxu0 %v2158
    %2438 = vmatprep.subr.bf16.mxu0 %v2163
    %2439 = vmatpush1.bf16.msra.mxu0 %v2162
    %2440 = vmatprep.subr.bf16.mxu0 %v2167
    %2441 = vmatpush1.bf16.msra.mxu0 %v2166
    %2442 = vmatprep.subr.bf16.mxu0 %v2171
    %2443 = vmatpush1.bf16.msra.mxu0 %v2170
    %2444 = vmatprep.subr.bf16.mxu0 %v2175
    %2445 = vmatpush1.bf16.msra.mxu0 %v2174
    %2446 = vmatprep.subr.bf16.mxu0 %v2179
    %2447 = vmatpush1.bf16.msra.mxu0 %v2178
    %2448 = vmatprep.subr.bf16.mxu0 %v2183
    %2449 = vmatpush1.bf16.msra.mxu0 %v2182
    %2450 = vmatprep.subr.bf16.mxu0 %v2187
    %2451 = vmatpush1.bf16.msra.mxu0 %v2186
    %2452 = vmatprep.subr.bf16.mxu0 %v2191
    %2453 = vmatpush1.bf16.msra.mxu0 %v2190
    %2454 = vmatprep.subr.bf16.mxu0 %v2195
    %2455 = vmatpush1.bf16.msra.mxu0 %v2194
    %2456 = vmatprep.subr.bf16.mxu0 %v2199
    %2457 = vmatpush1.bf16.msra.mxu0 %v2198
    %2458 = vmatprep.subr.bf16.mxu0 %v2203
    %2459 = vmatpush1.bf16.msra.mxu0 %v2202
    %2460 = vmatprep.subr.bf16.mxu0 %v2207
    %2461 = vmatpush1.bf16.msra.mxu0 %v2206
    %2462 = vmatprep.subr.bf16.mxu0 %v2211
    %2463 = vmatpush1.bf16.msra.mxu0 %v2210
    %2464 = vmatprep.subr.bf16.mxu0 %v2215
    %2465 = vmatpush1.bf16.msra.mxu0 %v2214
    %2466 = vmatprep.subr.bf16.mxu0 %v2219
    %2467 = vmatpush1.bf16.msra.mxu0 %v2218
    %2468 = vmatprep.mubr.bf16.mxu0 %v2147
    %2469 = vmatmul.mubr.bf16.gmra.mrb[0].mxu0 %v2146
    %v2470 = vpop.f32.mrb[0].mxu0
    %v2471 = vadd.f32 %v2419, %v2470
    %v2472 = vpop.f32.mrb[0].mxu0
    %v2473 = vadd.f32 %v2423, %v2472
    %v2474 = vpop.f32.mrb[0].mxu0
    %v2475 = vadd.f32 %v2419, %v2474
    %v2476 = vpop.f32.mrb[0].mxu0
    %v2477 = vadd.f32 %v2423, %v2476
    %2478 = vdwg.mxu0
    %2479 = vmatprep.subr.bf16.mxu0 %v2223
    %2480 = vmatpush1.bf16.msra.mxu0 %v2222
    %2481 = vmatprep.subr.bf16.mxu0 %v2227
    %2482 = vmatpush1.bf16.msra.mxu0 %v2226
    %2483 = vmatprep.subr.bf16.mxu0 %v2231
    %2484 = vmatpush1.bf16.msra.mxu0 %v2230
    %2485 = vmatprep.subr.bf16.mxu0 %v2235
    %2486 = vmatpush1.bf16.msra.mxu0 %v2234
    %2487 = vmatprep.subr.bf16.mxu0 %v2239
    %2488 = vmatpush1.bf16.msra.mxu0 %v2238
    %2489 = vmatprep.subr.bf16.mxu0 %v2243
    %2490 = vmatpush1.bf16.msra.mxu0 %v2242
    %2491 = vmatprep.subr.bf16.mxu0 %v2247
    %2492 = vmatpush1.bf16.msra.mxu0 %v2246
    %2493 = vmatprep.subr.bf16.mxu0 %v2251
    %2494 = vmatpush1.bf16.msra.mxu0 %v2250
    %2495 = vmatprep.subr.bf16.mxu0 %v2255
    %2496 = vmatpush1.bf16.msra.mxu0 %v2254
    %2497 = vmatprep.subr.bf16.mxu0 %v2259
    %2498 = vmatpush1.bf16.msra.mxu0 %v2258
    %2499 = vmatprep.subr.bf16.mxu0 %v2263
    %2500 = vmatpush1.bf16.msra.mxu0 %v2262
    %2501 = vmatprep.subr.bf16.mxu0 %v2267
    %2502 = vmatpush1.bf16.msra.mxu0 %v2266
    %2503 = vmatprep.subr.bf16.mxu0 %v2271
    %2504 = vmatpush1.bf16.msra.mxu0 %v2270
    %2505 = vmatprep.subr.bf16.mxu0 %v2275
    %2506 = vmatpush1.bf16.msra.mxu0 %v2274
    %2507 = vmatprep.subr.bf16.mxu0 %v2279
    %2508 = vmatpush1.bf16.msra.mxu0 %v2278
    %2509 = vmatprep.subr.bf16.mxu0 %v2283
    %2510 = vmatpush1.bf16.msra.mxu0 %v2282
    %2511 = vmatprep.mubr.bf16.mxu0 %v2149
    %2512 = vmatmul.mubr.bf16.gmra.mrb[0].mxu0 %v2148
    %v2513 = vpop.f32.mrb[0].mxu0
    %v2514 = vadd.f32 %v2471, %v2513
    %v2515 = vpop.f32.mrb[0].mxu0
    %v2516 = vadd.f32 %v2473, %v2515
    %v2517 = vpop.f32.mrb[0].mxu0
    %v2518 = vadd.f32 %v2475, %v2517
    %v2519 = vpop.f32.mrb[0].mxu0
    %v2520 = vadd.f32 %v2477, %v2519
    %2521 = vdwg.mxu0
    %2522 = vmatprep.subr.bf16.mxu0 %v2287
    %2523 = vmatpush1.bf16.msra.mxu0 %v2286
    %2524 = vmatprep.subr.bf16.mxu0 %v2291
    %2525 = vmatpush1.bf16.msra.mxu0 %v2290
    %2526 = vmatprep.subr.bf16.mxu0 %v2295
    %2527 = vmatpush1.bf16.msra.mxu0 %v2294
    %2528 = vmatprep.subr.bf16.mxu0 %v2299
    %2529 = vmatpush1.bf16.msra.mxu0 %v2298
    %2530 = vmatprep.subr.bf16.mxu0 %v2303
    %2531 = vmatpush1.bf16.msra.mxu0 %v2302
    %2532 = vmatprep.subr.bf16.mxu0 %v2307
    %2533 = vmatpush1.bf16.msra.mxu0 %v2306
    %2534 = vmatprep.subr.bf16.mxu0 %v2311
    %2535 = vmatpush1.bf16.msra.mxu0 %v2310
    %2536 = vmatprep.subr.bf16.mxu0 %v2315
    %2537 = vmatpush1.bf16.msra.mxu0 %v2314
    %2538 = vmatprep.subr.bf16.mxu0 %v2319
    %2539 = vmatpush1.bf16.msra.mxu0 %v2318
    %2540 = vmatprep.subr.bf16.mxu0 %v2323
    %2541 = vmatpush1.bf16.msra.mxu0 %v2322
    %2542 = vmatprep.subr.bf16.mxu0 %v2327
    %2543 = vmatpush1.bf16.msra.mxu0 %v2326
    %2544 = vmatprep.subr.bf16.mxu0 %v2331
    %2545 = vmatpush1.bf16.msra.mxu0 %v2330
    %2546 = vmatprep.subr.bf16.mxu0 %v2335
    %2547 = vmatpush1.bf16.msra.mxu0 %v2334
    %2548 = vmatprep.subr.bf16.mxu0 %v2339
    %2549 = vmatpush1.bf16.msra.mxu0 %v2338
    %2550 = vmatprep.subr.bf16.mxu0 %v2343
    %2551 = vmatpush1.bf16.msra.mxu0 %v2342
    %2552 = vmatprep.subr.bf16.mxu0 %v2347
    %2553 = vmatpush1.bf16.msra.mxu0 %v2346
    %2554 = vmatprep.mubr.bf16.mxu0 %v2151
    %2555 = vmatmul.mubr.bf16.gmra.mrb[0].mxu0 %v2150
    %v2556 = vpop.f32.mrb[0].mxu0
    %v2557 = vadd.f32 %v2514, %v2556
    %v2558 = vpop.f32.mrb[0].mxu0
    %v2559 = vadd.f32 %v2516, %v2558
    %v2560 = vpop.f32.mrb[0].mxu0
    %v2561 = vadd.f32 %v2518, %v2560
    %v2562 = vpop.f32.mrb[0].mxu0
    %v2563 = vadd.f32 %v2520, %v2562
    %2564 = vdwg.mxu0
    %2565 = vmatprep.subr.bf16.mxu0 %v2351
    %2566 = vmatpush1.bf16.msra.mxu0 %v2350
    %2567 = vmatprep.subr.bf16.mxu0 %v2355
    %2568 = vmatpush1.bf16.msra.mxu0 %v2354
    %2569 = vmatprep.subr.bf16.mxu0 %v2359
    %2570 = vmatpush1.bf16.msra.mxu0 %v2358
    %2571 = vmatprep.subr.bf16.mxu0 %v2363
    %2572 = vmatpush1.bf16.msra.mxu0 %v2362
    %2573 = vmatprep.subr.bf16.mxu0 %v2367
    %2574 = vmatpush1.bf16.msra.mxu0 %v2366
    %2575 = vmatprep.subr.bf16.mxu0 %v2371
    %2576 = vmatpush1.bf16.msra.mxu0 %v2370
    %2577 = vmatprep.subr.bf16.mxu0 %v2375
    %2578 = vmatpush1.bf16.msra.mxu0 %v2374
    %2579 = vmatprep.subr.bf16.mxu0 %v2379
    %2580 = vmatpush1.bf16.msra.mxu0 %v2378
    %2581 = vmatprep.subr.bf16.mxu0 %v2383
    %2582 = vmatpush1.bf16.msra.mxu0 %v2382
    %2583 = vmatprep.subr.bf16.mxu0 %v2387
    %2584 = vmatpush1.bf16.msra.mxu0 %v2386
    %2585 = vmatprep.subr.bf16.mxu0 %v2391
    %2586 = vmatpush1.bf16.msra.mxu0 %v2390
    %2587 = vmatprep.subr.bf16.mxu0 %v2395
    %2588 = vmatpush1.bf16.msra.mxu0 %v2394
    %2589 = vmatprep.subr.bf16.mxu0 %v2399
    %2590 = vmatpush1.bf16.msra.mxu0 %v2398
    %2591 = vmatprep.subr.bf16.mxu0 %v2403
    %2592 = vmatpush1.bf16.msra.mxu0 %v2402
    %2593 = vmatprep.subr.bf16.mxu0 %v2407
    %2594 = vmatpush1.bf16.msra.mxu0 %v2406
    %2595 = vmatprep.subr.bf16.mxu0 %v2411
    %2596 = vmatpush1.bf16.msra.mxu0 %v2410
    %2597 = vmatprep.mubr.bf16.mxu0 %v2153
    %2598 = vmatmul.mubr.bf16.gmra.mrb[0].mxu0 %v2152
    %v2599 = vpop.f32.mrb[0].mxu0
    %v2600 = vadd.f32 %v2557, %v2599
    %v2601 = vpop.f32.mrb[0].mxu0
    %v2602 = vadd.f32 %v2559, %v2601
    %v2603 = vpop.f32.mrb[0].mxu0
    %v2604 = vadd.f32 %v2561, %v2603
    %v2605 = vpop.f32.mrb[0].mxu0
    %v2606 = vadd.f32 %v2563, %v2605
    %2607 = vdwg.mxu0
    %2608 = vmatprep.subr.bf16.mxu0 %v2161
    %2609 = vmatpush1.bf16.msra.mxu0 %v2160
    %2610 = vmatprep.subr.bf16.mxu0 %v2165
    %2611 = vmatpush1.bf16.msra.mxu0 %v2164
    %2612 = vmatprep.subr.bf16.mxu0 %v2169
    %2613 = vmatpush1.bf16.msra.mxu0 %v2168
    %2614 = vmatprep.subr.bf16.mxu0 %v2173
    %2615 = vmatpush1.bf16.msra.mxu0 %v2172
    %2616 = vmatprep.subr.bf16.mxu0 %v2177
    %2617 = vmatpush1.bf16.msra.mxu0 %v2176
    %2618 = vmatprep.subr.bf16.mxu0 %v2181
    %2619 = vmatpush1.bf16.msra.mxu0 %v2180
    %2620 = vmatprep.subr.bf16.mxu0 %v2185
    %2621 = vmatpush1.bf16.msra.mxu0 %v2184
    %2622 = vmatprep.subr.bf16.mxu0 %v2189
    %2623 = vmatpush1.bf16.msra.mxu0 %v2188
    %2624 = vmatprep.subr.bf16.mxu0 %v2193
    %2625 = vmatpush1.bf16.msra.mxu0 %v2192
    %2626 = vmatprep.subr.bf16.mxu0 %v2197
    %2627 = vmatpush1.bf16.msra.mxu0 %v2196
    %2628 = vmatprep.subr.bf16.mxu0 %v2201
    %2629 = vmatpush1.bf16.msra.mxu0 %v2200
    %2630 = vmatprep.subr.bf16.mxu0 %v2205
    %2631 = vmatpush1.bf16.msra.mxu0 %v2204
    %2632 = vmatprep.subr.bf16.mxu0 %v2209
    %2633 = vmatpush1.bf16.msra.mxu0 %v2208
    %2634 = vmatprep.subr.bf16.mxu0 %v2213
    %2635 = vmatpush1.bf16.msra.mxu0 %v2212
    %2636 = vmatprep.subr.bf16.mxu0 %v2217
    %2637 = vmatpush1.bf16.msra.mxu0 %v2216
    %2638 = vmatprep.subr.bf16.mxu0 %v2221
    %2639 = vmatpush1.bf16.msra.mxu0 %v2220
    %2640 = vmatprep.mubr.bf16.mxu0 %v2147
    %2641 = vmatmul.mubr.bf16.gmra.mrb[0].mxu0 %v2146
    %v2642 = vpop.f32.mrb[0].mxu0
    %v2643 = vadd.f32 %v2427, %v2642
    %v2644 = vpop.f32.mrb[0].mxu0
    %v2645 = vadd.f32 %v2431, %v2644
    %v2646 = vpop.f32.mrb[0].mxu0
    %v2647 = vadd.f32 %v2427, %v2646
    %v2648 = vpop.f32.mrb[0].mxu0
    %v2649 = vadd.f32 %v2431, %v2648
    %2650 = vdwg.mxu0
    %2651 = vmatprep.subr.bf16.mxu0 %v2225
    %2652 = vmatpush1.bf16.msra.mxu0 %v2224
    %2653 = vmatprep.subr.bf16.mxu0 %v2229
    %2654 = vmatpush1.bf16.msra.mxu0 %v2228
    %2655 = vmatprep.subr.bf16.mxu0 %v2233
    %2656 = vmatpush1.bf16.msra.mxu0 %v2232
    %2657 = vmatprep.subr.bf16.mxu0 %v2237
    %2658 = vmatpush1.bf16.msra.mxu0 %v2236
    %2659 = vmatprep.subr.bf16.mxu0 %v2241
    %2660 = vmatpush1.bf16.msra.mxu0 %v2240
    %2661 = vmatprep.subr.bf16.mxu0 %v2245
    %2662 = vmatpush1.bf16.msra.mxu0 %v2244
    %2663 = vmatprep.subr.bf16.mxu0 %v2249
    %2664 = vmatpush1.bf16.msra.mxu0 %v2248
    %2665 = vmatprep.subr.bf16.mxu0 %v2253
    %2666 = vmatpush1.bf16.msra.mxu0 %v2252
    %2667 = vmatprep.subr.bf16.mxu0 %v2257
    %2668 = vmatpush1.bf16.msra.mxu0 %v2256
    %2669 = vmatprep.subr.bf16.mxu0 %v2261
    %2670 = vmatpush1.bf16.msra.mxu0 %v2260
    %2671 = vmatprep.subr.bf16.mxu0 %v2265
    %2672 = vmatpush1.bf16.msra.mxu0 %v2264
    %2673 = vmatprep.subr.bf16.mxu0 %v2269
    %2674 = vmatpush1.bf16.msra.mxu0 %v2268
    %2675 = vmatprep.subr.bf16.mxu0 %v2273
    %2676 = vmatpush1.bf16.msra.mxu0 %v2272
    %2677 = vmatprep.subr.bf16.mxu0 %v2277
    %2678 = vmatpush1.bf16.msra.mxu0 %v2276
    %2679 = vmatprep.subr.bf16.mxu0 %v2281
    %2680 = vmatpush1.bf16.msra.mxu0 %v2280
    %2681 = vmatprep.subr.bf16.mxu0 %v2285
    %2682 = vmatpush1.bf16.msra.mxu0 %v2284
    %2683 = vmatprep.mubr.bf16.mxu0 %v2149
    %2684 = vmatmul.mubr.bf16.gmra.mrb[0].mxu0 %v2148
    %v2685 = vpop.f32.mrb[0].mxu0
    %v2686 = vadd.f32 %v2643, %v2685
    %v2687 = vpop.f32.mrb[0].mxu0
    %v2688 = vadd.f32 %v2645, %v2687
    %v2689 = vpop.f32.mrb[0].mxu0
    %v2690 = vadd.f32 %v2647, %v2689
    %v2691 = vpop.f32.mrb[0].mxu0
    %v2692 = vadd.f32 %v2649, %v2691
    %2693 = vdwg.mxu0
    %2694 = vmatprep.subr.bf16.mxu0 %v2289
    %2695 = vmatpush1.bf16.msra.mxu0 %v2288
    %2696 = vmatprep.subr.bf16.mxu0 %v2293
    %2697 = vmatpush1.bf16.msra.mxu0 %v2292
    %2698 = vmatprep.subr.bf16.mxu0 %v2297
    %2699 = vmatpush1.bf16.msra.mxu0 %v2296
    %2700 = vmatprep.subr.bf16.mxu0 %v2301
    %2701 = vmatpush1.bf16.msra.mxu0 %v2300
    %2702 = vmatprep.subr.bf16.mxu0 %v2305
    %2703 = vmatpush1.bf16.msra.mxu0 %v2304
    %2704 = vmatprep.subr.bf16.mxu0 %v2309
    %2705 = vmatpush1.bf16.msra.mxu0 %v2308
    %2706 = vmatprep.subr.bf16.mxu0 %v2313
    %2707 = vmatpush1.bf16.msra.mxu0 %v2312
    %2708 = vmatprep.subr.bf16.mxu0 %v2317
    %2709 = vmatpush1.bf16.msra.mxu0 %v2316
    %2710 = vmatprep.subr.bf16.mxu0 %v2321
    %2711 = vmatpush1.bf16.msra.mxu0 %v2320
    %2712 = vmatprep.subr.bf16.mxu0 %v2325
    %2713 = vmatpush1.bf16.msra.mxu0 %v2324
    %2714 = vmatprep.subr.bf16.mxu0 %v2329
    %2715 = vmatpush1.bf16.msra.mxu0 %v2328
    %2716 = vmatprep.subr.bf16.mxu0 %v2333
    %2717 = vmatpush1.bf16.msra.mxu0 %v2332
    %2718 = vmatprep.subr.bf16.mxu0 %v2337
    %2719 = vmatpush1.bf16.msra.mxu0 %v2336
    %2720 = vmatprep.subr.bf16.mxu0 %v2341
    %2721 = vmatpush1.bf16.msra.mxu0 %v2340
    %2722 = vmatprep.subr.bf16.mxu0 %v2345
    %2723 = vmatpush1.bf16.msra.mxu0 %v2344
    %2724 = vmatprep.subr.bf16.mxu0 %v2349
    %2725 = vmatpush1.bf16.msra.mxu0 %v2348
    %2726 = vmatprep.mubr.bf16.mxu0 %v2151
    %2727 = vmatmul.mubr.bf16.gmra.mrb[0].mxu0 %v2150
    %v2728 = vpop.f32.mrb[0].mxu0
    %v2729 = vadd.f32 %v2686, %v2728
    %v2730 = vpop.f32.mrb[0].mxu0
    %v2731 = vadd.f32 %v2688, %v2730
    %v2732 = vpop.f32.mrb[0].mxu0
    %v2733 = vadd.f32 %v2690, %v2732
    %v2734 = vpop.f32.mrb[0].mxu0
    %v2735 = vadd.f32 %v2692, %v2734
    %2736 = vdwg.mxu0
    %2737 = vmatprep.subr.bf16.mxu0 %v2353
    %2738 = vmatpush1.bf16.msra.mxu0 %v2352
    %2739 = vmatprep.subr.bf16.mxu0 %v2357
    %2740 = vmatpush1.bf16.msra.mxu0 %v2356
    %2741 = vmatprep.subr.bf16.mxu0 %v2361
    %2742 = vmatpush1.bf16.msra.mxu0 %v2360
    %2743 = vmatprep.subr.bf16.mxu0 %v2365
    %2744 = vmatpush1.bf16.msra.mxu0 %v2364
    %2745 = vmatprep.subr.bf16.mxu0 %v2369
    %2746 = vmatpush1.bf16.msra.mxu0 %v2368
    %2747 = vmatprep.subr.bf16.mxu0 %v2373
    %2748 = vmatpush1.bf16.msra.mxu0 %v2372
    %2749 = vmatprep.subr.bf16.mxu0 %v2377
    %2750 = vmatpush1.bf16.msra.mxu0 %v2376
    %2751 = vmatprep.subr.bf16.mxu0 %v2381
    %2752 = vmatpush1.bf16.msra.mxu0 %v2380
    %2753 = vmatprep.subr.bf16.mxu0 %v2385
    %2754 = vmatpush1.bf16.msra.mxu0 %v2384
    %2755 = vmatprep.subr.bf16.mxu0 %v2389
    %2756 = vmatpush1.bf16.msra.mxu0 %v2388
    %2757 = vmatprep.subr.bf16.mxu0 %v2393
    %2758 = vmatpush1.bf16.msra.mxu0 %v2392
    %2759 = vmatprep.subr.bf16.mxu0 %v2397
    %2760 = vmatpush1.bf16.msra.mxu0 %v2396
    %2761 = vmatprep.subr.bf16.mxu0 %v2401
    %2762 = vmatpush1.bf16.msra.mxu0 %v2400
    %2763 = vmatprep.subr.bf16.mxu0 %v2405
    %2764 = vmatpush1.bf16.msra.mxu0 %v2404
    %2765 = vmatprep.subr.bf16.mxu0 %v2409
    %2766 = vmatpush1.bf16.msra.mxu0 %v2408
    %2767 = vmatprep.subr.bf16.mxu0 %v2413
    %2768 = vmatpush1.bf16.msra.mxu0 %v2412
    %2769 = vmatprep.mubr.bf16.mxu0 %v2153
    %2770 = vmatmul.mubr.bf16.gmra.mrb[0].mxu0 %v2152
    %v2771 = vpop.f32.mrb[0].mxu0
    %v2772 = vadd.f32 %v2729, %v2771
    %v2773 = vpop.f32.mrb[0].mxu0
    %v2774 = vadd.f32 %v2731, %v2773
    %v2775 = vpop.f32.mrb[0].mxu0
    %v2776 = vadd.f32 %v2733, %v2775
    %v2777 = vpop.f32.mrb[0].mxu0
    %v2778 = vadd.f32 %v2735, %v2777
    %2779 = vdwg.mxu0
    %vm2780 = vcmp.gt.f32.partialorder %v2600, 0.0
    %vm2781 = vcmp.gt.f32.partialorder %v2602, 0.0
    %vm2782 = vcmp.gt.f32.partialorder %v2772, 0.0
    %vm2783 = vcmp.gt.f32.partialorder %v2774, 0.0
    %vm2784 = vcmp.gt.f32.partialorder %v2604, 0.0
    %vm2785 = vcmp.gt.f32.partialorder %v2606, 0.0
    %vm2786 = vcmp.gt.f32.partialorder %v2776, 0.0
    %vm2787 = vcmp.gt.f32.partialorder %v2778, 0.0
    %v2788 = vmul.f32 %v2600, 0.2
    %v2789 = vmul.f32 %v2602, 0.2
    %v2790 = vmul.f32 %v2772, 0.2
    %v2791 = vmul.f32 %v2774, 0.2
    %v2792 = vmul.f32 %v2604, 0.2
    %v2793 = vmul.f32 %v2606, 0.2
    %v2794 = vmul.f32 %v2776, 0.2
    %v2795 = vmul.f32 %v2778, 0.2
    %v2796 = vsel %vm2780, %v2600, %v2788
    %v2797 = vsel %vm2781, %v2602, %v2789
    %v2798 = vsel %vm2782, %v2772, %v2790
    %v2799 = vsel %vm2783, %v2774, %v2791
    %v2800 = vsel %vm2784, %v2604, %v2792
    %v2801 = vsel %vm2785, %v2606, %v2793
    %v2802 = vsel %vm2786, %v2776, %v2794
    %v2803 = vsel %vm2787, %v2778, %v2795
    %v2804 = vpack.c.bf16 %v2800, %v2796
    %v2805 = vpack.c.bf16 %v2801, %v2797
    %v2806 = vpack.c.bf16 %v2802, %v2798
    %v2807 = vpack.c.bf16 %v2803, %v2799
    %s2808 = sshll.u32 %s1453, 4
    %2809 = dma.done %s435, %s2808
    %v2810 = vld [vmem:[#allocation6] sm:$0xff]
    %v2811 = vld [vmem:[#allocation6 + $0x8] sm:$0xff]
    %v2812 = vld [vmem:[#allocation6 + $0x10] sm:$0xff]
    %v2813 = vld [vmem:[#allocation6 + $0x18] sm:$0xff]
    %v2814 = vld [vmem:[#allocation6 + $0x20] sm:$0xff]
    %v2815 = vld [vmem:[#allocation6 + $0x28] sm:$0xff]
    %v2816 = vld [vmem:[#allocation6 + $0x30] sm:$0xff]
    %v2817 = vld [vmem:[#allocation6 + $0x38] sm:$0xff]
    %v2818 = vld [vmem:[#allocation6 + $0x40] sm:$0xff]
    %v2819 = vld [vmem:[#allocation6 + $0x48] sm:$0xff]
    %v2820 = vld [vmem:[#allocation6 + $0x50] sm:$0xff]
    %v2821 = vld [vmem:[#allocation6 + $0x58] sm:$0xff]
    %v2822 = vld [vmem:[#allocation6 + $0x60] sm:$0xff]
    %v2823 = vld [vmem:[#allocation6 + $0x68] sm:$0xff]
    %v2824 = vld [vmem:[#allocation6 + $0x70] sm:$0xff]
    %v2825 = vld [vmem:[#allocation6 + $0x78] sm:$0xff]
    %v2826 = vld [vmem:[#allocation6 + $0x80] sm:$0xff]
    %v2827 = vld [vmem:[#allocation6 + $0x88] sm:$0xff]
    %v2828 = vld [vmem:[#allocation6 + $0x90] sm:$0xff]
    %v2829 = vld [vmem:[#allocation6 + $0x98] sm:$0xff]
    %v2830 = vld [vmem:[#allocation6 + $0xa0] sm:$0xff]
    %v2831 = vld [vmem:[#allocation6 + $0xa8] sm:$0xff]
    %v2832 = vld [vmem:[#allocation6 + $0xb0] sm:$0xff]
    %v2833 = vld [vmem:[#allocation6 + $0xb8] sm:$0xff]
    %v2834 = vld [vmem:[#allocation6 + $0xc0] sm:$0xff]
    %v2835 = vld [vmem:[#allocation6 + $0xc8] sm:$0xff]
    %v2836 = vld [vmem:[#allocation6 + $0xd0] sm:$0xff]
    %v2837 = vld [vmem:[#allocation6 + $0xd8] sm:$0xff]
    %v2838 = vld [vmem:[#allocation6 + $0xe0] sm:$0xff]
    %v2839 = vld [vmem:[#allocation6 + $0xe8] sm:$0xff]
    %v2840 = vld [vmem:[#allocation6 + $0xf0] sm:$0xff]
    %v2841 = vld [vmem:[#allocation6 + $0xf8] sm:$0xff]
    %v2842 = vld [vmem:[#allocation6 + $0x100] sm:$0xff]
    %v2843 = vld [vmem:[#allocation6 + $0x108] sm:$0xff]
    %v2844 = vld [vmem:[#allocation6 + $0x110] sm:$0xff]
    %v2845 = vld [vmem:[#allocation6 + $0x118] sm:$0xff]
    %v2846 = vld [vmem:[#allocation6 + $0x120] sm:$0xff]
    %v2847 = vld [vmem:[#allocation6 + $0x128] sm:$0xff]
    %v2848 = vld [vmem:[#allocation6 + $0x130] sm:$0xff]
    %v2849 = vld [vmem:[#allocation6 + $0x138] sm:$0xff]
    %v2850 = vld [vmem:[#allocation6 + $0x140] sm:$0xff]
    %v2851 = vld [vmem:[#allocation6 + $0x148] sm:$0xff]
    %v2852 = vld [vmem:[#allocation6 + $0x150] sm:$0xff]
    %v2853 = vld [vmem:[#allocation6 + $0x158] sm:$0xff]
    %v2854 = vld [vmem:[#allocation6 + $0x160] sm:$0xff]
    %v2855 = vld [vmem:[#allocation6 + $0x168] sm:$0xff]
    %v2856 = vld [vmem:[#allocation6 + $0x170] sm:$0xff]
    %v2857 = vld [vmem:[#allocation6 + $0x178] sm:$0xff]
    %v2858 = vld [vmem:[#allocation6 + $0x180] sm:$0xff]
    %v2859 = vld [vmem:[#allocation6 + $0x188] sm:$0xff]
    %v2860 = vld [vmem:[#allocation6 + $0x190] sm:$0xff]
    %v2861 = vld [vmem:[#allocation6 + $0x198] sm:$0xff]
    %v2862 = vld [vmem:[#allocation6 + $0x1a0] sm:$0xff]
    %v2863 = vld [vmem:[#allocation6 + $0x1a8] sm:$0xff]
    %v2864 = vld [vmem:[#allocation6 + $0x1b0] sm:$0xff]
    %v2865 = vld [vmem:[#allocation6 + $0x1b8] sm:$0xff]
    %v2866 = vld [vmem:[#allocation6 + $0x1c0] sm:$0xff]
    %v2867 = vld [vmem:[#allocation6 + $0x1c8] sm:$0xff]
    %v2868 = vld [vmem:[#allocation6 + $0x1d0] sm:$0xff]
    %v2869 = vld [vmem:[#allocation6 + $0x1d8] sm:$0xff]
    %v2870 = vld [vmem:[#allocation6 + $0x1e0] sm:$0xff]
    %v2871 = vld [vmem:[#allocation6 + $0x1e8] sm:$0xff]
    %v2872 = vld [vmem:[#allocation6 + $0x1f0] sm:$0xff]
    %v2873 = vld [vmem:[#allocation6 + $0x1f8] sm:$0xff]
    %v2874 = vld [vmem:[#allocation6 + $0x200] sm:$0xff]
    %v2875 = vld [vmem:[#allocation6 + $0x208] sm:$0xff]
    %v2876 = vld [vmem:[#allocation6 + $0x210] sm:$0xff]
    %v2877 = vld [vmem:[#allocation6 + $0x218] sm:$0xff]
    %v2878 = vld [vmem:[#allocation6 + $0x220] sm:$0xff]
    %v2879 = vld [vmem:[#allocation6 + $0x228] sm:$0xff]
    %v2880 = vld [vmem:[#allocation6 + $0x230] sm:$0xff]
    %v2881 = vld [vmem:[#allocation6 + $0x238] sm:$0xff]
    %v2882 = vld [vmem:[#allocation6 + $0x240] sm:$0xff]
    %v2883 = vld [vmem:[#allocation6 + $0x248] sm:$0xff]
    %v2884 = vld [vmem:[#allocation6 + $0x250] sm:$0xff]
    %v2885 = vld [vmem:[#allocation6 + $0x258] sm:$0xff]
    %v2886 = vld [vmem:[#allocation6 + $0x260] sm:$0xff]
    %v2887 = vld [vmem:[#allocation6 + $0x268] sm:$0xff]
    %v2888 = vld [vmem:[#allocation6 + $0x270] sm:$0xff]
    %v2889 = vld [vmem:[#allocation6 + $0x278] sm:$0xff]
    %v2890 = vld [vmem:[#allocation6 + $0x280] sm:$0xff]
    %v2891 = vld [vmem:[#allocation6 + $0x288] sm:$0xff]
    %v2892 = vld [vmem:[#allocation6 + $0x290] sm:$0xff]
    %v2893 = vld [vmem:[#allocation6 + $0x298] sm:$0xff]
    %v2894 = vld [vmem:[#allocation6 + $0x2a0] sm:$0xff]
    %v2895 = vld [vmem:[#allocation6 + $0x2a8] sm:$0xff]
    %v2896 = vld [vmem:[#allocation6 + $0x2b0] sm:$0xff]
    %v2897 = vld [vmem:[#allocation6 + $0x2b8] sm:$0xff]
    %v2898 = vld [vmem:[#allocation6 + $0x2c0] sm:$0xff]
    %v2899 = vld [vmem:[#allocation6 + $0x2c8] sm:$0xff]
    %v2900 = vld [vmem:[#allocation6 + $0x2d0] sm:$0xff]
    %v2901 = vld [vmem:[#allocation6 + $0x2d8] sm:$0xff]
    %v2902 = vld [vmem:[#allocation6 + $0x2e0] sm:$0xff]
    %v2903 = vld [vmem:[#allocation6 + $0x2e8] sm:$0xff]
    %v2904 = vld [vmem:[#allocation6 + $0x2f0] sm:$0xff]
    %v2905 = vld [vmem:[#allocation6 + $0x2f8] sm:$0xff]
    %v2906 = vld [vmem:[#allocation6 + $0x300] sm:$0xff]
    %v2907 = vld [vmem:[#allocation6 + $0x308] sm:$0xff]
    %v2908 = vld [vmem:[#allocation6 + $0x310] sm:$0xff]
    %v2909 = vld [vmem:[#allocation6 + $0x318] sm:$0xff]
    %v2910 = vld [vmem:[#allocation6 + $0x320] sm:$0xff]
    %v2911 = vld [vmem:[#allocation6 + $0x328] sm:$0xff]
    %v2912 = vld [vmem:[#allocation6 + $0x330] sm:$0xff]
    %v2913 = vld [vmem:[#allocation6 + $0x338] sm:$0xff]
    %v2914 = vld [vmem:[#allocation6 + $0x340] sm:$0xff]
    %v2915 = vld [vmem:[#allocation6 + $0x348] sm:$0xff]
    %v2916 = vld [vmem:[#allocation6 + $0x350] sm:$0xff]
    %v2917 = vld [vmem:[#allocation6 + $0x358] sm:$0xff]
    %v2918 = vld [vmem:[#allocation6 + $0x360] sm:$0xff]
    %v2919 = vld [vmem:[#allocation6 + $0x368] sm:$0xff]
    %v2920 = vld [vmem:[#allocation6 + $0x370] sm:$0xff]
    %v2921 = vld [vmem:[#allocation6 + $0x378] sm:$0xff]
    %v2922 = vld [vmem:[#allocation6 + $0x380] sm:$0xff]
    %v2923 = vld [vmem:[#allocation6 + $0x388] sm:$0xff]
    %v2924 = vld [vmem:[#allocation6 + $0x390] sm:$0xff]
    %v2925 = vld [vmem:[#allocation6 + $0x398] sm:$0xff]
    %v2926 = vld [vmem:[#allocation6 + $0x3a0] sm:$0xff]
    %v2927 = vld [vmem:[#allocation6 + $0x3a8] sm:$0xff]
    %v2928 = vld [vmem:[#allocation6 + $0x3b0] sm:$0xff]
    %v2929 = vld [vmem:[#allocation6 + $0x3b8] sm:$0xff]
    %v2930 = vld [vmem:[#allocation6 + $0x3c0] sm:$0xff]
    %v2931 = vld [vmem:[#allocation6 + $0x3c8] sm:$0xff]
    %v2932 = vld [vmem:[#allocation6 + $0x3d0] sm:$0xff]
    %v2933 = vld [vmem:[#allocation6 + $0x3d8] sm:$0xff]
    %v2934 = vld [vmem:[#allocation6 + $0x3e0] sm:$0xff]
    %v2935 = vld [vmem:[#allocation6 + $0x3e8] sm:$0xff]
    %v2936 = vld [vmem:[#allocation6 + $0x3f0] sm:$0xff]
    %v2937 = vld [vmem:[#allocation6 + $0x3f8] sm:$0xff]
    %v2938 = vld [vmem:[#allocation6 + $0x400] sm:$0xff]
    %v2939 = vld [vmem:[#allocation6 + $0x408] sm:$0xff]
    %v2940 = vld [vmem:[#allocation6 + $0x410] sm:$0xff]
    %v2941 = vld [vmem:[#allocation6 + $0x418] sm:$0xff]
    %v2942 = vld [vmem:[#allocation6 + $0x420] sm:$0xff]
    %v2943 = vld [vmem:[#allocation6 + $0x428] sm:$0xff]
    %v2944 = vld [vmem:[#allocation6 + $0x430] sm:$0xff]
    %v2945 = vld [vmem:[#allocation6 + $0x438] sm:$0xff]
    %v2946 = vld [vmem:[#allocation6 + $0x440] sm:$0xff]
    %v2947 = vld [vmem:[#allocation6 + $0x448] sm:$0xff]
    %v2948 = vld [vmem:[#allocation6 + $0x450] sm:$0xff]
    %v2949 = vld [vmem:[#allocation6 + $0x458] sm:$0xff]
    %v2950 = vld [vmem:[#allocation6 + $0x460] sm:$0xff]
    %v2951 = vld [vmem:[#allocation6 + $0x468] sm:$0xff]
    %v2952 = vld [vmem:[#allocation6 + $0x470] sm:$0xff]
    %v2953 = vld [vmem:[#allocation6 + $0x478] sm:$0xff]
    %v2954 = vld [vmem:[#allocation6 + $0x480] sm:$0xff]
    %v2955 = vld [vmem:[#allocation6 + $0x488] sm:$0xff]
    %v2956 = vld [vmem:[#allocation6 + $0x490] sm:$0xff]
    %v2957 = vld [vmem:[#allocation6 + $0x498] sm:$0xff]
    %v2958 = vld [vmem:[#allocation6 + $0x4a0] sm:$0xff]
    %v2959 = vld [vmem:[#allocation6 + $0x4a8] sm:$0xff]
    %v2960 = vld [vmem:[#allocation6 + $0x4b0] sm:$0xff]
    %v2961 = vld [vmem:[#allocation6 + $0x4b8] sm:$0xff]
    %v2962 = vld [vmem:[#allocation6 + $0x4c0] sm:$0xff]
    %v2963 = vld [vmem:[#allocation6 + $0x4c8] sm:$0xff]
    %v2964 = vld [vmem:[#allocation6 + $0x4d0] sm:$0xff]
    %v2965 = vld [vmem:[#allocation6 + $0x4d8] sm:$0xff]
    %v2966 = vld [vmem:[#allocation6 + $0x4e0] sm:$0xff]
    %v2967 = vld [vmem:[#allocation6 + $0x4e8] sm:$0xff]
    %v2968 = vld [vmem:[#allocation6 + $0x4f0] sm:$0xff]
    %v2969 = vld [vmem:[#allocation6 + $0x4f8] sm:$0xff]
    %v2970 = vld [vmem:[#allocation6 + $0x500] sm:$0xff]
    %v2971 = vld [vmem:[#allocation6 + $0x508] sm:$0xff]
    %v2972 = vld [vmem:[#allocation6 + $0x510] sm:$0xff]
    %v2973 = vld [vmem:[#allocation6 + $0x518] sm:$0xff]
    %v2974 = vld [vmem:[#allocation6 + $0x520] sm:$0xff]
    %v2975 = vld [vmem:[#allocation6 + $0x528] sm:$0xff]
    %v2976 = vld [vmem:[#allocation6 + $0x530] sm:$0xff]
    %v2977 = vld [vmem:[#allocation6 + $0x538] sm:$0xff]
    %v2978 = vld [vmem:[#allocation6 + $0x540] sm:$0xff]
    %v2979 = vld [vmem:[#allocation6 + $0x548] sm:$0xff]
    %v2980 = vld [vmem:[#allocation6 + $0x550] sm:$0xff]
    %v2981 = vld [vmem:[#allocation6 + $0x558] sm:$0xff]
    %v2982 = vld [vmem:[#allocation6 + $0x560] sm:$0xff]
    %v2983 = vld [vmem:[#allocation6 + $0x568] sm:$0xff]
    %v2984 = vld [vmem:[#allocation6 + $0x570] sm:$0xff]
    %v2985 = vld [vmem:[#allocation6 + $0x578] sm:$0xff]
    %v2986 = vld [vmem:[#allocation6 + $0x580] sm:$0xff]
    %v2987 = vld [vmem:[#allocation6 + $0x588] sm:$0xff]
    %v2988 = vld [vmem:[#allocation6 + $0x590] sm:$0xff]
    %v2989 = vld [vmem:[#allocation6 + $0x598] sm:$0xff]
    %v2990 = vld [vmem:[#allocation6 + $0x5a0] sm:$0xff]
    %v2991 = vld [vmem:[#allocation6 + $0x5a8] sm:$0xff]
    %v2992 = vld [vmem:[#allocation6 + $0x5b0] sm:$0xff]
    %v2993 = vld [vmem:[#allocation6 + $0x5b8] sm:$0xff]
    %v2994 = vld [vmem:[#allocation6 + $0x5c0] sm:$0xff]
    %v2995 = vld [vmem:[#allocation6 + $0x5c8] sm:$0xff]
    %v2996 = vld [vmem:[#allocation6 + $0x5d0] sm:$0xff]
    %v2997 = vld [vmem:[#allocation6 + $0x5d8] sm:$0xff]
    %v2998 = vld [vmem:[#allocation6 + $0x5e0] sm:$0xff]
    %v2999 = vld [vmem:[#allocation6 + $0x5e8] sm:$0xff]
    %v3000 = vld [vmem:[#allocation6 + $0x5f0] sm:$0xff]
    %v3001 = vld [vmem:[#allocation6 + $0x5f8] sm:$0xff]
    %v3002 = vld [vmem:[#allocation6 + $0x600] sm:$0xff]
    %v3003 = vld [vmem:[#allocation6 + $0x608] sm:$0xff]
    %v3004 = vld [vmem:[#allocation6 + $0x610] sm:$0xff]
    %v3005 = vld [vmem:[#allocation6 + $0x618] sm:$0xff]
    %v3006 = vld [vmem:[#allocation6 + $0x620] sm:$0xff]
    %v3007 = vld [vmem:[#allocation6 + $0x628] sm:$0xff]
    %v3008 = vld [vmem:[#allocation6 + $0x630] sm:$0xff]
    %v3009 = vld [vmem:[#allocation6 + $0x638] sm:$0xff]
    %v3010 = vld [vmem:[#allocation6 + $0x640] sm:$0xff]
    %v3011 = vld [vmem:[#allocation6 + $0x648] sm:$0xff]
    %v3012 = vld [vmem:[#allocation6 + $0x650] sm:$0xff]
    %v3013 = vld [vmem:[#allocation6 + $0x658] sm:$0xff]
    %v3014 = vld [vmem:[#allocation6 + $0x660] sm:$0xff]
    %v3015 = vld [vmem:[#allocation6 + $0x668] sm:$0xff]
    %v3016 = vld [vmem:[#allocation6 + $0x670] sm:$0xff]
    %v3017 = vld [vmem:[#allocation6 + $0x678] sm:$0xff]
    %v3018 = vld [vmem:[#allocation6 + $0x680] sm:$0xff]
    %v3019 = vld [vmem:[#allocation6 + $0x688] sm:$0xff]
    %v3020 = vld [vmem:[#allocation6 + $0x690] sm:$0xff]
    %v3021 = vld [vmem:[#allocation6 + $0x698] sm:$0xff]
    %v3022 = vld [vmem:[#allocation6 + $0x6a0] sm:$0xff]
    %v3023 = vld [vmem:[#allocation6 + $0x6a8] sm:$0xff]
    %v3024 = vld [vmem:[#allocation6 + $0x6b0] sm:$0xff]
    %v3025 = vld [vmem:[#allocation6 + $0x6b8] sm:$0xff]
    %v3026 = vld [vmem:[#allocation6 + $0x6c0] sm:$0xff]
    %v3027 = vld [vmem:[#allocation6 + $0x6c8] sm:$0xff]
    %v3028 = vld [vmem:[#allocation6 + $0x6d0] sm:$0xff]
    %v3029 = vld [vmem:[#allocation6 + $0x6d8] sm:$0xff]
    %v3030 = vld [vmem:[#allocation6 + $0x6e0] sm:$0xff]
    %v3031 = vld [vmem:[#allocation6 + $0x6e8] sm:$0xff]
    %v3032 = vld [vmem:[#allocation6 + $0x6f0] sm:$0xff]
    %v3033 = vld [vmem:[#allocation6 + $0x6f8] sm:$0xff]
    %v3034 = vld [vmem:[#allocation6 + $0x700] sm:$0xff]
    %v3035 = vld [vmem:[#allocation6 + $0x708] sm:$0xff]
    %v3036 = vld [vmem:[#allocation6 + $0x710] sm:$0xff]
    %v3037 = vld [vmem:[#allocation6 + $0x718] sm:$0xff]
    %v3038 = vld [vmem:[#allocation6 + $0x720] sm:$0xff]
    %v3039 = vld [vmem:[#allocation6 + $0x728] sm:$0xff]
    %v3040 = vld [vmem:[#allocation6 + $0x730] sm:$0xff]
    %v3041 = vld [vmem:[#allocation6 + $0x738] sm:$0xff]
    %v3042 = vld [vmem:[#allocation6 + $0x740] sm:$0xff]
    %v3043 = vld [vmem:[#allocation6 + $0x748] sm:$0xff]
    %v3044 = vld [vmem:[#allocation6 + $0x750] sm:$0xff]
    %v3045 = vld [vmem:[#allocation6 + $0x758] sm:$0xff]
    %v3046 = vld [vmem:[#allocation6 + $0x760] sm:$0xff]
    %v3047 = vld [vmem:[#allocation6 + $0x768] sm:$0xff]
    %v3048 = vld [vmem:[#allocation6 + $0x770] sm:$0xff]
    %v3049 = vld [vmem:[#allocation6 + $0x778] sm:$0xff]
    %v3050 = vld [vmem:[#allocation6 + $0x780] sm:$0xff]
    %v3051 = vld [vmem:[#allocation6 + $0x788] sm:$0xff]
    %v3052 = vld [vmem:[#allocation6 + $0x790] sm:$0xff]
    %v3053 = vld [vmem:[#allocation6 + $0x798] sm:$0xff]
    %v3054 = vld [vmem:[#allocation6 + $0x7a0] sm:$0xff]
    %v3055 = vld [vmem:[#allocation6 + $0x7a8] sm:$0xff]
    %v3056 = vld [vmem:[#allocation6 + $0x7b0] sm:$0xff]
    %v3057 = vld [vmem:[#allocation6 + $0x7b8] sm:$0xff]
    %v3058 = vld [vmem:[#allocation6 + $0x7c0] sm:$0xff]
    %v3059 = vld [vmem:[#allocation6 + $0x7c8] sm:$0xff]
    %v3060 = vld [vmem:[#allocation6 + $0x7d0] sm:$0xff]
    %v3061 = vld [vmem:[#allocation6 + $0x7d8] sm:$0xff]
    %v3062 = vld [vmem:[#allocation6 + $0x7e0] sm:$0xff]
    %v3063 = vld [vmem:[#allocation6 + $0x7e8] sm:$0xff]
    %v3064 = vld [vmem:[#allocation6 + $0x7f0] sm:$0xff]
    %v3065 = vld [vmem:[#allocation6 + $0x7f8] sm:$0xff]
    %v3066 = vld [vmem:[%s3 + $0x10] sm:$0xff]
    %v3068 = vlaneseq
    %v3069 = vshrl.u32 %v3068, 7
    %v3070 = vsub.s32 0, %v3069
    %v3071 = vrot.slane %v3066, %v3070
    %v3072 = vlaneseq
    %v3073 = vshrl.u32 %v3072, 7
    %v3074 = vsub.s32 1, %v3073
    %v3075 = vrot.slane %v3066, %v3074
    %v3076 = vlaneseq
    %v3077 = vshrl.u32 %v3076, 7
    %v3078 = vsub.s32 2, %v3077
    %v3079 = vrot.slane %v3066, %v3078
    %v3080 = vlaneseq
    %v3081 = vshrl.u32 %v3080, 7
    %v3082 = vsub.s32 3, %v3081
    %v3083 = vrot.slane %v3066, %v3082
    %v3084 = vlaneseq
    %v3085 = vshrl.u32 %v3084, 7
    %v3086 = vsub.s32 4, %v3085
    %v3087 = vrot.slane %v3066, %v3086
    %v3088 = vlaneseq
    %v3089 = vshrl.u32 %v3088, 7
    %v3090 = vsub.s32 5, %v3089
    %v3091 = vrot.slane %v3066, %v3090
    %v3092 = vlaneseq
    %v3093 = vshrl.u32 %v3092, 7
    %v3094 = vsub.s32 6, %v3093
    %v3095 = vrot.slane %v3066, %v3094
    %v3096 = vlaneseq
    %v3097 = vshrl.u32 %v3096, 7
    %v3098 = vsub.s32 7, %v3097
    %v3099 = vrot.slane %v3066, %v3098
    %3108 = vmatprep.subr.bf16.mxu0 %v2811
    %3109 = vmatpush1.bf16.msra.mxu0 %v2810
    %3110 = vmatprep.subr.bf16.mxu0 %v2819
    %3111 = vmatpush1.bf16.msra.mxu0 %v2818
    %3112 = vmatprep.subr.bf16.mxu0 %v2827
    %3113 = vmatpush1.bf16.msra.mxu0 %v2826
    %3114 = vmatprep.subr.bf16.mxu0 %v2835
    %3115 = vmatpush1.bf16.msra.mxu0 %v2834
    %3116 = vmatprep.subr.bf16.mxu0 %v2843
    %3117 = vmatpush1.bf16.msra.mxu0 %v2842
    %3118 = vmatprep.subr.bf16.mxu0 %v2851
    %3119 = vmatpush1.bf16.msra.mxu0 %v2850
    %3120 = vmatprep.subr.bf16.mxu0 %v2859
    %3121 = vmatpush1.bf16.msra.mxu0 %v2858
    %3122 = vmatprep.subr.bf16.mxu0 %v2867
    %3123 = vmatpush1.bf16.msra.mxu0 %v2866
    %3124 = vmatprep.subr.bf16.mxu0 %v2875
    %3125 = vmatpush1.bf16.msra.mxu0 %v2874
    %3126 = vmatprep.subr.bf16.mxu0 %v2883
    %3127 = vmatpush1.bf16.msra.mxu0 %v2882
    %3128 = vmatprep.subr.bf16.mxu0 %v2891
    %3129 = vmatpush1.bf16.msra.mxu0 %v2890
    %3130 = vmatprep.subr.bf16.mxu0 %v2899
    %3131 = vmatpush1.bf16.msra.mxu0 %v2898
    %3132 = vmatprep.subr.bf16.mxu0 %v2907
    %3133 = vmatpush1.bf16.msra.mxu0 %v2906
    %3134 = vmatprep.subr.bf16.mxu0 %v2915
    %3135 = vmatpush1.bf16.msra.mxu0 %v2914
    %3136 = vmatprep.subr.bf16.mxu0 %v2923
    %3137 = vmatpush1.bf16.msra.mxu0 %v2922
    %3138 = vmatprep.subr.bf16.mxu0 %v2931
    %3139 = vmatpush1.bf16.msra.mxu0 %v2930
    %3140 = vmatprep.mubr.bf16.mxu0 %v2805
    %3141 = vmatmul.mubr.bf16.gmra.mrb[0].mxu0 %v2804
    %v3142 = vpop.f32.mrb[0].mxu0
    %v3143 = vadd.f32 %v3071, %v3142
    %v3144 = vpop.f32.mrb[0].mxu0
    %v3145 = vadd.f32 %v3075, %v3144
    %v3146 = vpop.f32.mrb[0].mxu0
    %v3147 = vadd.f32 %v3071, %v3146
    %v3148 = vpop.f32.mrb[0].mxu0
    %v3149 = vadd.f32 %v3075, %v3148
    %3150 = vdwg.mxu0
    %3151 = vmatprep.subr.bf16.mxu0 %v2939
    %3152 = vmatpush1.bf16.msra.mxu0 %v2938
    %3153 = vmatprep.subr.bf16.mxu0 %v2947
    %3154 = vmatpush1.bf16.msra.mxu0 %v2946
    %3155 = vmatprep.subr.bf16.mxu0 %v2955
    %3156 = vmatpush1.bf16.msra.mxu0 %v2954
    %3157 = vmatprep.subr.bf16.mxu0 %v2963
    %3158 = vmatpush1.bf16.msra.mxu0 %v2962
    %3159 = vmatprep.subr.bf16.mxu0 %v2971
    %3160 = vmatpush1.bf16.msra.mxu0 %v2970
    %3161 = vmatprep.subr.bf16.mxu0 %v2979
    %3162 = vmatpush1.bf16.msra.mxu0 %v2978
    %3163 = vmatprep.subr.bf16.mxu0 %v2987
    %3164 = vmatpush1.bf16.msra.mxu0 %v2986
    %3165 = vmatprep.subr.bf16.mxu0 %v2995
    %3166 = vmatpush1.bf16.msra.mxu0 %v2994
    %3167 = vmatprep.subr.bf16.mxu0 %v3003
    %3168 = vmatpush1.bf16.msra.mxu0 %v3002
    %3169 = vmatprep.subr.bf16.mxu0 %v3011
    %3170 = vmatpush1.bf16.msra.mxu0 %v3010
    %3171 = vmatprep.subr.bf16.mxu0 %v3019
    %3172 = vmatpush1.bf16.msra.mxu0 %v3018
    %3173 = vmatprep.subr.bf16.mxu0 %v3027
    %3174 = vmatpush1.bf16.msra.mxu0 %v3026
    %3175 = vmatprep.subr.bf16.mxu0 %v3035
    %3176 = vmatpush1.bf16.msra.mxu0 %v3034
    %3177 = vmatprep.subr.bf16.mxu0 %v3043
    %3178 = vmatpush1.bf16.msra.mxu0 %v3042
    %3179 = vmatprep.subr.bf16.mxu0 %v3051
    %3180 = vmatpush1.bf16.msra.mxu0 %v3050
    %3181 = vmatprep.subr.bf16.mxu0 %v3059
    %3182 = vmatpush1.bf16.msra.mxu0 %v3058
    %3183 = vmatprep.mubr.bf16.mxu0 %v2807
    %3184 = vmatmul.mubr.bf16.gmra.mrb[0].mxu0 %v2806
    %v3185 = vpop.f32.mrb[0].mxu0
    %v3186 = vadd.f32 %v3143, %v3185
    %v3187 = vpop.f32.mrb[0].mxu0
    %v3188 = vadd.f32 %v3145, %v3187
    %v3189 = vpop.f32.mrb[0].mxu0
    %v3190 = vadd.f32 %v3147, %v3189
    %v3191 = vpop.f32.mrb[0].mxu0
    %v3192 = vadd.f32 %v3149, %v3191
    %3193 = vdwg.mxu0
    %3194 = vmatprep.subr.bf16.mxu0 %v2813
    %3195 = vmatpush1.bf16.msra.mxu0 %v2812
    %3196 = vmatprep.subr.bf16.mxu0 %v2821
    %3197 = vmatpush1.bf16.msra.mxu0 %v2820
    %3198 = vmatprep.subr.bf16.mxu0 %v2829
    %3199 = vmatpush1.bf16.msra.mxu0 %v2828
    %3200 = vmatprep.subr.bf16.mxu0 %v2837
    %3201 = vmatpush1.bf16.msra.mxu0 %v2836
    %3202 = vmatprep.subr.bf16.mxu0 %v2845
    %3203 = vmatpush1.bf16.msra.mxu0 %v2844
    %3204 = vmatprep.subr.bf16.mxu0 %v2853
    %3205 = vmatpush1.bf16.msra.mxu0 %v2852
    %3206 = vmatprep.subr.bf16.mxu0 %v2861
    %3207 = vmatpush1.bf16.msra.mxu0 %v2860
    %3208 = vmatprep.subr.bf16.mxu0 %v2869
    %3209 = vmatpush1.bf16.msra.mxu0 %v2868
    %3210 = vmatprep.subr.bf16.mxu0 %v2877
    %3211 = vmatpush1.bf16.msra.mxu0 %v2876
    %3212 = vmatprep.subr.bf16.mxu0 %v2885
    %3213 = vmatpush1.bf16.msra.mxu0 %v2884
    %3214 = vmatprep.subr.bf16.mxu0 %v2893
    %3215 = vmatpush1.bf16.msra.mxu0 %v2892
    %3216 = vmatprep.subr.bf16.mxu0 %v2901
    %3217 = vmatpush1.bf16.msra.mxu0 %v2900
    %3218 = vmatprep.subr.bf16.mxu0 %v2909
    %3219 = vmatpush1.bf16.msra.mxu0 %v2908
    %3220 = vmatprep.subr.bf16.mxu0 %v2917
    %3221 = vmatpush1.bf16.msra.mxu0 %v2916
    %3222 = vmatprep.subr.bf16.mxu0 %v2925
    %3223 = vmatpush1.bf16.msra.mxu0 %v2924
    %3224 = vmatprep.subr.bf16.mxu0 %v2933
    %3225 = vmatpush1.bf16.msra.mxu0 %v2932
    %3226 = vmatprep.mubr.bf16.mxu0 %v2805
    %3227 = vmatmul.mubr.bf16.gmra.mrb[0].mxu0 %v2804
    %v3228 = vpop.f32.mrb[0].mxu0
    %v3229 = vadd.f32 %v3079, %v3228
    %v3230 = vpop.f32.mrb[0].mxu0
    %v3231 = vadd.f32 %v3083, %v3230
    %v3232 = vpop.f32.mrb[0].mxu0
    %v3233 = vadd.f32 %v3079, %v3232
    %v3234 = vpop.f32.mrb[0].mxu0
    %v3235 = vadd.f32 %v3083, %v3234
    %3236 = vdwg.mxu0
    %3237 = vmatprep.subr.bf16.mxu0 %v2941
    %3238 = vmatpush1.bf16.msra.mxu0 %v2940
    %3239 = vmatprep.subr.bf16.mxu0 %v2949
    %3240 = vmatpush1.bf16.msra.mxu0 %v2948
    %3241 = vmatprep.subr.bf16.mxu0 %v2957
    %3242 = vmatpush1.bf16.msra.mxu0 %v2956
    %3243 = vmatprep.subr.bf16.mxu0 %v2965
    %3244 = vmatpush1.bf16.msra.mxu0 %v2964
    %3245 = vmatprep.subr.bf16.mxu0 %v2973
    %3246 = vmatpush1.bf16.msra.mxu0 %v2972
    %3247 = vmatprep.subr.bf16.mxu0 %v2981
    %3248 = vmatpush1.bf16.msra.mxu0 %v2980
    %3249 = vmatprep.subr.bf16.mxu0 %v2989
    %3250 = vmatpush1.bf16.msra.mxu0 %v2988
    %3251 = vmatprep.subr.bf16.mxu0 %v2997
    %3252 = vmatpush1.bf16.msra.mxu0 %v2996
    %3253 = vmatprep.subr.bf16.mxu0 %v3005
    %3254 = vmatpush1.bf16.msra.mxu0 %v3004
    %3255 = vmatprep.subr.bf16.mxu0 %v3013
    %3256 = vmatpush1.bf16.msra.mxu0 %v3012
    %3257 = vmatprep.subr.bf16.mxu0 %v3021
    %3258 = vmatpush1.bf16.msra.mxu0 %v3020
    %3259 = vmatprep.subr.bf16.mxu0 %v3029
    %3260 = vmatpush1.bf16.msra.mxu0 %v3028
    %3261 = vmatprep.subr.bf16.mxu0 %v3037
    %3262 = vmatpush1.bf16.msra.mxu0 %v3036
    %3263 = vmatprep.subr.bf16.mxu0 %v3045
    %3264 = vmatpush1.bf16.msra.mxu0 %v3044
    %3265 = vmatprep.subr.bf16.mxu0 %v3053
    %3266 = vmatpush1.bf16.msra.mxu0 %v3052
    %3267 = vmatprep.subr.bf16.mxu0 %v3061
    %3268 = vmatpush1.bf16.msra.mxu0 %v3060
    %3269 = vmatprep.mubr.bf16.mxu0 %v2807
    %3270 = vmatmul.mubr.bf16.gmra.mrb[0].mxu0 %v2806
    %v3271 = vpop.f32.mrb[0].mxu0
    %v3272 = vadd.f32 %v3229, %v3271
    %v3273 = vpop.f32.mrb[0].mxu0
    %v3274 = vadd.f32 %v3231, %v3273
    %v3275 = vpop.f32.mrb[0].mxu0
    %v3276 = vadd.f32 %v3233, %v3275
    %v3277 = vpop.f32.mrb[0].mxu0
    %v3278 = vadd.f32 %v3235, %v3277
    %3279 = vdwg.mxu0
    %3280 = vmatprep.subr.bf16.mxu0 %v2815
    %3281 = vmatpush1.bf16.msra.mxu0 %v2814
    %3282 = vmatprep.subr.bf16.mxu0 %v2823
    %3283 = vmatpush1.bf16.msra.mxu0 %v2822
    %3284 = vmatprep.subr.bf16.mxu0 %v2831
    %3285 = vmatpush1.bf16.msra.mxu0 %v2830
    %3286 = vmatprep.subr.bf16.mxu0 %v2839
    %3287 = vmatpush1.bf16.msra.mxu0 %v2838
    %3288 = vmatprep.subr.bf16.mxu0 %v2847
    %3289 = vmatpush1.bf16.msra.mxu0 %v2846
    %3290 = vmatprep.subr.bf16.mxu0 %v2855
    %3291 = vmatpush1.bf16.msra.mxu0 %v2854
    %3292 = vmatprep.subr.bf16.mxu0 %v2863
    %3293 = vmatpush1.bf16.msra.mxu0 %v2862
    %3294 = vmatprep.subr.bf16.mxu0 %v2871
    %3295 = vmatpush1.bf16.msra.mxu0 %v2870
    %3296 = vmatprep.subr.bf16.mxu0 %v2879
    %3297 = vmatpush1.bf16.msra.mxu0 %v2878
    %3298 = vmatprep.subr.bf16.mxu0 %v2887
    %3299 = vmatpush1.bf16.msra.mxu0 %v2886
    %3300 = vmatprep.subr.bf16.mxu0 %v2895
    %3301 = vmatpush1.bf16.msra.mxu0 %v2894
    %3302 = vmatprep.subr.bf16.mxu0 %v2903
    %3303 = vmatpush1.bf16.msra.mxu0 %v2902
    %3304 = vmatprep.subr.bf16.mxu0 %v2911
    %3305 = vmatpush1.bf16.msra.mxu0 %v2910
    %3306 = vmatprep.subr.bf16.mxu0 %v2919
    %3307 = vmatpush1.bf16.msra.mxu0 %v2918
    %3308 = vmatprep.subr.bf16.mxu0 %v2927
    %3309 = vmatpush1.bf16.msra.mxu0 %v2926
    %3310 = vmatprep.subr.bf16.mxu0 %v2935
    %3311 = vmatpush1.bf16.msra.mxu0 %v2934
    %3312 = vmatprep.mubr.bf16.mxu0 %v2805
    %3313 = vmatmul.mubr.bf16.gmra.mrb[0].mxu0 %v2804
    %v3314 = vpop.f32.mrb[0].mxu0
    %v3315 = vadd.f32 %v3087, %v3314
    %v3316 = vpop.f32.mrb[0].mxu0
    %v3317 = vadd.f32 %v3091, %v3316
    %v3318 = vpop.f32.mrb[0].mxu0
    %v3319 = vadd.f32 %v3087, %v3318
    %v3320 = vpop.f32.mrb[0].mxu0
    %v3321 = vadd.f32 %v3091, %v3320
    %3322 = vdwg.mxu0
    %3323 = vmatprep.subr.bf16.mxu0 %v2943
    %3324 = vmatpush1.bf16.msra.mxu0 %v2942
    %3325 = vmatprep.subr.bf16.mxu0 %v2951
    %3326 = vmatpush1.bf16.msra.mxu0 %v2950
    %3327 = vmatprep.subr.bf16.mxu0 %v2959
    %3328 = vmatpush1.bf16.msra.mxu0 %v2958
    %3329 = vmatprep.subr.bf16.mxu0 %v2967
    %3330 = vmatpush1.bf16.msra.mxu0 %v2966
    %3331 = vmatprep.subr.bf16.mxu0 %v2975
    %3332 = vmatpush1.bf16.msra.mxu0 %v2974
    %3333 = vmatprep.subr.bf16.mxu0 %v2983
    %3334 = vmatpush1.bf16.msra.mxu0 %v2982
    %3335 = vmatprep.subr.bf16.mxu0 %v2991
    %3336 = vmatpush1.bf16.msra.mxu0 %v2990
    %3337 = vmatprep.subr.bf16.mxu0 %v2999
    %3338 = vmatpush1.bf16.msra.mxu0 %v2998
    %3339 = vmatprep.subr.bf16.mxu0 %v3007
    %3340 = vmatpush1.bf16.msra.mxu0 %v3006
    %3341 = vmatprep.subr.bf16.mxu0 %v3015
    %3342 = vmatpush1.bf16.msra.mxu0 %v3014
    %3343 = vmatprep.subr.bf16.mxu0 %v3023
    %3344 = vmatpush1.bf16.msra.mxu0 %v3022
    %3345 = vmatprep.subr.bf16.mxu0 %v3031
    %3346 = vmatpush1.bf16.msra.mxu0 %v3030
    %3347 = vmatprep.subr.bf16.mxu0 %v3039
    %3348 = vmatpush1.bf16.msra.mxu0 %v3038
    %3349 = vmatprep.subr.bf16.mxu0 %v3047
    %3350 = vmatpush1.bf16.msra.mxu0 %v3046
    %3351 = vmatprep.subr.bf16.mxu0 %v3055
    %3352 = vmatpush1.bf16.msra.mxu0 %v3054
    %3353 = vmatprep.subr.bf16.mxu0 %v3063
    %3354 = vmatpush1.bf16.msra.mxu0 %v3062
    %3355 = vmatprep.mubr.bf16.mxu0 %v2807
    %3356 = vmatmul.mubr.bf16.gmra.mrb[0].mxu0 %v2806
    %v3357 = vpop.f32.mrb[0].mxu0
    %v3358 = vadd.f32 %v3315, %v3357
    %v3359 = vpop.f32.mrb[0].mxu0
    %v3360 = vadd.f32 %v3317, %v3359
    %v3361 = vpop.f32.mrb[0].mxu0
    %v3362 = vadd.f32 %v3319, %v3361
    %v3363 = vpop.f32.mrb[0].mxu0
    %v3364 = vadd.f32 %v3321, %v3363
    %3365 = vdwg.mxu0
    %3366 = vmatprep.subr.bf16.mxu0 %v2817
    %3367 = vmatpush1.bf16.msra.mxu0 %v2816
    %3368 = vmatprep.subr.bf16.mxu0 %v2825
    %3369 = vmatpush1.bf16.msra.mxu0 %v2824
    %3370 = vmatprep.subr.bf16.mxu0 %v2833
    %3371 = vmatpush1.bf16.msra.mxu0 %v2832
    %3372 = vmatprep.subr.bf16.mxu0 %v2841
    %3373 = vmatpush1.bf16.msra.mxu0 %v2840
    %3374 = vmatprep.subr.bf16.mxu0 %v2849
    %3375 = vmatpush1.bf16.msra.mxu0 %v2848
    %3376 = vmatprep.subr.bf16.mxu0 %v2857
    %3377 = vmatpush1.bf16.msra.mxu0 %v2856
    %3378 = vmatprep.subr.bf16.mxu0 %v2865
    %3379 = vmatpush1.bf16.msra.mxu0 %v2864
    %3380 = vmatprep.subr.bf16.mxu0 %v2873
    %3381 = vmatpush1.bf16.msra.mxu0 %v2872
    %3382 = vmatprep.subr.bf16.mxu0 %v2881
    %3383 = vmatpush1.bf16.msra.mxu0 %v2880
    %3384 = vmatprep.subr.bf16.mxu0 %v2889
    %3385 = vmatpush1.bf16.msra.mxu0 %v2888
    %3386 = vmatprep.subr.bf16.mxu0 %v2897
    %3387 = vmatpush1.bf16.msra.mxu0 %v2896
    %3388 = vmatprep.subr.bf16.mxu0 %v2905
    %3389 = vmatpush1.bf16.msra.mxu0 %v2904
    %3390 = vmatprep.subr.bf16.mxu0 %v2913
    %3391 = vmatpush1.bf16.msra.mxu0 %v2912
    %3392 = vmatprep.subr.bf16.mxu0 %v2921
    %3393 = vmatpush1.bf16.msra.mxu0 %v2920
    %3394 = vmatprep.subr.bf16.mxu0 %v2929
    %3395 = vmatpush1.bf16.msra.mxu0 %v2928
    %3396 = vmatprep.subr.bf16.mxu0 %v2937
    %3397 = vmatpush1.bf16.msra.mxu0 %v2936
    %3398 = vmatprep.mubr.bf16.mxu0 %v2805
    %3399 = vmatmul.mubr.bf16.gmra.mrb[0].mxu0 %v2804
    %v3400 = vpop.f32.mrb[0].mxu0
    %v3401 = vadd.f32 %v3095, %v3400
    %v3402 = vpop.f32.mrb[0].mxu0
    %v3403 = vadd.f32 %v3099, %v3402
    %v3404 = vpop.f32.mrb[0].mxu0
    %v3405 = vadd.f32 %v3095, %v3404
    %v3406 = vpop.f32.mrb[0].mxu0
    %v3407 = vadd.f32 %v3099, %v3406
    %3408 = vdwg.mxu0
    %3409 = vmatprep.subr.bf16.mxu0 %v2945
    %3410 = vmatpush1.bf16.msra.mxu0 %v2944
    %3411 = vmatprep.subr.bf16.mxu0 %v2953
    %3412 = vmatpush1.bf16.msra.mxu0 %v2952
    %3413 = vmatprep.subr.bf16.mxu0 %v2961
    %3414 = vmatpush1.bf16.msra.mxu0 %v2960
    %3415 = vmatprep.subr.bf16.mxu0 %v2969
    %3416 = vmatpush1.bf16.msra.mxu0 %v2968
    %3417 = vmatprep.subr.bf16.mxu0 %v2977
    %3418 = vmatpush1.bf16.msra.mxu0 %v2976
    %3419 = vmatprep.subr.bf16.mxu0 %v2985
    %3420 = vmatpush1.bf16.msra.mxu0 %v2984
    %3421 = vmatprep.subr.bf16.mxu0 %v2993
    %3422 = vmatpush1.bf16.msra.mxu0 %v2992
    %3423 = vmatprep.subr.bf16.mxu0 %v3001
    %3424 = vmatpush1.bf16.msra.mxu0 %v3000
    %3425 = vmatprep.subr.bf16.mxu0 %v3009
    %3426 = vmatpush1.bf16.msra.mxu0 %v3008
    %3427 = vmatprep.subr.bf16.mxu0 %v3017
    %3428 = vmatpush1.bf16.msra.mxu0 %v3016
    %3429 = vmatprep.subr.bf16.mxu0 %v3025
    %3430 = vmatpush1.bf16.msra.mxu0 %v3024
    %3431 = vmatprep.subr.bf16.mxu0 %v3033
    %3432 = vmatpush1.bf16.msra.mxu0 %v3032
    %3433 = vmatprep.subr.bf16.mxu0 %v3041
    %3434 = vmatpush1.bf16.msra.mxu0 %v3040
    %3435 = vmatprep.subr.bf16.mxu0 %v3049
    %3436 = vmatpush1.bf16.msra.mxu0 %v3048
    %3437 = vmatprep.subr.bf16.mxu0 %v3057
    %3438 = vmatpush1.bf16.msra.mxu0 %v3056
    %3439 = vmatprep.subr.bf16.mxu0 %v3065
    %3440 = vmatpush1.bf16.msra.mxu0 %v3064
    %3441 = vmatprep.mubr.bf16.mxu0 %v2807
    %3442 = vmatmul.mubr.bf16.gmra.mrb[0].mxu0 %v2806
    %v3443 = vpop.f32.mrb[0].mxu0
    %v3444 = vadd.f32 %v3401, %v3443
    %v3445 = vpop.f32.mrb[0].mxu0
    %v3446 = vadd.f32 %v3403, %v3445
    %v3447 = vpop.f32.mrb[0].mxu0
    %v3448 = vadd.f32 %v3405, %v3447
    %v3449 = vpop.f32.mrb[0].mxu0
    %v3450 = vadd.f32 %v3407, %v3449
    %3451 = vdwg.mxu0
    %vm3452 = vcmp.gt.f32.partialorder %v3186, 0.0
    %vm3453 = vcmp.gt.f32.partialorder %v3188, 0.0
    %vm3454 = vcmp.gt.f32.partialorder %v3272, 0.0
    %vm3455 = vcmp.gt.f32.partialorder %v3274, 0.0
    %vm3456 = vcmp.gt.f32.partialorder %v3358, 0.0
    %vm3457 = vcmp.gt.f32.partialorder %v3360, 0.0
    %vm3458 = vcmp.gt.f32.partialorder %v3444, 0.0
    %vm3459 = vcmp.gt.f32.partialorder %v3446, 0.0
    %vm3460 = vcmp.gt.f32.partialorder %v3190, 0.0
    %vm3461 = vcmp.gt.f32.partialorder %v3192, 0.0
    %vm3462 = vcmp.gt.f32.partialorder %v3276, 0.0
    %vm3463 = vcmp.gt.f32.partialorder %v3278, 0.0
    %vm3464 = vcmp.gt.f32.partialorder %v3362, 0.0
    %vm3465 = vcmp.gt.f32.partialorder %v3364, 0.0
    %vm3466 = vcmp.gt.f32.partialorder %v3448, 0.0
    %vm3467 = vcmp.gt.f32.partialorder %v3450, 0.0
    %v3468 = vmul.f32 %v3186, 0.2
    %v3469 = vmul.f32 %v3188, 0.2
    %v3470 = vmul.f32 %v3272, 0.2
    %v3471 = vmul.f32 %v3274, 0.2
    %v3472 = vmul.f32 %v3358, 0.2
    %v3473 = vmul.f32 %v3360, 0.2
    %v3474 = vmul.f32 %v3444, 0.2
    %v3475 = vmul.f32 %v3446, 0.2
    %v3476 = vmul.f32 %v3190, 0.2
    %v3477 = vmul.f32 %v3192, 0.2
    %v3478 = vmul.f32 %v3276, 0.2
    %v3479 = vmul.f32 %v3278, 0.2
    %v3480 = vmul.f32 %v3362, 0.2
    %v3481 = vmul.f32 %v3364, 0.2
    %v3482 = vmul.f32 %v3448, 0.2
    %v3483 = vmul.f32 %v3450, 0.2
    %v3484 = vsel %vm3452, %v3186, %v3468
    %v3485 = vsel %vm3453, %v3188, %v3469
    %v3486 = vsel %vm3454, %v3272, %v3470
    %v3487 = vsel %vm3455, %v3274, %v3471
    %v3488 = vsel %vm3456, %v3358, %v3472
    %v3489 = vsel %vm3457, %v3360, %v3473
    %v3490 = vsel %vm3458, %v3444, %v3474
    %v3491 = vsel %vm3459, %v3446, %v3475
    %v3492 = vsel %vm3460, %v3190, %v3476
    %v3493 = vsel %vm3461, %v3192, %v3477
    %v3494 = vsel %vm3462, %v3276, %v3478
    %v3495 = vsel %vm3463, %v3278, %v3479
    %v3496 = vsel %vm3464, %v3362, %v3480
    %v3497 = vsel %vm3465, %v3364, %v3481
    %v3498 = vsel %vm3466, %v3448, %v3482
    %v3499 = vsel %vm3467, %v3450, %v3483
    %v3500 = vpack.c.bf16 %v3492, %v3484
    %v3501 = vpack.c.bf16 %v3493, %v3485
    %v3502 = vpack.c.bf16 %v3494, %v3486
    %v3503 = vpack.c.bf16 %v3495, %v3487
    %v3504 = vpack.c.bf16 %v3496, %v3488
    %v3505 = vpack.c.bf16 %v3497, %v3489
    %v3506 = vpack.c.bf16 %v3498, %v3490
    %v3507 = vpack.c.bf16 %v3499, %v3491
    %s3508 = smul.u32 %s2154, 2
    %s3509 = sshll.u32 %s3508, 4
    %3510 = dma.done %s470, %s3509
    %v3511 = vld [vmem:[#allocation7] sm:$0xff]
    %v3512 = vld [vmem:[#allocation7 + $0x8] sm:$0xff]
    %v3513 = vld [vmem:[#allocation7 + $0x10] sm:$0xff]
    %v3514 = vld [vmem:[#allocation7 + $0x18] sm:$0xff]
    %v3515 = vld [vmem:[#allocation7 + $0x20] sm:$0xff]
    %v3516 = vld [vmem:[#allocation7 + $0x28] sm:$0xff]
    %v3517 = vld [vmem:[#allocation7 + $0x30] sm:$0xff]
    %v3518 = vld [vmem:[#allocation7 + $0x38] sm:$0xff]
    %v3519 = vld [vmem:[#allocation7 + $0x40] sm:$0xff]
    %v3520 = vld [vmem:[#allocation7 + $0x48] sm:$0xff]
    %v3521 = vld [vmem:[#allocation7 + $0x50] sm:$0xff]
    %v3522 = vld [vmem:[#allocation7 + $0x58] sm:$0xff]
    %v3523 = vld [vmem:[#allocation7 + $0x60] sm:$0xff]
    %v3524 = vld [vmem:[#allocation7 + $0x68] sm:$0xff]
    %v3525 = vld [vmem:[#allocation7 + $0x70] sm:$0xff]
    %v3526 = vld [vmem:[#allocation7 + $0x78] sm:$0xff]
    %v3527 = vld [vmem:[#allocation7 + $0x80] sm:$0xff]
    %v3528 = vld [vmem:[#allocation7 + $0x88] sm:$0xff]
    %v3529 = vld [vmem:[#allocation7 + $0x90] sm:$0xff]
    %v3530 = vld [vmem:[#allocation7 + $0x98] sm:$0xff]
    %v3531 = vld [vmem:[#allocation7 + $0xa0] sm:$0xff]
    %v3532 = vld [vmem:[#allocation7 + $0xa8] sm:$0xff]
    %v3533 = vld [vmem:[#allocation7 + $0xb0] sm:$0xff]
    %v3534 = vld [vmem:[#allocation7 + $0xb8] sm:$0xff]
    %v3535 = vld [vmem:[#allocation7 + $0xc0] sm:$0xff]
    %v3536 = vld [vmem:[#allocation7 + $0xc8] sm:$0xff]
    %v3537 = vld [vmem:[#allocation7 + $0xd0] sm:$0xff]
    %v3538 = vld [vmem:[#allocation7 + $0xd8] sm:$0xff]
    %v3539 = vld [vmem:[#allocation7 + $0xe0] sm:$0xff]
    %v3540 = vld [vmem:[#allocation7 + $0xe8] sm:$0xff]
    %v3541 = vld [vmem:[#allocation7 + $0xf0] sm:$0xff]
    %v3542 = vld [vmem:[#allocation7 + $0xf8] sm:$0xff]
    %v3543 = vld [vmem:[#allocation7 + $0x100] sm:$0xff]
    %v3544 = vld [vmem:[#allocation7 + $0x108] sm:$0xff]
    %v3545 = vld [vmem:[#allocation7 + $0x110] sm:$0xff]
    %v3546 = vld [vmem:[#allocation7 + $0x118] sm:$0xff]
    %v3547 = vld [vmem:[#allocation7 + $0x120] sm:$0xff]
    %v3548 = vld [vmem:[#allocation7 + $0x128] sm:$0xff]
    %v3549 = vld [vmem:[#allocation7 + $0x130] sm:$0xff]
    %v3550 = vld [vmem:[#allocation7 + $0x138] sm:$0xff]
    %v3551 = vld [vmem:[#allocation7 + $0x140] sm:$0xff]
    %v3552 = vld [vmem:[#allocation7 + $0x148] sm:$0xff]
    %v3553 = vld [vmem:[#allocation7 + $0x150] sm:$0xff]
    %v3554 = vld [vmem:[#allocation7 + $0x158] sm:$0xff]
    %v3555 = vld [vmem:[#allocation7 + $0x160] sm:$0xff]
    %v3556 = vld [vmem:[#allocation7 + $0x168] sm:$0xff]
    %v3557 = vld [vmem:[#allocation7 + $0x170] sm:$0xff]
    %v3558 = vld [vmem:[#allocation7 + $0x178] sm:$0xff]
    %v3559 = vld [vmem:[#allocation7 + $0x180] sm:$0xff]
    %v3560 = vld [vmem:[#allocation7 + $0x188] sm:$0xff]
    %v3561 = vld [vmem:[#allocation7 + $0x190] sm:$0xff]
    %v3562 = vld [vmem:[#allocation7 + $0x198] sm:$0xff]
    %v3563 = vld [vmem:[#allocation7 + $0x1a0] sm:$0xff]
    %v3564 = vld [vmem:[#allocation7 + $0x1a8] sm:$0xff]
    %v3565 = vld [vmem:[#allocation7 + $0x1b0] sm:$0xff]
    %v3566 = vld [vmem:[#allocation7 + $0x1b8] sm:$0xff]
    %v3567 = vld [vmem:[#allocation7 + $0x1c0] sm:$0xff]
    %v3568 = vld [vmem:[#allocation7 + $0x1c8] sm:$0xff]
    %v3569 = vld [vmem:[#allocation7 + $0x1d0] sm:$0xff]
    %v3570 = vld [vmem:[#allocation7 + $0x1d8] sm:$0xff]
    %v3571 = vld [vmem:[#allocation7 + $0x1e0] sm:$0xff]
    %v3572 = vld [vmem:[#allocation7 + $0x1e8] sm:$0xff]
    %v3573 = vld [vmem:[#allocation7 + $0x1f0] sm:$0xff]
    %v3574 = vld [vmem:[#allocation7 + $0x1f8] sm:$0xff]
    %v3575 = vld [vmem:[#allocation7 + $0x200] sm:$0xff]
    %v3576 = vld [vmem:[#allocation7 + $0x208] sm:$0xff]
    %v3577 = vld [vmem:[#allocation7 + $0x210] sm:$0xff]
    %v3578 = vld [vmem:[#allocation7 + $0x218] sm:$0xff]
    %v3579 = vld [vmem:[#allocation7 + $0x220] sm:$0xff]
    %v3580 = vld [vmem:[#allocation7 + $0x228] sm:$0xff]
    %v3581 = vld [vmem:[#allocation7 + $0x230] sm:$0xff]
    %v3582 = vld [vmem:[#allocation7 + $0x238] sm:$0xff]
    %v3583 = vld [vmem:[#allocation7 + $0x240] sm:$0xff]
    %v3584 = vld [vmem:[#allocation7 + $0x248] sm:$0xff]
    %v3585 = vld [vmem:[#allocation7 + $0x250] sm:$0xff]
    %v3586 = vld [vmem:[#allocation7 + $0x258] sm:$0xff]
    %v3587 = vld [vmem:[#allocation7 + $0x260] sm:$0xff]
    %v3588 = vld [vmem:[#allocation7 + $0x268] sm:$0xff]
    %v3589 = vld [vmem:[#allocation7 + $0x270] sm:$0xff]
    %v3590 = vld [vmem:[#allocation7 + $0x278] sm:$0xff]
    %v3591 = vld [vmem:[#allocation7 + $0x280] sm:$0xff]
    %v3592 = vld [vmem:[#allocation7 + $0x288] sm:$0xff]
    %v3593 = vld [vmem:[#allocation7 + $0x290] sm:$0xff]
    %v3594 = vld [vmem:[#allocation7 + $0x298] sm:$0xff]
    %v3595 = vld [vmem:[#allocation7 + $0x2a0] sm:$0xff]
    %v3596 = vld [vmem:[#allocation7 + $0x2a8] sm:$0xff]
    %v3597 = vld [vmem:[#allocation7 + $0x2b0] sm:$0xff]
    %v3598 = vld [vmem:[#allocation7 + $0x2b8] sm:$0xff]
    %v3599 = vld [vmem:[#allocation7 + $0x2c0] sm:$0xff]
    %v3600 = vld [vmem:[#allocation7 + $0x2c8] sm:$0xff]
    %v3601 = vld [vmem:[#allocation7 + $0x2d0] sm:$0xff]
    %v3602 = vld [vmem:[#allocation7 + $0x2d8] sm:$0xff]
    %v3603 = vld [vmem:[#allocation7 + $0x2e0] sm:$0xff]
    %v3604 = vld [vmem:[#allocation7 + $0x2e8] sm:$0xff]
    %v3605 = vld [vmem:[#allocation7 + $0x2f0] sm:$0xff]
    %v3606 = vld [vmem:[#allocation7 + $0x2f8] sm:$0xff]
    %v3607 = vld [vmem:[#allocation7 + $0x300] sm:$0xff]
    %v3608 = vld [vmem:[#allocation7 + $0x308] sm:$0xff]
    %v3609 = vld [vmem:[#allocation7 + $0x310] sm:$0xff]
    %v3610 = vld [vmem:[#allocation7 + $0x318] sm:$0xff]
    %v3611 = vld [vmem:[#allocation7 + $0x320] sm:$0xff]
    %v3612 = vld [vmem:[#allocation7 + $0x328] sm:$0xff]
    %v3613 = vld [vmem:[#allocation7 + $0x330] sm:$0xff]
    %v3614 = vld [vmem:[#allocation7 + $0x338] sm:$0xff]
    %v3615 = vld [vmem:[#allocation7 + $0x340] sm:$0xff]
    %v3616 = vld [vmem:[#allocation7 + $0x348] sm:$0xff]
    %v3617 = vld [vmem:[#allocation7 + $0x350] sm:$0xff]
    %v3618 = vld [vmem:[#allocation7 + $0x358] sm:$0xff]
    %v3619 = vld [vmem:[#allocation7 + $0x360] sm:$0xff]
    %v3620 = vld [vmem:[#allocation7 + $0x368] sm:$0xff]
    %v3621 = vld [vmem:[#allocation7 + $0x370] sm:$0xff]
    %v3622 = vld [vmem:[#allocation7 + $0x378] sm:$0xff]
    %v3623 = vld [vmem:[#allocation7 + $0x380] sm:$0xff]
    %v3624 = vld [vmem:[#allocation7 + $0x388] sm:$0xff]
    %v3625 = vld [vmem:[#allocation7 + $0x390] sm:$0xff]
    %v3626 = vld [vmem:[#allocation7 + $0x398] sm:$0xff]
    %v3627 = vld [vmem:[#allocation7 + $0x3a0] sm:$0xff]
    %v3628 = vld [vmem:[#allocation7 + $0x3a8] sm:$0xff]
    %v3629 = vld [vmem:[#allocation7 + $0x3b0] sm:$0xff]
    %v3630 = vld [vmem:[#allocation7 + $0x3b8] sm:$0xff]
    %v3631 = vld [vmem:[#allocation7 + $0x3c0] sm:$0xff]
    %v3632 = vld [vmem:[#allocation7 + $0x3c8] sm:$0xff]
    %v3633 = vld [vmem:[#allocation7 + $0x3d0] sm:$0xff]
    %v3634 = vld [vmem:[#allocation7 + $0x3d8] sm:$0xff]
    %v3635 = vld [vmem:[#allocation7 + $0x3e0] sm:$0xff]
    %v3636 = vld [vmem:[#allocation7 + $0x3e8] sm:$0xff]
    %v3637 = vld [vmem:[#allocation7 + $0x3f0] sm:$0xff]
    %v3638 = vld [vmem:[#allocation7 + $0x3f8] sm:$0xff]
    %v3639 = vld [vmem:[%s3 + $0x18] sm:$0x3]
    %v3641 = vlaneseq
    %v3642 = vshrl.u32 %v3641, 7
    %v3643 = vsub.s32 0, %v3642
    %v3644 = vrot.slane %v3639, %v3643
    %v3645 = vlaneseq
    %v3646 = vshrl.u32 %v3645, 7
    %v3647 = vsub.s32 1, %v3646
    %v3648 = vrot.slane %v3639, %v3647
    %3651 = vmatprep.subr.bf16.mxu0 %v3512
    %3652 = vmatpush1.bf16.msra.mxu0 %v3511
    %3653 = vmatprep.subr.bf16.mxu0 %v3514
    %3654 = vmatpush1.bf16.msra.mxu0 %v3513
    %3655 = vmatprep.subr.bf16.mxu0 %v3516
    %3656 = vmatpush1.bf16.msra.mxu0 %v3515
    %3657 = vmatprep.subr.bf16.mxu0 %v3518
    %3658 = vmatpush1.bf16.msra.mxu0 %v3517
    %3659 = vmatprep.subr.bf16.mxu0 %v3520
    %3660 = vmatpush1.bf16.msra.mxu0 %v3519
    %3661 = vmatprep.subr.bf16.mxu0 %v3522
    %3662 = vmatpush1.bf16.msra.mxu0 %v3521
    %3663 = vmatprep.subr.bf16.mxu0 %v3524
    %3664 = vmatpush1.bf16.msra.mxu0 %v3523
    %3665 = vmatprep.subr.bf16.mxu0 %v3526
    %3666 = vmatpush1.bf16.msra.mxu0 %v3525
    %3667 = vmatprep.subr.bf16.mxu0 %v3528
    %3668 = vmatpush1.bf16.msra.mxu0 %v3527
    %3669 = vmatprep.subr.bf16.mxu0 %v3530
    %3670 = vmatpush1.bf16.msra.mxu0 %v3529
    %3671 = vmatprep.subr.bf16.mxu0 %v3532
    %3672 = vmatpush1.bf16.msra.mxu0 %v3531
    %3673 = vmatprep.subr.bf16.mxu0 %v3534
    %3674 = vmatpush1.bf16.msra.mxu0 %v3533
    %3675 = vmatprep.subr.bf16.mxu0 %v3536
    %3676 = vmatpush1.bf16.msra.mxu0 %v3535
    %3677 = vmatprep.subr.bf16.mxu0 %v3538
    %3678 = vmatpush1.bf16.msra.mxu0 %v3537
    %3679 = vmatprep.subr.bf16.mxu0 %v3540
    %3680 = vmatpush1.bf16.msra.mxu0 %v3539
    %3681 = vmatprep.subr.bf16.mxu0 %v3542
    %3682 = vmatpush1.bf16.msra.mxu0 %v3541
    %3683 = vmatprep.mubr.bf16.mxu0 %v3501
    %3684 = vmatmul.mubr.bf16.gmra.mrb[0].mxu0 %v3500
    %v3685 = vpop.f32.mrb[0].mxu0
    %v3686 = vadd.f32 %v3644, %v3685
    %v3687 = vpop.f32.mrb[0].mxu0
    %v3688 = vadd.f32 %v3648, %v3687
    %v3689 = vpop.f32.mrb[0].mxu0
    %v3690 = vadd.f32 %v3644, %v3689
    %v3691 = vpop.f32.mrb[0].mxu0
    %v3692 = vadd.f32 %v3648, %v3691
    %3693 = vdwg.mxu0
    %3694 = vmatprep.subr.bf16.mxu0 %v3544
    %3695 = vmatpush1.bf16.msra.mxu0 %v3543
    %3696 = vmatprep.subr.bf16.mxu0 %v3546
    %3697 = vmatpush1.bf16.msra.mxu0 %v3545
    %3698 = vmatprep.subr.bf16.mxu0 %v3548
    %3699 = vmatpush1.bf16.msra.mxu0 %v3547
    %3700 = vmatprep.subr.bf16.mxu0 %v3550
    %3701 = vmatpush1.bf16.msra.mxu0 %v3549
    %3702 = vmatprep.subr.bf16.mxu0 %v3552
    %3703 = vmatpush1.bf16.msra.mxu0 %v3551
    %3704 = vmatprep.subr.bf16.mxu0 %v3554
    %3705 = vmatpush1.bf16.msra.mxu0 %v3553
    %3706 = vmatprep.subr.bf16.mxu0 %v3556
    %3707 = vmatpush1.bf16.msra.mxu0 %v3555
    %3708 = vmatprep.subr.bf16.mxu0 %v3558
    %3709 = vmatpush1.bf16.msra.mxu0 %v3557
    %3710 = vmatprep.subr.bf16.mxu0 %v3560
    %3711 = vmatpush1.bf16.msra.mxu0 %v3559
    %3712 = vmatprep.subr.bf16.mxu0 %v3562
    %3713 = vmatpush1.bf16.msra.mxu0 %v3561
    %3714 = vmatprep.subr.bf16.mxu0 %v3564
    %3715 = vmatpush1.bf16.msra.mxu0 %v3563
    %3716 = vmatprep.subr.bf16.mxu0 %v3566
    %3717 = vmatpush1.bf16.msra.mxu0 %v3565
    %3718 = vmatprep.subr.bf16.mxu0 %v3568
    %3719 = vmatpush1.bf16.msra.mxu0 %v3567
    %3720 = vmatprep.subr.bf16.mxu0 %v3570
    %3721 = vmatpush1.bf16.msra.mxu0 %v3569
    %3722 = vmatprep.subr.bf16.mxu0 %v3572
    %3723 = vmatpush1.bf16.msra.mxu0 %v3571
    %3724 = vmatprep.subr.bf16.mxu0 %v3574
    %3725 = vmatpush1.bf16.msra.mxu0 %v3573
    %3726 = vmatprep.mubr.bf16.mxu0 %v3503
    %3727 = vmatmul.mubr.bf16.gmra.mrb[0].mxu0 %v3502
    %v3728 = vpop.f32.mrb[0].mxu0
    %v3729 = vadd.f32 %v3686, %v3728
    %v3730 = vpop.f32.mrb[0].mxu0
    %v3731 = vadd.f32 %v3688, %v3730
    %v3732 = vpop.f32.mrb[0].mxu0
    %v3733 = vadd.f32 %v3690, %v3732
    %v3734 = vpop.f32.mrb[0].mxu0
    %v3735 = vadd.f32 %v3692, %v3734
    %3736 = vdwg.mxu0
    %3737 = vmatprep.subr.bf16.mxu0 %v3576
    %3738 = vmatpush1.bf16.msra.mxu0 %v3575
    %3739 = vmatprep.subr.bf16.mxu0 %v3578
    %3740 = vmatpush1.bf16.msra.mxu0 %v3577
    %3741 = vmatprep.subr.bf16.mxu0 %v3580
    %3742 = vmatpush1.bf16.msra.mxu0 %v3579
    %3743 = vmatprep.subr.bf16.mxu0 %v3582
    %3744 = vmatpush1.bf16.msra.mxu0 %v3581
    %3745 = vmatprep.subr.bf16.mxu0 %v3584
    %3746 = vmatpush1.bf16.msra.mxu0 %v3583
    %3747 = vmatprep.subr.bf16.mxu0 %v3586
    %3748 = vmatpush1.bf16.msra.mxu0 %v3585
    %3749 = vmatprep.subr.bf16.mxu0 %v3588
    %3750 = vmatpush1.bf16.msra.mxu0 %v3587
    %3751 = vmatprep.subr.bf16.mxu0 %v3590
    %3752 = vmatpush1.bf16.msra.mxu0 %v3589
    %3753 = vmatprep.subr.bf16.mxu0 %v3592
    %3754 = vmatpush1.bf16.msra.mxu0 %v3591
    %3755 = vmatprep.subr.bf16.mxu0 %v3594
    %3756 = vmatpush1.bf16.msra.mxu0 %v3593
    %3757 = vmatprep.subr.bf16.mxu0 %v3596
    %3758 = vmatpush1.bf16.msra.mxu0 %v3595
    %3759 = vmatprep.subr.bf16.mxu0 %v3598
    %3760 = vmatpush1.bf16.msra.mxu0 %v3597
    %3761 = vmatprep.subr.bf16.mxu0 %v3600
    %3762 = vmatpush1.bf16.msra.mxu0 %v3599
    %3763 = vmatprep.subr.bf16.mxu0 %v3602
    %3764 = vmatpush1.bf16.msra.mxu0 %v3601
    %3765 = vmatprep.subr.bf16.mxu0 %v3604
    %3766 = vmatpush1.bf16.msra.mxu0 %v3603
    %3767 = vmatprep.subr.bf16.mxu0 %v3606
    %3768 = vmatpush1.bf16.msra.mxu0 %v3605
    %3769 = vmatprep.mubr.bf16.mxu0 %v3505
    %3770 = vmatmul.mubr.bf16.gmra.mrb[0].mxu0 %v3504
    %v3771 = vpop.f32.mrb[0].mxu0
    %v3772 = vadd.f32 %v3729, %v3771
    %v3773 = vpop.f32.mrb[0].mxu0
    %v3774 = vadd.f32 %v3731, %v3773
    %v3775 = vpop.f32.mrb[0].mxu0
    %v3776 = vadd.f32 %v3733, %v3775
    %v3777 = vpop.f32.mrb[0].mxu0
    %v3778 = vadd.f32 %v3735, %v3777
    %3779 = vdwg.mxu0
    %3780 = vmatprep.subr.bf16.mxu0 %v3608
    %3781 = vmatpush1.bf16.msra.mxu0 %v3607
    %3782 = vmatprep.subr.bf16.mxu0 %v3610
    %3783 = vmatpush1.bf16.msra.mxu0 %v3609
    %3784 = vmatprep.subr.bf16.mxu0 %v3612
    %3785 = vmatpush1.bf16.msra.mxu0 %v3611
    %3786 = vmatprep.subr.bf16.mxu0 %v3614
    %3787 = vmatpush1.bf16.msra.mxu0 %v3613
    %3788 = vmatprep.subr.bf16.mxu0 %v3616
    %3789 = vmatpush1.bf16.msra.mxu0 %v3615
    %3790 = vmatprep.subr.bf16.mxu0 %v3618
    %3791 = vmatpush1.bf16.msra.mxu0 %v3617
    %3792 = vmatprep.subr.bf16.mxu0 %v3620
    %3793 = vmatpush1.bf16.msra.mxu0 %v3619
    %3794 = vmatprep.subr.bf16.mxu0 %v3622
    %3795 = vmatpush1.bf16.msra.mxu0 %v3621
    %3796 = vmatprep.subr.bf16.mxu0 %v3624
    %3797 = vmatpush1.bf16.msra.mxu0 %v3623
    %3798 = vmatprep.subr.bf16.mxu0 %v3626
    %3799 = vmatpush1.bf16.msra.mxu0 %v3625
    %3800 = vmatprep.subr.bf16.mxu0 %v3628
    %3801 = vmatpush1.bf16.msra.mxu0 %v3627
    %3802 = vmatprep.subr.bf16.mxu0 %v3630
    %3803 = vmatpush1.bf16.msra.mxu0 %v3629
    %3804 = vmatprep.subr.bf16.mxu0 %v3632
    %3805 = vmatpush1.bf16.msra.mxu0 %v3631
    %3806 = vmatprep.subr.bf16.mxu0 %v3634
    %3807 = vmatpush1.bf16.msra.mxu0 %v3633
    %3808 = vmatprep.subr.bf16.mxu0 %v3636
    %3809 = vmatpush1.bf16.msra.mxu0 %v3635
    %3810 = vmatprep.subr.bf16.mxu0 %v3638
    %3811 = vmatpush1.bf16.msra.mxu0 %v3637
    %3812 = vmatprep.mubr.bf16.mxu0 %v3507
    %3813 = vmatmul.mubr.bf16.gmra.mrb[0].mxu0 %v3506
    %v3814 = vpop.f32.mrb[0].mxu0
    %v3815 = vadd.f32 %v3772, %v3814
    %v3816 = vpop.f32.mrb[0].mxu0
    %v3817 = vadd.f32 %v3774, %v3816
    %v3818 = vpop.f32.mrb[0].mxu0
    %v3819 = vadd.f32 %v3776, %v3818
    %v3820 = vpop.f32.mrb[0].mxu0
    %v3821 = vadd.f32 %v3778, %v3820
    %3822 = vdwg.mxu0
    %vm3823 = vcmp.gt.f32.partialorder %v3815, 0.0
    %vm3824 = vcmp.gt.f32.partialorder %v3817, 0.0
    %vm3825 = vcmp.gt.f32.partialorder %v3819, 0.0
    %vm3826 = vcmp.gt.f32.partialorder %v3821, 0.0
    %v3827 = vmul.f32 %v3815, 0.2
    %v3828 = vmul.f32 %v3817, 0.2
    %v3829 = vmul.f32 %v3819, 0.2
    %v3830 = vmul.f32 %v3821, 0.2
    %v3831 = vsel %vm3823, %v3815, %v3827
    %v3832 = vsel %vm3824, %v3817, %v3828
    %v3833 = vsel %vm3825, %v3819, %v3829
    %v3834 = vsel %vm3826, %v3821, %v3830
    %v3835 = vpack.c.bf16 %v3833, %v3831
    %v3836 = vpack.c.bf16 %v3834, %v3832
    %s3837 = smul.u32 4, 32
    %s3838 = smul.u32 %s3837, 1
    %s3839 = sshll.u32 %s3838, 4
    %3840 = dma.done %s505, %s3839
    %v3841 = vld [vmem:[#allocation8] sm:$0xff]
    %v3842 = vld [vmem:[#allocation8 + $0x8] sm:$0xff]
    %v3843 = vld [vmem:[#allocation8 + $0x10] sm:$0xff]
    %v3844 = vld [vmem:[#allocation8 + $0x18] sm:$0xff]
    %v3845 = vld [vmem:[#allocation8 + $0x20] sm:$0xff]
    %v3846 = vld [vmem:[#allocation8 + $0x28] sm:$0xff]
    %v3847 = vld [vmem:[#allocation8 + $0x30] sm:$0xff]
    %v3848 = vld [vmem:[#allocation8 + $0x38] sm:$0xff]
    %v3849 = vld [vmem:[#allocation8 + $0x40] sm:$0xff]
    %v3850 = vld [vmem:[#allocation8 + $0x48] sm:$0xff]
    %v3851 = vld [vmem:[#allocation8 + $0x50] sm:$0xff]
    %v3852 = vld [vmem:[#allocation8 + $0x58] sm:$0xff]
    %v3853 = vld [vmem:[#allocation8 + $0x60] sm:$0xff]
    %v3854 = vld [vmem:[#allocation8 + $0x68] sm:$0xff]
    %v3855 = vld [vmem:[#allocation8 + $0x70] sm:$0xff]
    %v3856 = vld [vmem:[#allocation8 + $0x78] sm:$0xff]
    %v3857 = vld [vmem:[%s3 + $0x1a] sm:$0x1]
    %v3859 = vlaneseq
    %v3860 = vshrl.u32 %v3859, 7
    %v3861 = vsub.s32 0, %v3860
    %v3862 = vrot.slane %v3857, %v3861
    %3864 = vmatprep.subr.bf16.mxu0 0
    %3865 = vmatpush1.bf16.msra.mxu0 %v3841
    %3866 = vmatprep.subr.bf16.mxu0 0
    %3867 = vmatpush1.bf16.msra.mxu0 %v3842
    %3868 = vmatprep.subr.bf16.mxu0 0
    %3869 = vmatpush1.bf16.msra.mxu0 %v3843
    %3870 = vmatprep.subr.bf16.mxu0 0
    %3871 = vmatpush1.bf16.msra.mxu0 %v3844
    %3872 = vmatprep.subr.bf16.mxu0 0
    %3873 = vmatpush1.bf16.msra.mxu0 %v3845
    %3874 = vmatprep.subr.bf16.mxu0 0
    %3875 = vmatpush1.bf16.msra.mxu0 %v3846
    %3876 = vmatprep.subr.bf16.mxu0 0
    %3877 = vmatpush1.bf16.msra.mxu0 %v3847
    %3878 = vmatprep.subr.bf16.mxu0 0
    %3879 = vmatpush1.bf16.msra.mxu0 %v3848
    %3880 = vmatprep.subr.bf16.mxu0 0
    %3881 = vmatpush1.bf16.msra.mxu0 %v3849
    %3882 = vmatprep.subr.bf16.mxu0 0
    %3883 = vmatpush1.bf16.msra.mxu0 %v3850
    %3884 = vmatprep.subr.bf16.mxu0 0
    %3885 = vmatpush1.bf16.msra.mxu0 %v3851
    %3886 = vmatprep.subr.bf16.mxu0 0
    %3887 = vmatpush1.bf16.msra.mxu0 %v3852
    %3888 = vmatprep.subr.bf16.mxu0 0
    %3889 = vmatpush1.bf16.msra.mxu0 %v3853
    %3890 = vmatprep.subr.bf16.mxu0 0
    %3891 = vmatpush1.bf16.msra.mxu0 %v3854
    %3892 = vmatprep.subr.bf16.mxu0 0
    %3893 = vmatpush1.bf16.msra.mxu0 %v3855
    %3894 = vmatprep.subr.bf16.mxu0 0
    %3895 = vmatpush1.bf16.msra.mxu0 %v3856
    %3896 = vmatprep.mubr.bf16.mxu0 %v3836
    %3897 = vmatmul.mubr.bf16.gmra.mrb[0].mxu0 %v3835
    %v3898 = vpop.f32.mrb[0].mxu0
    %v3899 = vadd.f32 %v3862, %v3898
    %v3900 = vpop.f32.mrb[0].mxu0
    %v3901 = vpop.f32.mrb[0].mxu0
    %v3902 = vadd.f32 %v3862, %v3901
    %v3903 = vpop.f32.mrb[0].mxu0
    %3904 = vdwg.mxu0
    %v3905 = vand.u32 2147483647, %v3899
    %v3906 = vand.u32 2147483647, %v3902
    %v3907 = vsub.f32 0.0, %v3905
    %v3908 = vsub.f32 0.0, %v3906
    %v3909 = vmul.f32 %v3907, 1.442695
    %v3910 = vpow.pop %v3909
    %v3911 = vmul.f32 %v3908, 1.442695
    %v3912 = vpow.pop %v3911
    %v3913 = vadd.f32 %v3910, 1.0
    %v3914 = vadd.f32 %v3912, 1.0
    %v3915 = vrcp.pop %v3913
    %v3916 = vrcp.pop %v3914
    %vm3917 = vcmp.ge.f32.partialorder %v3899, 0.0
    %vm3918 = vcmp.ge.f32.partialorder %v3902, 0.0
    %v3919 = vmul.f32 %v3910, %v3915
    %v3920 = vmul.f32 %v3912, %v3916
    %v3921 = vsel %vm3917, %v3915, %v3919
    %v3922 = vsel %vm3918, %v3916, %v3920
    %3923 = vst [vmem:[%s11] sm:$0xff] %v3921
    %3924 = vst [vmem:[%s11 + $0x8] sm:$0xff] %v3922
    // Predicated region
    $region89: #{cdiscriminator_forward.1} parent=1 // pred_check
      _
    $region90: #{cdiscriminator_forward.1} parent=1 // pred_check_branch
      %3926 = sbr.rel (0) target = $region92
    $region91: #{cdiscriminator_forward.1} parent=1 // pred_region
      _
    $region92: #{cdiscriminator_forward.1} parent=1 // pred_fallthru
      _
    // Predicated region
    $region93: #{cdiscriminator_forward.1} parent=1 // pred_check
      _
    $region94: #{cdiscriminator_forward.1} parent=1 // pred_check_branch
      %3928 = sbr.rel (0) target = $region96
    $region95: #{cdiscriminator_forward.1} parent=1 // pred_region
      _
    $region96: #{cdiscriminator_forward.1} parent=1 // pred_fallthru
      _
  %3929 = vsyncmov [#allocation9]
  %s3930 = vpop.sfrf %3929
  %p3931 = scmp.eq.s32.totalorder %s3930, 0
  %p3932 = pneg %p3931
  %3934 = shalt.err (%p3932)
  %s3935 = scalar_lea.sflag [#allocation9], 1
  %3936 = vsyncmov %s3935
  %s3937 = vpop.sfrf %3936
  %p3938 = scmp.eq.s32.totalorder %s3937, 0
  %p3939 = pneg %p3938
  %3941 = shalt.err (%p3939)
  %s3942 = scalar_lea.sflag [#allocation9], 2
  %3943 = vsyncmov %s3942
  %s3944 = vpop.sfrf %3943
  %p3945 = scmp.eq.s32.totalorder %s3944, 0
  %p3946 = pneg %p3945
  %3948 = shalt.err (%p3946)
  %s3949 = scalar_lea.sflag [#allocation9], 3
  %3950 = vsyncmov %s3949
  %s3951 = vpop.sfrf %3950
  %p3952 = scmp.eq.s32.totalorder %s3951, 0
  %p3953 = pneg %p3952
  %3955 = shalt.err (%p3953)
  %s3956 = scalar_lea.sflag [#allocation9], 4
  %3957 = vsyncmov %s3956
  %s3958 = vpop.sfrf %3957
  %p3959 = scmp.eq.s32.totalorder %s3958, 0
  %p3960 = pneg %p3959
  %3962 = shalt.err (%p3960)
  %s3963 = scalar_lea.sflag [#allocation9], 5
  %3964 = vsyncmov %s3963
  %s3965 = vpop.sfrf %3964
  %p3966 = scmp.eq.s32.totalorder %s3965, 0
  %p3967 = pneg %p3966
  %3969 = shalt.err (%p3967)
  %s3970 = scalar_lea.sflag [#allocation9], 6
  %3971 = vsyncmov %s3970
  %s3972 = vpop.sfrf %3971
  %p3973 = scmp.eq.s32.totalorder %s3972, 0
  %p3974 = pneg %p3973
  %3976 = shalt.err (%p3974)

</llo_original>
